<compile_context>
chip_gen: v7x
topology: tpu7x:2x2x1
jax: 0.10.0
libtpu: 0.0.40
codegen_flags: <defaults>
</compile_context>

<pallas_src>
import jax
import jax.numpy as jnp
from jax.experimental import pallas as pl
from jax.experimental.pallas import tpu as pltpu


_PARALLEL = pltpu.CompilerParams(dimension_semantics=("parallel",))


# ---------------------------------------------------------------------------
# In-kernel helpers (all operate on (C, H*W) values: channels on sublanes,
# flattened spatial on lanes).
# ---------------------------------------------------------------------------

def _get_masks(cache, H, W):
    """Boundary-validity masks (1, H*W) for the 9 taps of a zero-padded 3x3 window."""
    key = (H, W)
    if key in cache:
        return cache[key]
    HW = H * W
    p = jax.lax.broadcasted_iota(jnp.int32, (1, HW), 1)
    wi = p % W
    hv = {-1: p >= W, 0: None, 1: p < (HW - W)}
    wv = {-1: wi >= 1, 0: None, 1: wi <= (W - 2)}
    masks = {}
    for oh in (-1, 0, 1):
        for ow in (-1, 0, 1):
            m = hv[oh]
            if wv[ow] is not None:
                m = wv[ow] if m is None else jnp.logical_and(m, wv[ow])
            masks[(oh, ow)] = m
    cache[key] = masks
    return masks


def _tap(x, oh, ow, W, masks):
    """Zero-padded shifted view: out[:, h*W+w] = x[:, (h+oh)*W + (w+ow)] or 0."""
    s = oh * W + ow
    t = x if s == 0 else jnp.roll(x, -s, axis=1)   # lane roll (static shift)
    m = masks[(oh, ow)]
    return t if m is None else jnp.where(m, t, 0.0)


def _conv3x3(x, wT, H, W, masks):
    """3x3 'same' conv, direct-conv form: 9 small bf16 MXU matmuls, f32 accumulation.

    x: (Cin, H*W) f32; wT: (Cout, 9*Cin) bf16 with columns ordered (dh, dw, ci).
    Returns (Cout, H*W) f32.
    """
    cin = x.shape[0]
    acc = None
    t = 0
    for oh in (-1, 0, 1):
        for ow in (-1, 0, 1):
            tap = _tap(x, oh, ow, W, masks).astype(jnp.bfloat16)
            part = jnp.dot(wT[:, t * cin:(t + 1) * cin], tap,
                           preferred_element_type=jnp.float32)
            acc = part if acc is None else acc + part
            t += 1
    return acc


def _conv1x1(x, wT, scale, bias):
    """1x1 conv + folded BN.  x: (Cin, P) f32; wT: (Cout, Cin) bf16."""
    y = jnp.dot(wT, x.astype(jnp.bfloat16), preferred_element_type=jnp.float32)
    return y * scale + bias


def _box9(x, H, W, masks):
    """Exact f32 3x3 zero-padded sliding-window sum (stride 1) on the VPU."""
    acc = None
    for oh in (-1, 0, 1):
        for ow in (-1, 0, 1):
            t = _tap(x, oh, ow, W, masks)
            acc = t if acc is None else acc + t
    return acc


def _select_mm(x, s):
    """x (C, P) f32 times constant 0/1 matrix s (P, Q) bf16, ~f32-exact.

    hi/lo split: two bf16 MXU matmuls with f32 accumulation (rel. error ~2^-17),
    so stride-2 selection / nearest upsample of the residual paths are not
    silently quantized to bf16 (flagged correctness concern).
    """
    hi = x.astype(jnp.bfloat16)
    lo = (x - hi.astype(jnp.float32)).astype(jnp.bfloat16)
    return (jnp.dot(hi, s, preferred_element_type=jnp.float32)
            + jnp.dot(lo, s, preferred_element_type=jnp.float32))


def _basic_block(x, H, W, w, bcfg, mcache, mats):
    """BasicBlock: conv3x3(s)+BN+ReLU -> conv3x3+BN -> (+downsampled identity) -> ReLU?"""
    stride = bcfg["stride"]
    Ho, Wo = H // stride, W // stride
    m_in = _get_masks(mcache, H, W)
    w1, s1, b1, w2, s2, b2 = (r[...] for r in w[:6])

    y = _conv3x3(x, w1, H, W, m_in)
    y = jnp.maximum(y * s1 + b1, 0.0)
    if stride == 2:
        y = _select_mm(y, mats[("sub", H, W)])
    m_out = _get_masks(mcache, Ho, Wo)
    y = _conv3x3(y, w2, Ho, Wo, m_out)
    y = y * s2 + b2

    ident = x
    if bcfg["ds_pool"]:
        ident = _select_mm(_box9(x, H, W, m_in) * (1.0 / 9.0), mats[("sub", H, W)])
    elif stride == 2:
        # TODO(synk): unreachable for this module (_make_layer always pools when stride != 1).
        ident = _select_mm(ident, mats[("sub", H, W)])
    if bcfg["ds_conv"]:
        wd, sd, bd = (r[...] for r in w[6:9])
        ident = _conv1x1(ident, wd, sd, bd)

    out = y + ident
    if bcfg["last_relu"]:
        out = jnp.maximum(out, 0.0)
    return out


# ---------------------------------------------------------------------------
# Fused kernels (one per sarModule layer, one for merge + fusion block)
# ---------------------------------------------------------------------------

def _make_layer_kernel(*, base_cfg, refine_cfg, hw_b, hw_r, fuse, use_1x1,
                       n_base, n_refine, mat_keys):
    n_fuse = 6 if (fuse and use_1x1) else 0
    n_mats = len(mat_keys)

    def kernel(*refs):
        idx = 0
        xb_ref = refs[idx]; idx += 1
        xr_ref = refs[idx]; idx += 1
        base_w = refs[idx: idx + n_base]; idx += n_base
        refine_w = refs[idx: idx + n_refine]; idx += n_refine
        fuse_w = refs[idx: idx + n_fuse]; idx += n_fuse
        mats = {k: refs[idx + j][...] for j, k in enumerate(mat_keys)}
        idx += n_mats
        ob_ref, or_ref = refs[idx], refs[idx + 1]

        Hb, Wb = hw_b
        Hr, Wr = hw_r
        mcache = {}
        xb = _basic_block(xb_ref[0], Hb, Wb, base_w, base_cfg, mcache, mats)
        xr = _basic_block(xr_ref[0], Hr, Wr, refine_w, refine_cfg, mcache, mats)

        if fuse:
            Hbo, Wbo = Hb // base_cfg["stride"], Wb // base_cfg["stride"]
            Hro, Wro = Hr // refine_cfg["stride"], Wr // refine_cfg["stride"]
            if use_1x1:
                wb, sb, bb, wr, sr, br = (r[...] for r in fuse_w)
                x_b2r = _conv1x1(xb, wb, sb, bb)       # (Cr, Hbo*Wbo)
                x_r2b = _conv1x1(xr, wr, sr, br)       # (Cb, Hro*Wro)
            else:                                      # alpha == 1: identity pass-through
                x_b2r, x_r2b = xb, xr
            up = _select_mm(x_b2r, mats[("up", Hbo, Wbo)])           # (Cr, Hro*Wro)
            m_ro = _get_masks(mcache, Hro, Wro)
            down = _select_mm(_box9(x_r2b, Hro, Wro, m_ro) * (1.0 / 9.0),
                              mats[("sub", Hro, Wro)])               # (Cb, Hbo*Wbo)
            xb = jnp.maximum(xb + down, 0.0)
            xr = jnp.maximum(xr + up, 0.0)

        ob_ref[0] = xb
        or_ref[0] = xr

    return kernel


def _make_merge_kernel(*, fusion_cfg, hw_b, hw_r, use_bt, n_fusion, mat_keys):
    n_bt = 3 if use_bt else 0
    n_mats = len(mat_keys)

    def kernel(*refs):
        idx = 0
        xb_ref = refs[idx]; idx += 1
        xr_ref = refs[idx]; idx += 1
        bt_w = refs[idx: idx + n_bt]; idx += n_bt
        fusion_w = refs[idx: idx + n_fusion]; idx += n_fusion
        mats = {k: refs[idx + j][...] for j, k in enumerate(mat_keys)}
        idx += n_mats
        o_ref = refs[idx]

        Hb, Wb = hw_b
        Hr, Wr = hw_r
        mcache = {}
        xb = xb_ref[0]
        if use_bt:
            wt, st, bt = (r[...] for r in bt_w)
            xb = _conv1x1(xb, wt, st, bt)
        up = _select_mm(xb, mats[("up", Hb, Wb)])      # (Cr, Hr*Wr)
        merged = jnp.maximum(up + xr_ref[0], 0.0)
        out = _basic_block(merged, Hr, Wr, fusion_w, fusion_cfg, mcache, mats)
        o_ref[0] = out

    return kernel


# ---------------------------------------------------------------------------
# Host-side packing helpers
# ---------------------------------------------------------------------------

def _col(v):
    return jnp.asarray(v, jnp.float32).reshape(-1, 1)


def _wT3x3(w):
    """(3,3,Cin,Cout) HWIO -> (Cout, 9*Cin) bf16, column order (dh, dw, ci)."""
    cout = w.shape[-1]
    return jnp.transpose(w, (3, 0, 1, 2)).reshape(cout, -1).astype(jnp.bfloat16)


def _wT1x1(w):
    return jnp.transpose(w, (1, 0)).astype(jnp.bfloat16)


def _pack_block(p, last_relu):
    w1, s1, b1 = p["conv1"]
    w2, s2, b2 = p["conv2"]
    arrs = [_wT3x3(w1), _col(s1), _col(b1), _wT3x3(w2), _col(s2), _col(b2)]
    ds = p["ds"]
    ds_pool = ds is not None and ds["avgpool"]
    ds_conv = ds is not None and ds["conv"] is not None
    if ds_conv:
        wd, sd, bd = ds["conv"]
        arrs += [_wT1x1(wd), _col(sd), _col(bd)]
    cfg = dict(stride=p["stride"], ds_pool=ds_pool, ds_conv=ds_conv, last_relu=last_relu)
    return arrs, cfg


def _sub_matrix(H, W):
    """(H*W, Ho*Wo) 0/1 bf16: stride-2 (even h, even w) selection applied on the right."""
    Ho, Wo = H // 2, W // 2
    q = jnp.arange(Ho * Wo)
    src = (q // Wo) * (2 * W) + (q % Wo) * 2
    return (jnp.arange(H * W)[:, None] == src[None, :]).astype(jnp.bfloat16)


def _up_matrix(h, w):
    """(h*w, 4*h*w) 0/1 bf16: nearest 2x upsample applied on the right."""
    H, W = 2 * h, 2 * w
    p = jnp.arange(H * W)
    src = ((p // W) // 2) * w + (p % W) // 2
    return (jnp.arange(h * w)[:, None] == src[None, :]).astype(jnp.bfloat16)


def _collect_mats(keys):
    arrs = []
    for kind, h, w in keys:
        arrs.append(_sub_matrix(h, w) if kind == "sub" else _up_matrix(h, w))
    return arrs


# ---------------------------------------------------------------------------
# pallas_call wrappers
# ---------------------------------------------------------------------------

def layer_step(xb, xr, hw_b, hw_r, base_p, refine_p, lr_b, lr_r, fuse, b2r, r2b):
    """One sarModule layer: base block + refine block (+ bidirectional fusion)."""
    n = xb.shape[0]
    Hb, Wb = hw_b
    Hr, Wr = hw_r
    base_arrs, base_cfg = _pack_block(base_p, lr_b)
    ref_arrs, ref_cfg = _pack_block(refine_p, lr_r)
    use_1x1 = fuse and (b2r is not None)

    arrs = [xb, xr] + base_arrs + ref_arrs
    if use_1x1:
        wb, sb, bb = b2r
        wr, sr, br = r2b
        arrs += [_wT1x1(wb), _col(sb), _col(bb), _wT1x1(wr), _col(sr), _col(br)]

    # Constant selection / upsample matrices (built once, grid-constant inputs).
    mat_keys = []
    def _need(kind, h, w):
        key = (kind, h, w)
        if key not in mat_keys:
            mat_keys.append(key)
    if base_cfg["stride"] == 2:
        _need("sub", Hb, Wb)
    if ref_cfg["stride"] == 2:
        _need("sub", Hr, Wr)
    Hbo, Wbo = Hb // base_cfg["stride"], Wb // base_cfg["stride"]
    Hro, Wro = Hr // ref_cfg["stride"], Wr // ref_cfg["stride"]
    if fuse:
        _need("up", Hbo, Wbo)
        _need("sub", Hro, Wro)
    arrs += _collect_mats(mat_keys)

    cb_out = base_p["conv2"][0].shape[-1]
    cr_out = refine_p["conv2"][0].shape[-1]
    out_shape = (jax.ShapeDtypeStruct((n, cb_out, Hbo * Wbo), jnp.float32),
                 jax.ShapeDtypeStruct((n, cr_out, Hro * Wro), jnp.float32))

    in_specs = [pl.BlockSpec((1,) + xb.shape[1:], lambda i: (i, 0, 0)),
                pl.BlockSpec((1,) + xr.shape[1:], lambda i: (i, 0, 0))]
    in_specs += [pl.BlockSpec(a.shape, lambda i: (0, 0)) for a in arrs[2:]]
    out_specs = (pl.BlockSpec((1, cb_out, Hbo * Wbo), lambda i: (i, 0, 0)),
                 pl.BlockSpec((1, cr_out, Hro * Wro), lambda i: (i, 0, 0)))

    kernel = _make_layer_kernel(base_cfg=base_cfg, refine_cfg=ref_cfg,
                                hw_b=hw_b, hw_r=hw_r, fuse=fuse, use_1x1=use_1x1,
                                n_base=len(base_arrs), n_refine=len(ref_arrs),
                                mat_keys=tuple(mat_keys))
    return pl.pallas_call(
        kernel, grid=(n,), in_specs=in_specs, out_specs=out_specs,
        out_shape=out_shape, compiler_params=_PARALLEL,
    )(*arrs)


def merge_and_fuse(xb, xr, hw_b, hw_r, base_transform, fusion_p, lr_f):
    """base_transform (1x1+BN) -> 2x upsample -> add refine -> ReLU -> fusion block."""
    n = xb.shape[0]
    Hb, Wb = hw_b
    Hr, Wr = hw_r
    use_bt = base_transform is not None
    fusion_arrs, fusion_cfg = _pack_block(fusion_p, lr_f)

    arrs = [xb, xr]
    if use_bt:
        wt, st, bt = base_transform
        arrs += [_wT1x1(wt), _col(st), _col(bt)]
    arrs += fusion_arrs

    mat_keys = [("up", Hb, Wb)]
    if fusion_cfg["stride"] == 2:
        mat_keys.append(("sub", Hr, Wr))
    arrs += _collect_mats(mat_keys)

    cout = fusion_p["conv2"][0].shape[-1]
    Ho, Wo = Hr // fusion_cfg["stride"], Wr // fusion_cfg["stride"]
    out_shape = jax.ShapeDtypeStruct((n, cout, Ho * Wo), jnp.float32)

    in_specs = [pl.BlockSpec((1,) + xb.shape[1:], lambda i: (i, 0, 0)),
                pl.BlockSpec((1,) + xr.shape[1:], lambda i: (i, 0, 0))]
    in_specs += [pl.BlockSpec(a.shape, lambda i: (0, 0)) for a in arrs[2:]]
    out_specs = pl.BlockSpec((1, cout, Ho * Wo), lambda i: (i, 0, 0))

    kernel = _make_merge_kernel(fusion_cfg=fusion_cfg, hw_b=hw_b, hw_r=hw_r,
                                use_bt=use_bt, n_fusion=len(fusion_arrs),
                                mat_keys=tuple(mat_keys))
    return pl.pallas_call(
        kernel, grid=(n,), in_specs=in_specs, out_specs=out_specs,
        out_shape=out_shape, compiler_params=_PARALLEL,
    )(*arrs)


# ---------------------------------------------------------------------------
# Forward pass (mirrors sarModule.forward)
# ---------------------------------------------------------------------------

def sar_forward_pallas(x_nchw, params, alpha):
    n, c, H, W = x_nchw.shape
    x = x_nchw.reshape(n, c, H * W)               # lane-dense (N, C, H*W)
    base_layers, base_lr = params["base"]
    refine_layers, refine_lr = params["refine"]
    nlay = len(base_layers)

    xb, xr = x, x
    hw_b, hw_r = (H, W), (H, W)
    for i in range(nlay):
        fuse = i < nlay - 1
        b2r = params["conv_b2r"][i] if (fuse and alpha < 1) else None
        r2b = params["conv_r2b"][i] if (fuse and alpha < 1) else None
        xb, xr = layer_step(xb, xr, hw_b, hw_r, base_layers[i], refine_layers[i],
                            base_lr[i], refine_lr[i], fuse, b2r, r2b)
        sb, sr = base_layers[i]["stride"], refine_layers[i]["stride"]
        hw_b = (hw_b[0] // sb, hw_b[1] // sb)
        hw_r = (hw_r[0] // sr, hw_r[1] // sr)

    bt = params["base_transform"] if alpha < 1 else None
    fusion_layers, fusion_lr = params["fusion"]
    out = merge_and_fuse(xb, xr, hw_b, hw_r, bt, fusion_layers[0], fusion_lr[0])
    sf = fusion_layers[0]["stride"]
    Ho, Wo = hw_r[0] // sf, hw_r[1] // sf
    return out.reshape(n, out.shape[1], Ho, Wo)   # NCHW


# ---------------------------------------------------------------------------
# Pure-JAX (XLA) reference of the same network (NHWC), same bf16 matmul policy
# ---------------------------------------------------------------------------

def _ref_conv3x3_bn(x, w, scale, bias, *, stride=1, relu=False):
    y = jax.lax.conv_general_dilated(
        x.astype(jnp.bfloat16), w.astype(jnp.bfloat16), (stride, stride),
        ((1, 1), (1, 1)), dimension_numbers=("NHWC", "HWIO", "NHWC"),
        preferred_element_type=jnp.float32)
    y = y * scale + bias
    return jnp.maximum(y, 0.0) if relu else y


def _ref_conv1x1_bn(x, w, scale, bias, *, relu=False):
    n, h, wd, cin = x.shape
    y = jnp.dot(x.reshape(-1, cin).astype(jnp.bfloat16), w.astype(jnp.bfloat16),
                preferred_element_type=jnp.float32).reshape(n, h, wd, -1)
    y = y * scale + bias
    return jnp.maximum(y, 0.0) if relu else y


def _ref_avgpool3_s2(x):
    y = jax.lax.reduce_window(x, 0.0, jax.lax.add, (1, 3, 3, 1), (1, 2, 2, 1),
                              [(0, 0), (1, 1), (1, 1), (0, 0)])
    return y / 9.0


def _ref_upsample2x(x):
    return jnp.repeat(jnp.repeat(x, 2, axis=1), 2, axis=2)


def _ref_block(x, p, last_relu):
    identity = x
    if p["ds"] is not None:
        if p["ds"]["avgpool"]:
            identity = _ref_avgpool3_s2(identity)
        if p["ds"]["conv"] is not None:
            w, s, b = p["ds"]["conv"]
            identity = _ref_conv1x1_bn(identity, w, s, b)
    w1, s1, b1 = p["conv1"]
    out = _ref_conv3x3_bn(x, w1, s1, b1, stride=p["stride"], relu=True)
    w2, s2, b2 = p["conv2"]
    out = _ref_conv3x3_bn(out, w2, s2, b2, stride=1, relu=False)
    out = out + identity
    return jnp.maximum(out, 0.0) if last_relu else out


def sar_forward_ref(x, params, alpha):
    base_layers, base_lr = params["base"]
    refine_layers, refine_lr = params["refine"]
    n = len(base_layers)
    x_base = x_refine = None
    for i in range(n):
        x_base = _ref_block(x if i == 0 else x_base, base_layers[i], base_lr[i])
        x_refine = _ref_block(x if i == 0 else x_refine, refine_layers[i], refine_lr[i])
        if i < n - 1:
            if alpha < 1:
                w, s, b = params["conv_b2r"][i]
                x_b2r = _ref_conv1x1_bn(x_base, w, s, b)
                w, s, b = params["conv_r2b"][i]
                x_r2b = _ref_conv1x1_bn(x_refine, w, s, b)
            else:
                x_b2r, x_r2b = x_base, x_refine
            x_b2r = _ref_upsample2x(x_b2r)
            x_r2b = _ref_avgpool3_s2(x_r2b)
            x_base = jnp.maximum(x_base + x_r2b, 0.0)
            x_refine = jnp.maximum(x_refine + x_b2r, 0.0)
        elif alpha < 1:
            w, s, b = params["base_transform"]
            x_base = _ref_conv1x1_bn(x_base, w, s, b)
    x_base = _ref_upsample2x(x_base)
    out = jnp.maximum(x_base + x_refine, 0.0)
    fusion_layers, fusion_lr = params["fusion"]
    return _ref_block(out, fusion_layers[0], fusion_lr[0])


# ---------------------------------------------------------------------------
# Deterministic parameter initialization (shapes per sarModule.__init__)
# ---------------------------------------------------------------------------

def _init_bn(key, c):
    kg, kb, km, kv = jax.random.split(key, 4)
    gamma = jax.random.uniform(kg, (c,), jnp.float32, 0.5, 1.5)
    beta = 0.1 * jax.random.normal(kb, (c,), jnp.float32)
    mean = 0.1 * jax.random.normal(km, (c,), jnp.float32)
    var = jax.random.uniform(kv, (c,), jnp.float32, 0.5, 1.5)
    scale = gamma / jnp.sqrt(var + 1e-5)
    bias = beta - mean * scale
    return scale, bias


def _init_conv3x3(key, cin, cout):
    kw, kb = jax.random.split(key)
    w = 0.1 * jax.random.normal(kw, (3, 3, cin, cout), jnp.float32)   # HWIO
    scale, bias = _init_bn(kb, cout)
    return (w, scale, bias)


def _init_conv1x1(key, cin, cout):
    kw, kb = jax.random.split(key)
    w = 0.1 * jax.random.normal(kw, (cin, cout), jnp.float32)
    scale, bias = _init_bn(kb, cout)
    return (w, scale, bias)


def _init_block(key, inplanes, planes, stride):
    k1, k2, k3 = jax.random.split(key, 3)
    ds = None
    if stride != 1 or inplanes != planes:
        ds = {"avgpool": stride != 1,
              "conv": _init_conv1x1(k3, inplanes, planes) if inplanes != planes else None}
    return {"conv1": _init_conv3x3(k1, inplanes, planes),
            "conv2": _init_conv3x3(k2, planes, planes),
            "ds": ds, "stride": stride}


def _init_layer(key, inplanes, planes, nblocks, stride):
    keys = jax.random.split(key, nblocks)
    layers = [_init_block(keys[0], inplanes, planes, stride)]
    for j in range(1, nblocks):
        layers.append(_init_block(keys[j], planes, planes, 1))
    last_relu = [True] if nblocks == 1 else [False] * nblocks
    return layers, last_relu


def init_sar_params(key, in_channels, out_channels, blocks, stride, alpha):
    base_planes = int(out_channels * alpha)
    keys = jax.random.split(key, 6)
    params = {
        "base": _init_layer(keys[0], in_channels, base_planes, blocks - 1, 2),
        "refine": _init_layer(keys[1], in_channels, out_channels, blocks - 1, 1),
        "fusion": _init_layer(keys[5], out_channels, out_channels, 1, stride),
    }
    if alpha < 1:
        kb2r = jax.random.split(keys[2], blocks - 1)
        kr2b = jax.random.split(keys[3], blocks - 1)
        params["conv_b2r"] = [_init_conv1x1(k, base_planes, out_channels) for k in kb2r]
        params["conv_r2b"] = [_init_conv1x1(k, out_channels, base_planes) for k in kr2b]
        params["base_transform"] = _init_conv1x1(keys[4], base_planes, out_channels)
    return params


# ---------------------------------------------------------------------------

if __name__ == "__main__":
    key = jax.random.PRNGKey(0)
    kx, kp = jax.random.split(key)

    # small shapes: batch=2, in_channels=4, spatial=16x16, out_channels=16,
    # blocks=3, fusion stride=2, groups=1, alpha=0.5
    N, Cin, H, W = 2, 4, 16, 16
    out_channels, blocks, stride, alpha = 16, 3, 2, 0.5

    x_nchw = jax.random.normal(kx, (N, Cin, H, W), jnp.float32)
    params = init_sar_params(kp, Cin, out_channels, blocks, stride, alpha)

    out = jax.block_until_ready(sar_forward_pallas(x_nchw, params, alpha))

    x_nhwc = jnp.transpose(x_nchw, (0, 2, 3, 1))
    out_ref = jax.block_until_ready(sar_forward_ref(x_nhwc, params, alpha))
    out_ref_nchw = jnp.transpose(out_ref, (0, 3, 1, 2))

    assert out.shape == (N, out_channels, H // 2, W // 2), out.shape
    err = float(jnp.max(jnp.abs(out - out_ref_nchw)))
    ref_mag = float(jnp.max(jnp.abs(out_ref_nchw)))
    # Both paths use bf16 matmul operands with f32 accumulation; the residual /
    # pooling / upsample paths in the kernel are now ~f32-exact (hi/lo split).
    assert err <= 3e-2 * max(ref_mag, 1.0), f"mismatch: {err} (ref max {ref_mag})"

    print("KERNEL_OK")
</pallas_src>

<mosaic_0001>
module attributes {stable_mosaic.version = 11 : i64} {
  func.func @kernel(%arg0: i32, %arg1: memref<1x4x256xf32, #tpu.memory_space<vmem>>, %arg2: memref<1x4x256xf32, #tpu.memory_space<vmem>>, %arg3: memref<8x36xbf16, #tpu.memory_space<vmem>>, %arg4: memref<8x1xf32, #tpu.memory_space<vmem>>, %arg5: memref<8x1xf32, #tpu.memory_space<vmem>>, %arg6: memref<8x72xbf16, #tpu.memory_space<vmem>>, %arg7: memref<8x1xf32, #tpu.memory_space<vmem>>, %arg8: memref<8x1xf32, #tpu.memory_space<vmem>>, %arg9: memref<8x4xbf16, #tpu.memory_space<vmem>>, %arg10: memref<8x1xf32, #tpu.memory_space<vmem>>, %arg11: memref<8x1xf32, #tpu.memory_space<vmem>>, %arg12: memref<16x36xbf16, #tpu.memory_space<vmem>>, %arg13: memref<16x1xf32, #tpu.memory_space<vmem>>, %arg14: memref<16x1xf32, #tpu.memory_space<vmem>>, %arg15: memref<16x144xbf16, #tpu.memory_space<vmem>>, %arg16: memref<16x1xf32, #tpu.memory_space<vmem>>, %arg17: memref<16x1xf32, #tpu.memory_space<vmem>>, %arg18: memref<16x4xbf16, #tpu.memory_space<vmem>>, %arg19: memref<16x1xf32, #tpu.memory_space<vmem>>, %arg20: memref<16x1xf32, #tpu.memory_space<vmem>>, %arg21: memref<16x8xbf16, #tpu.memory_space<vmem>>, %arg22: memref<16x1xf32, #tpu.memory_space<vmem>>, %arg23: memref<16x1xf32, #tpu.memory_space<vmem>>, %arg24: memref<8x16xbf16, #tpu.memory_space<vmem>>, %arg25: memref<8x1xf32, #tpu.memory_space<vmem>>, %arg26: memref<8x1xf32, #tpu.memory_space<vmem>>, %arg27: memref<256x64xbf16, #tpu.memory_space<vmem>>, %arg28: memref<64x256xbf16, #tpu.memory_space<vmem>>, %arg29: memref<1x8x64xf32, #tpu.memory_space<vmem>>, %arg30: memref<1x16x256xf32, #tpu.memory_space<vmem>>) attributes {dimension_semantics = [#tpu.dimension_semantics<parallel>], iteration_bounds = array<i64: 2>, scalar_prefetch = 0 : i64, scratch_operands = 0 : i64, tpu.core_type = #tpu.core_type<tc>, window_params = [{transform_indices = @transform_0, window_bounds = array<i64: 1, 4, 256>}, {transform_indices = @transform_1, window_bounds = array<i64: 1, 4, 256>}, {pipeline_mode = #tpu.pipeline_mode<synchronous>, transform_indices = @transform_2, window_bounds = array<i64: 8, 36>}, {pipeline_mode = #tpu.pipeline_mode<synchronous>, transform_indices = @transform_3, window_bounds = array<i64: 8, 1>}, {pipeline_mode = #tpu.pipeline_mode<synchronous>, transform_indices = @transform_4, window_bounds = array<i64: 8, 1>}, {pipeline_mode = #tpu.pipeline_mode<synchronous>, transform_indices = @transform_5, window_bounds = array<i64: 8, 72>}, {pipeline_mode = #tpu.pipeline_mode<synchronous>, transform_indices = @transform_6, window_bounds = array<i64: 8, 1>}, {pipeline_mode = #tpu.pipeline_mode<synchronous>, transform_indices = @transform_7, window_bounds = array<i64: 8, 1>}, {pipeline_mode = #tpu.pipeline_mode<synchronous>, transform_indices = @transform_8, window_bounds = array<i64: 8, 4>}, {pipeline_mode = #tpu.pipeline_mode<synchronous>, transform_indices = @transform_9, window_bounds = array<i64: 8, 1>}, {pipeline_mode = #tpu.pipeline_mode<synchronous>, transform_indices = @transform_10, window_bounds = array<i64: 8, 1>}, {pipeline_mode = #tpu.pipeline_mode<synchronous>, transform_indices = @transform_11, window_bounds = array<i64: 16, 36>}, {pipeline_mode = #tpu.pipeline_mode<synchronous>, transform_indices = @transform_12, window_bounds = array<i64: 16, 1>}, {pipeline_mode = #tpu.pipeline_mode<synchronous>, transform_indices = @transform_13, window_bounds = array<i64: 16, 1>}, {pipeline_mode = #tpu.pipeline_mode<synchronous>, transform_indices = @transform_14, window_bounds = array<i64: 16, 144>}, {pipeline_mode = #tpu.pipeline_mode<synchronous>, transform_indices = @transform_15, window_bounds = array<i64: 16, 1>}, {pipeline_mode = #tpu.pipeline_mode<synchronous>, transform_indices = @transform_16, window_bounds = array<i64: 16, 1>}, {pipeline_mode = #tpu.pipeline_mode<synchronous>, transform_indices = @transform_17, window_bounds = array<i64: 16, 4>}, {pipeline_mode = #tpu.pipeline_mode<synchronous>, transform_indices = @transform_18, window_bounds = array<i64: 16, 1>}, {pipeline_mode = #tpu.pipeline_mode<synchronous>, transform_indices = @transform_19, window_bounds = array<i64: 16, 1>}, {pipeline_mode = #tpu.pipeline_mode<synchronous>, transform_indices = @transform_20, window_bounds = array<i64: 16, 8>}, {pipeline_mode = #tpu.pipeline_mode<synchronous>, transform_indices = @transform_21, window_bounds = array<i64: 16, 1>}, {pipeline_mode = #tpu.pipeline_mode<synchronous>, transform_indices = @transform_22, window_bounds = array<i64: 16, 1>}, {pipeline_mode = #tpu.pipeline_mode<synchronous>, transform_indices = @transform_23, window_bounds = array<i64: 8, 16>}, {pipeline_mode = #tpu.pipeline_mode<synchronous>, transform_indices = @transform_24, window_bounds = array<i64: 8, 1>}, {pipeline_mode = #tpu.pipeline_mode<synchronous>, transform_indices = @transform_25, window_bounds = array<i64: 8, 1>}, {pipeline_mode = #tpu.pipeline_mode<synchronous>, transform_indices = @transform_26, window_bounds = array<i64: 256, 64>}, {pipeline_mode = #tpu.pipeline_mode<synchronous>, transform_indices = @transform_27, window_bounds = array<i64: 64, 256>}, {transform_indices = @transform_28, window_bounds = array<i64: 1, 8, 64>}, {transform_indices = @transform_29, window_bounds = array<i64: 1, 16, 256>}]} {
    %c0 = arith.constant 0 : index
    %c0_0 = arith.constant 0 : index
    %0 = vector.load %arg27[%c0, %c0_0] : memref<256x64xbf16, #tpu.memory_space<vmem>>, vector<256x64xbf16>
    %c0_1 = arith.constant 0 : index
    %c0_2 = arith.constant 0 : index
    %1 = vector.load %arg28[%c0_1, %c0_2] : memref<64x256xbf16, #tpu.memory_space<vmem>>, vector<64x256xbf16>
    %c0_3 = arith.constant 0 : index
    %c0_4 = arith.constant 0 : index
    %c0_5 = arith.constant 0 : index
    %2 = vector.load %arg1[%c0_3, %c0_4, %c0_5] : memref<1x4x256xf32, #tpu.memory_space<vmem>>, vector<1x4x256xf32>
    %3 = vector.shape_cast %2 : vector<1x4x256xf32> to vector<4x256xf32>
    %4 = tpu.iota {dimensions = array<i32: 1>} : vector<1x256xi32>
    %c16_i32 = arith.constant 16 : i32
    %c0_i32 = arith.constant 0 : i32
    %5 = arith.cmpi eq, %c16_i32, %c0_i32 : i32
    %c1_i32 = arith.constant 1 : i32
    %6 = arith.select %5, %c1_i32, %c16_i32 : i32
    %7 = vector.broadcast %6 : i32 to vector<1x256xi32>
    %8 = arith.remsi %4, %7 : vector<1x256xi32>
    %c0_i32_6 = arith.constant 0 : i32
    %9 = vector.broadcast %c0_i32_6 : i32 to vector<1x256xi32>
    %10 = arith.cmpi ne, %8, %9 : vector<1x256xi32>
    %c0_i32_7 = arith.constant 0 : i32
    %11 = vector.broadcast %c0_i32_7 : i32 to vector<1x256xi32>
    %12 = arith.cmpi slt, %8, %11 : vector<1x256xi32>
    %c0_i32_8 = arith.constant 0 : i32
    %13 = arith.cmpi slt, %6, %c0_i32_8 : i32
    %14 = vector.broadcast %13 : i1 to vector<1x256xi1>
    %15 = vector.broadcast %14 : vector<1x256xi1> to vector<1x256xi1>
    %16 = arith.xori %12, %15 : vector<1x256xi1>
    %17 = arith.andi %16, %10 : vector<1x256xi1>
    %18 = vector.broadcast %6 : i32 to vector<1x256xi32>
    %19 = arith.addi %8, %18 : vector<1x256xi32>
    %20 = arith.select %17, %19, %8 : vector<1x256xi1>, vector<1x256xi32>
    %c16_i32_9 = arith.constant 16 : i32
    %21 = vector.broadcast %c16_i32_9 : i32 to vector<1x256xi32>
    %22 = arith.cmpi sge, %4, %21 : vector<1x256xi32>
    %c240_i32 = arith.constant 240 : i32
    %23 = vector.broadcast %c240_i32 : i32 to vector<1x256xi32>
    %24 = arith.cmpi slt, %4, %23 : vector<1x256xi32>
    %c1_i32_10 = arith.constant 1 : i32
    %25 = vector.broadcast %c1_i32_10 : i32 to vector<1x256xi32>
    %26 = arith.cmpi sge, %20, %25 : vector<1x256xi32>
    %c14_i32 = arith.constant 14 : i32
    %27 = vector.broadcast %c14_i32 : i32 to vector<1x256xi32>
    %28 = arith.cmpi sle, %20, %27 : vector<1x256xi32>
    %29 = arith.andi %22, %26 : vector<1x256xi1>
    %30 = arith.andi %22, %28 : vector<1x256xi1>
    %31 = arith.andi %24, %26 : vector<1x256xi1>
    %32 = arith.andi %24, %28 : vector<1x256xi1>
    %c0_11 = arith.constant 0 : index
    %c0_12 = arith.constant 0 : index
    %33 = vector.load %arg3[%c0_11, %c0_12] : memref<8x36xbf16, #tpu.memory_space<vmem>>, vector<8x36xbf16>
    %c0_13 = arith.constant 0 : index
    %c0_14 = arith.constant 0 : index
    %34 = vector.load %arg4[%c0_13, %c0_14] : memref<8x1xf32, #tpu.memory_space<vmem>>, vector<8x1xf32>
    %c0_15 = arith.constant 0 : index
    %c0_16 = arith.constant 0 : index
    %35 = vector.load %arg5[%c0_15, %c0_16] : memref<8x1xf32, #tpu.memory_space<vmem>>, vector<8x1xf32>
    %c0_17 = arith.constant 0 : index
    %c0_18 = arith.constant 0 : index
    %36 = vector.load %arg6[%c0_17, %c0_18] : memref<8x72xbf16, #tpu.memory_space<vmem>>, vector<8x72xbf16>
    %c0_19 = arith.constant 0 : index
    %c0_20 = arith.constant 0 : index
    %37 = vector.load %arg7[%c0_19, %c0_20] : memref<8x1xf32, #tpu.memory_space<vmem>>, vector<8x1xf32>
    %c0_21 = arith.constant 0 : index
    %c0_22 = arith.constant 0 : index
    %38 = vector.load %arg8[%c0_21, %c0_22] : memref<8x1xf32, #tpu.memory_space<vmem>>, vector<8x1xf32>
    %39 = vector.extract_strided_slice %3 {offsets = [0, 239], sizes = [4, 17], strides = [1, 1]} : vector<4x256xf32> to vector<4x17xf32>
    %40 = vector.extract_strided_slice %3 {offsets = [0, 0], sizes = [4, 239], strides = [1, 1]} : vector<4x256xf32> to vector<4x239xf32>
    %41 = tpu.concatenate %39, %40 in 1 : vector<4x17xf32>, vector<4x239xf32> -> vector<4x256xf32>
    %cst = arith.constant 0.000000e+00 : f32
    %42 = vector.shape_cast %29 : vector<1x256xi1> to vector<1x256xi1>
    %43 = vector.broadcast %42 : vector<1x256xi1> to vector<4x256xi1>
    %44 = vector.broadcast %cst : f32 to vector<4x256xf32>
    %45 = arith.select %43, %41, %44 : vector<4x256xi1>, vector<4x256xf32>
    %46 = arith.truncf %45 : vector<4x256xf32> to vector<4x256xbf16>
    %47 = vector.extract_strided_slice %33 {offsets = [0, 0], sizes = [8, 4], strides = [1, 1]} : vector<8x36xbf16> to vector<8x4xbf16>
    %cst_23 = arith.constant dense<0.000000e+00> : vector<8x256xf32>
    %48 = tpu.matmul %47, %46, %cst_23 {dimension_numbers = #tpu.dot_dimension_numbers<[1], [0], [0], [1], [0, 0, 1, 1], [], []>} : vector<8x4xbf16>, vector<4x256xbf16>, vector<8x256xf32> -> vector<8x256xf32>
    %49 = vector.extract_strided_slice %3 {offsets = [0, 240], sizes = [4, 16], strides = [1, 1]} : vector<4x256xf32> to vector<4x16xf32>
    %50 = vector.extract_strided_slice %3 {offsets = [0, 0], sizes = [4, 240], strides = [1, 1]} : vector<4x256xf32> to vector<4x240xf32>
    %51 = tpu.concatenate %49, %50 in 1 : vector<4x16xf32>, vector<4x240xf32> -> vector<4x256xf32>
    %cst_24 = arith.constant 0.000000e+00 : f32
    %52 = vector.shape_cast %22 : vector<1x256xi1> to vector<1x256xi1>
    %53 = vector.broadcast %52 : vector<1x256xi1> to vector<4x256xi1>
    %54 = vector.broadcast %cst_24 : f32 to vector<4x256xf32>
    %55 = arith.select %53, %51, %54 : vector<4x256xi1>, vector<4x256xf32>
    %56 = arith.truncf %55 : vector<4x256xf32> to vector<4x256xbf16>
    %57 = vector.extract_strided_slice %33 {offsets = [0, 4], sizes = [8, 4], strides = [1, 1]} : vector<8x36xbf16> to vector<8x4xbf16>
    %cst_25 = arith.constant dense<0.000000e+00> : vector<8x256xf32>
    %58 = tpu.matmul %57, %56, %cst_25 {dimension_numbers = #tpu.dot_dimension_numbers<[1], [0], [0], [1], [0, 0, 1, 1], [], []>} : vector<8x4xbf16>, vector<4x256xbf16>, vector<8x256xf32> -> vector<8x256xf32>
    %59 = arith.addf %48, %58 : vector<8x256xf32>
    %60 = vector.extract_strided_slice %3 {offsets = [0, 241], sizes = [4, 15], strides = [1, 1]} : vector<4x256xf32> to vector<4x15xf32>
    %61 = vector.extract_strided_slice %3 {offsets = [0, 0], sizes = [4, 241], strides = [1, 1]} : vector<4x256xf32> to vector<4x241xf32>
    %62 = tpu.concatenate %60, %61 in 1 : vector<4x15xf32>, vector<4x241xf32> -> vector<4x256xf32>
    %cst_26 = arith.constant 0.000000e+00 : f32
    %63 = vector.shape_cast %30 : vector<1x256xi1> to vector<1x256xi1>
    %64 = vector.broadcast %63 : vector<1x256xi1> to vector<4x256xi1>
    %65 = vector.broadcast %cst_26 : f32 to vector<4x256xf32>
    %66 = arith.select %64, %62, %65 : vector<4x256xi1>, vector<4x256xf32>
    %67 = arith.truncf %66 : vector<4x256xf32> to vector<4x256xbf16>
    %68 = vector.extract_strided_slice %33 {offsets = [0, 8], sizes = [8, 4], strides = [1, 1]} : vector<8x36xbf16> to vector<8x4xbf16>
    %cst_27 = arith.constant dense<0.000000e+00> : vector<8x256xf32>
    %69 = tpu.matmul %68, %67, %cst_27 {dimension_numbers = #tpu.dot_dimension_numbers<[1], [0], [0], [1], [0, 0, 1, 1], [], []>} : vector<8x4xbf16>, vector<4x256xbf16>, vector<8x256xf32> -> vector<8x256xf32>
    %70 = arith.addf %59, %69 : vector<8x256xf32>
    %71 = vector.extract_strided_slice %3 {offsets = [0, 255], sizes = [4, 1], strides = [1, 1]} : vector<4x256xf32> to vector<4x1xf32>
    %72 = vector.extract_strided_slice %3 {offsets = [0, 0], sizes = [4, 255], strides = [1, 1]} : vector<4x256xf32> to vector<4x255xf32>
    %73 = tpu.concatenate %71, %72 in 1 : vector<4x1xf32>, vector<4x255xf32> -> vector<4x256xf32>
    %cst_28 = arith.constant 0.000000e+00 : f32
    %74 = vector.shape_cast %26 : vector<1x256xi1> to vector<1x256xi1>
    %75 = vector.broadcast %74 : vector<1x256xi1> to vector<4x256xi1>
    %76 = vector.broadcast %cst_28 : f32 to vector<4x256xf32>
    %77 = arith.select %75, %73, %76 : vector<4x256xi1>, vector<4x256xf32>
    %78 = arith.truncf %77 : vector<4x256xf32> to vector<4x256xbf16>
    %79 = vector.extract_strided_slice %33 {offsets = [0, 12], sizes = [8, 4], strides = [1, 1]} : vector<8x36xbf16> to vector<8x4xbf16>
    %cst_29 = arith.constant dense<0.000000e+00> : vector<8x256xf32>
    %80 = tpu.matmul %79, %78, %cst_29 {dimension_numbers = #tpu.dot_dimension_numbers<[1], [0], [0], [1], [0, 0, 1, 1], [], []>} : vector<8x4xbf16>, vector<4x256xbf16>, vector<8x256xf32> -> vector<8x256xf32>
    %81 = arith.addf %70, %80 : vector<8x256xf32>
    %82 = arith.truncf %3 : vector<4x256xf32> to vector<4x256xbf16>
    %83 = vector.extract_strided_slice %33 {offsets = [0, 16], sizes = [8, 4], strides = [1, 1]} : vector<8x36xbf16> to vector<8x4xbf16>
    %cst_30 = arith.constant dense<0.000000e+00> : vector<8x256xf32>
    %84 = tpu.matmul %83, %82, %cst_30 {dimension_numbers = #tpu.dot_dimension_numbers<[1], [0], [0], [1], [0, 0, 1, 1], [], []>} : vector<8x4xbf16>, vector<4x256xbf16>, vector<8x256xf32> -> vector<8x256xf32>
    %85 = arith.addf %81, %84 : vector<8x256xf32>
    %86 = vector.extract_strided_slice %3 {offsets = [0, 1], sizes = [4, 255], strides = [1, 1]} : vector<4x256xf32> to vector<4x255xf32>
    %87 = vector.extract_strided_slice %3 {offsets = [0, 0], sizes = [4, 1], strides = [1, 1]} : vector<4x256xf32> to vector<4x1xf32>
    %88 = tpu.concatenate %86, %87 in 1 : vector<4x255xf32>, vector<4x1xf32> -> vector<4x256xf32>
    %cst_31 = arith.constant 0.000000e+00 : f32
    %89 = vector.shape_cast %28 : vector<1x256xi1> to vector<1x256xi1>
    %90 = vector.broadcast %89 : vector<1x256xi1> to vector<4x256xi1>
    %91 = vector.broadcast %cst_31 : f32 to vector<4x256xf32>
    %92 = arith.select %90, %88, %91 : vector<4x256xi1>, vector<4x256xf32>
    %93 = arith.truncf %92 : vector<4x256xf32> to vector<4x256xbf16>
    %94 = vector.extract_strided_slice %33 {offsets = [0, 20], sizes = [8, 4], strides = [1, 1]} : vector<8x36xbf16> to vector<8x4xbf16>
    %cst_32 = arith.constant dense<0.000000e+00> : vector<8x256xf32>
    %95 = tpu.matmul %94, %93, %cst_32 {dimension_numbers = #tpu.dot_dimension_numbers<[1], [0], [0], [1], [0, 0, 1, 1], [], []>} : vector<8x4xbf16>, vector<4x256xbf16>, vector<8x256xf32> -> vector<8x256xf32>
    %96 = arith.addf %85, %95 : vector<8x256xf32>
    %97 = vector.extract_strided_slice %3 {offsets = [0, 15], sizes = [4, 241], strides = [1, 1]} : vector<4x256xf32> to vector<4x241xf32>
    %98 = vector.extract_strided_slice %3 {offsets = [0, 0], sizes = [4, 15], strides = [1, 1]} : vector<4x256xf32> to vector<4x15xf32>
    %99 = tpu.concatenate %97, %98 in 1 : vector<4x241xf32>, vector<4x15xf32> -> vector<4x256xf32>
    %cst_33 = arith.constant 0.000000e+00 : f32
    %100 = vector.shape_cast %31 : vector<1x256xi1> to vector<1x256xi1>
    %101 = vector.broadcast %100 : vector<1x256xi1> to vector<4x256xi1>
    %102 = vector.broadcast %cst_33 : f32 to vector<4x256xf32>
    %103 = arith.select %101, %99, %102 : vector<4x256xi1>, vector<4x256xf32>
    %104 = arith.truncf %103 : vector<4x256xf32> to vector<4x256xbf16>
    %105 = vector.extract_strided_slice %33 {offsets = [0, 24], sizes = [8, 4], strides = [1, 1]} : vector<8x36xbf16> to vector<8x4xbf16>
    %cst_34 = arith.constant dense<0.000000e+00> : vector<8x256xf32>
    %106 = tpu.matmul %105, %104, %cst_34 {dimension_numbers = #tpu.dot_dimension_numbers<[1], [0], [0], [1], [0, 0, 1, 1], [], []>} : vector<8x4xbf16>, vector<4x256xbf16>, vector<8x256xf32> -> vector<8x256xf32>
    %107 = arith.addf %96, %106 : vector<8x256xf32>
    %108 = vector.extract_strided_slice %3 {offsets = [0, 16], sizes = [4, 240], strides = [1, 1]} : vector<4x256xf32> to vector<4x240xf32>
    %109 = vector.extract_strided_slice %3 {offsets = [0, 0], sizes = [4, 16], strides = [1, 1]} : vector<4x256xf32> to vector<4x16xf32>
    %110 = tpu.concatenate %108, %109 in 1 : vector<4x240xf32>, vector<4x16xf32> -> vector<4x256xf32>
    %cst_35 = arith.constant 0.000000e+00 : f32
    %111 = vector.shape_cast %24 : vector<1x256xi1> to vector<1x256xi1>
    %112 = vector.broadcast %111 : vector<1x256xi1> to vector<4x256xi1>
    %113 = vector.broadcast %cst_35 : f32 to vector<4x256xf32>
    %114 = arith.select %112, %110, %113 : vector<4x256xi1>, vector<4x256xf32>
    %115 = arith.truncf %114 : vector<4x256xf32> to vector<4x256xbf16>
    %116 = vector.extract_strided_slice %33 {offsets = [0, 28], sizes = [8, 4], strides = [1, 1]} : vector<8x36xbf16> to vector<8x4xbf16>
    %cst_36 = arith.constant dense<0.000000e+00> : vector<8x256xf32>
    %117 = tpu.matmul %116, %115, %cst_36 {dimension_numbers = #tpu.dot_dimension_numbers<[1], [0], [0], [1], [0, 0, 1, 1], [], []>} : vector<8x4xbf16>, vector<4x256xbf16>, vector<8x256xf32> -> vector<8x256xf32>
    %118 = arith.addf %107, %117 : vector<8x256xf32>
    %119 = vector.extract_strided_slice %3 {offsets = [0, 17], sizes = [4, 239], strides = [1, 1]} : vector<4x256xf32> to vector<4x239xf32>
    %120 = vector.extract_strided_slice %3 {offsets = [0, 0], sizes = [4, 17], strides = [1, 1]} : vector<4x256xf32> to vector<4x17xf32>
    %121 = tpu.concatenate %119, %120 in 1 : vector<4x239xf32>, vector<4x17xf32> -> vector<4x256xf32>
    %cst_37 = arith.constant 0.000000e+00 : f32
    %122 = vector.shape_cast %32 : vector<1x256xi1> to vector<1x256xi1>
    %123 = vector.broadcast %122 : vector<1x256xi1> to vector<4x256xi1>
    %124 = vector.broadcast %cst_37 : f32 to vector<4x256xf32>
    %125 = arith.select %123, %121, %124 : vector<4x256xi1>, vector<4x256xf32>
    %126 = arith.truncf %125 : vector<4x256xf32> to vector<4x256xbf16>
    %127 = vector.extract_strided_slice %33 {offsets = [0, 32], sizes = [8, 4], strides = [1, 1]} : vector<8x36xbf16> to vector<8x4xbf16>
    %cst_38 = arith.constant dense<0.000000e+00> : vector<8x256xf32>
    %128 = tpu.matmul %127, %126, %cst_38 {dimension_numbers = #tpu.dot_dimension_numbers<[1], [0], [0], [1], [0, 0, 1, 1], [], []>} : vector<8x4xbf16>, vector<4x256xbf16>, vector<8x256xf32> -> vector<8x256xf32>
    %129 = arith.addf %118, %128 : vector<8x256xf32>
    %130 = vector.broadcast %34 : vector<8x1xf32> to vector<8x256xf32>
    %131 = arith.mulf %129, %130 : vector<8x256xf32>
    %132 = vector.broadcast %35 : vector<8x1xf32> to vector<8x256xf32>
    %133 = arith.addf %131, %132 : vector<8x256xf32>
    %cst_39 = arith.constant 0.000000e+00 : f32
    %134 = vector.broadcast %cst_39 : f32 to vector<8x256xf32>
    %135 = arith.maximumf %133, %134 : vector<8x256xf32>
    %136 = arith.truncf %135 : vector<8x256xf32> to vector<8x256xbf16>
    %137 = arith.extf %136 : vector<8x256xbf16> to vector<8x256xf32>
    %138 = arith.subf %135, %137 : vector<8x256xf32>
    %139 = arith.truncf %138 : vector<8x256xf32> to vector<8x256xbf16>
    %cst_40 = arith.constant dense<0.000000e+00> : vector<8x64xf32>
    %140 = tpu.matmul %136, %0, %cst_40 {dimension_numbers = #tpu.dot_dimension_numbers<[1], [0], [0], [1], [0, 0, 1, 1], [], []>} : vector<8x256xbf16>, vector<256x64xbf16>, vector<8x64xf32> -> vector<8x64xf32>
    %cst_41 = arith.constant dense<0.000000e+00> : vector<8x64xf32>
    %141 = tpu.matmul %139, %0, %cst_41 {dimension_numbers = #tpu.dot_dimension_numbers<[1], [0], [0], [1], [0, 0, 1, 1], [], []>} : vector<8x256xbf16>, vector<256x64xbf16>, vector<8x64xf32> -> vector<8x64xf32>
    %142 = arith.addf %140, %141 : vector<8x64xf32>
    %143 = tpu.iota {dimensions = array<i32: 1>} : vector<1x64xi32>
    %c8_i32 = arith.constant 8 : i32
    %c0_i32_42 = arith.constant 0 : i32
    %144 = arith.cmpi eq, %c8_i32, %c0_i32_42 : i32
    %c1_i32_43 = arith.constant 1 : i32
    %145 = arith.select %144, %c1_i32_43, %c8_i32 : i32
    %146 = vector.broadcast %145 : i32 to vector<1x64xi32>
    %147 = arith.remsi %143, %146 : vector<1x64xi32>
    %c0_i32_44 = arith.constant 0 : i32
    %148 = vector.broadcast %c0_i32_44 : i32 to vector<1x64xi32>
    %149 = arith.cmpi ne, %147, %148 : vector<1x64xi32>
    %c0_i32_45 = arith.constant 0 : i32
    %150 = vector.broadcast %c0_i32_45 : i32 to vector<1x64xi32>
    %151 = arith.cmpi slt, %147, %150 : vector<1x64xi32>
    %c0_i32_46 = arith.constant 0 : i32
    %152 = arith.cmpi slt, %145, %c0_i32_46 : i32
    %153 = vector.broadcast %152 : i1 to vector<1x64xi1>
    %154 = vector.broadcast %153 : vector<1x64xi1> to vector<1x64xi1>
    %155 = arith.xori %151, %154 : vector<1x64xi1>
    %156 = arith.andi %155, %149 : vector<1x64xi1>
    %157 = vector.broadcast %145 : i32 to vector<1x64xi32>
    %158 = arith.addi %147, %157 : vector<1x64xi32>
    %159 = arith.select %156, %158, %147 : vector<1x64xi1>, vector<1x64xi32>
    %c8_i32_47 = arith.constant 8 : i32
    %160 = vector.broadcast %c8_i32_47 : i32 to vector<1x64xi32>
    %161 = arith.cmpi sge, %143, %160 : vector<1x64xi32>
    %c56_i32 = arith.constant 56 : i32
    %162 = vector.broadcast %c56_i32 : i32 to vector<1x64xi32>
    %163 = arith.cmpi slt, %143, %162 : vector<1x64xi32>
    %c1_i32_48 = arith.constant 1 : i32
    %164 = vector.broadcast %c1_i32_48 : i32 to vector<1x64xi32>
    %165 = arith.cmpi sge, %159, %164 : vector<1x64xi32>
    %c6_i32 = arith.constant 6 : i32
    %166 = vector.broadcast %c6_i32 : i32 to vector<1x64xi32>
    %167 = arith.cmpi sle, %159, %166 : vector<1x64xi32>
    %168 = arith.andi %161, %165 : vector<1x64xi1>
    %169 = arith.andi %161, %167 : vector<1x64xi1>
    %170 = arith.andi %163, %165 : vector<1x64xi1>
    %171 = arith.andi %163, %167 : vector<1x64xi1>
    %172 = vector.extract_strided_slice %142 {offsets = [0, 55], sizes = [8, 9], strides = [1, 1]} : vector<8x64xf32> to vector<8x9xf32>
    %173 = vector.extract_strided_slice %142 {offsets = [0, 0], sizes = [8, 55], strides = [1, 1]} : vector<8x64xf32> to vector<8x55xf32>
    %174 = tpu.concatenate %172, %173 in 1 : vector<8x9xf32>, vector<8x55xf32> -> vector<8x64xf32>
    %cst_49 = arith.constant 0.000000e+00 : f32
    %175 = vector.shape_cast %168 : vector<1x64xi1> to vector<1x64xi1>
    %176 = vector.broadcast %175 : vector<1x64xi1> to vector<8x64xi1>
    %177 = vector.broadcast %cst_49 : f32 to vector<8x64xf32>
    %178 = arith.select %176, %174, %177 : vector<8x64xi1>, vector<8x64xf32>
    %179 = arith.truncf %178 : vector<8x64xf32> to vector<8x64xbf16>
    %180 = vector.extract_strided_slice %36 {offsets = [0, 0], sizes = [8, 8], strides = [1, 1]} : vector<8x72xbf16> to vector<8x8xbf16>
    %cst_50 = arith.constant dense<0.000000e+00> : vector<8x64xf32>
    %181 = tpu.matmul %180, %179, %cst_50 {dimension_numbers = #tpu.dot_dimension_numbers<[1], [0], [0], [1], [0, 0, 1, 1], [], []>} : vector<8x8xbf16>, vector<8x64xbf16>, vector<8x64xf32> -> vector<8x64xf32>
    %182 = vector.extract_strided_slice %142 {offsets = [0, 56], sizes = [8, 8], strides = [1, 1]} : vector<8x64xf32> to vector<8x8xf32>
    %183 = vector.extract_strided_slice %142 {offsets = [0, 0], sizes = [8, 56], strides = [1, 1]} : vector<8x64xf32> to vector<8x56xf32>
    %184 = tpu.concatenate %182, %183 in 1 : vector<8x8xf32>, vector<8x56xf32> -> vector<8x64xf32>
    %cst_51 = arith.constant 0.000000e+00 : f32
    %185 = vector.shape_cast %161 : vector<1x64xi1> to vector<1x64xi1>
    %186 = vector.broadcast %185 : vector<1x64xi1> to vector<8x64xi1>
    %187 = vector.broadcast %cst_51 : f32 to vector<8x64xf32>
    %188 = arith.select %186, %184, %187 : vector<8x64xi1>, vector<8x64xf32>
    %189 = arith.truncf %188 : vector<8x64xf32> to vector<8x64xbf16>
    %190 = vector.extract_strided_slice %36 {offsets = [0, 8], sizes = [8, 8], strides = [1, 1]} : vector<8x72xbf16> to vector<8x8xbf16>
    %cst_52 = arith.constant dense<0.000000e+00> : vector<8x64xf32>
    %191 = tpu.matmul %190, %189, %cst_52 {dimension_numbers = #tpu.dot_dimension_numbers<[1], [0], [0], [1], [0, 0, 1, 1], [], []>} : vector<8x8xbf16>, vector<8x64xbf16>, vector<8x64xf32> -> vector<8x64xf32>
    %192 = arith.addf %181, %191 : vector<8x64xf32>
    %193 = vector.extract_strided_slice %142 {offsets = [0, 57], sizes = [8, 7], strides = [1, 1]} : vector<8x64xf32> to vector<8x7xf32>
    %194 = vector.extract_strided_slice %142 {offsets = [0, 0], sizes = [8, 57], strides = [1, 1]} : vector<8x64xf32> to vector<8x57xf32>
    %195 = tpu.concatenate %193, %194 in 1 : vector<8x7xf32>, vector<8x57xf32> -> vector<8x64xf32>
    %cst_53 = arith.constant 0.000000e+00 : f32
    %196 = vector.shape_cast %169 : vector<1x64xi1> to vector<1x64xi1>
    %197 = vector.broadcast %196 : vector<1x64xi1> to vector<8x64xi1>
    %198 = vector.broadcast %cst_53 : f32 to vector<8x64xf32>
    %199 = arith.select %197, %195, %198 : vector<8x64xi1>, vector<8x64xf32>
    %200 = arith.truncf %199 : vector<8x64xf32> to vector<8x64xbf16>
    %201 = vector.extract_strided_slice %36 {offsets = [0, 16], sizes = [8, 8], strides = [1, 1]} : vector<8x72xbf16> to vector<8x8xbf16>
    %cst_54 = arith.constant dense<0.000000e+00> : vector<8x64xf32>
    %202 = tpu.matmul %201, %200, %cst_54 {dimension_numbers = #tpu.dot_dimension_numbers<[1], [0], [0], [1], [0, 0, 1, 1], [], []>} : vector<8x8xbf16>, vector<8x64xbf16>, vector<8x64xf32> -> vector<8x64xf32>
    %203 = arith.addf %192, %202 : vector<8x64xf32>
    %204 = vector.extract_strided_slice %142 {offsets = [0, 63], sizes = [8, 1], strides = [1, 1]} : vector<8x64xf32> to vector<8x1xf32>
    %205 = vector.extract_strided_slice %142 {offsets = [0, 0], sizes = [8, 63], strides = [1, 1]} : vector<8x64xf32> to vector<8x63xf32>
    %206 = tpu.concatenate %204, %205 in 1 : vector<8x1xf32>, vector<8x63xf32> -> vector<8x64xf32>
    %cst_55 = arith.constant 0.000000e+00 : f32
    %207 = vector.shape_cast %165 : vector<1x64xi1> to vector<1x64xi1>
    %208 = vector.broadcast %207 : vector<1x64xi1> to vector<8x64xi1>
    %209 = vector.broadcast %cst_55 : f32 to vector<8x64xf32>
    %210 = arith.select %208, %206, %209 : vector<8x64xi1>, vector<8x64xf32>
    %211 = arith.truncf %210 : vector<8x64xf32> to vector<8x64xbf16>
    %212 = vector.extract_strided_slice %36 {offsets = [0, 24], sizes = [8, 8], strides = [1, 1]} : vector<8x72xbf16> to vector<8x8xbf16>
    %cst_56 = arith.constant dense<0.000000e+00> : vector<8x64xf32>
    %213 = tpu.matmul %212, %211, %cst_56 {dimension_numbers = #tpu.dot_dimension_numbers<[1], [0], [0], [1], [0, 0, 1, 1], [], []>} : vector<8x8xbf16>, vector<8x64xbf16>, vector<8x64xf32> -> vector<8x64xf32>
    %214 = arith.addf %203, %213 : vector<8x64xf32>
    %215 = arith.truncf %142 : vector<8x64xf32> to vector<8x64xbf16>
    %216 = vector.extract_strided_slice %36 {offsets = [0, 32], sizes = [8, 8], strides = [1, 1]} : vector<8x72xbf16> to vector<8x8xbf16>
    %cst_57 = arith.constant dense<0.000000e+00> : vector<8x64xf32>
    %217 = tpu.matmul %216, %215, %cst_57 {dimension_numbers = #tpu.dot_dimension_numbers<[1], [0], [0], [1], [0, 0, 1, 1], [], []>} : vector<8x8xbf16>, vector<8x64xbf16>, vector<8x64xf32> -> vector<8x64xf32>
    %218 = arith.addf %214, %217 : vector<8x64xf32>
    %219 = vector.extract_strided_slice %142 {offsets = [0, 1], sizes = [8, 63], strides = [1, 1]} : vector<8x64xf32> to vector<8x63xf32>
    %220 = vector.extract_strided_slice %142 {offsets = [0, 0], sizes = [8, 1], strides = [1, 1]} : vector<8x64xf32> to vector<8x1xf32>
    %221 = tpu.concatenate %219, %220 in 1 : vector<8x63xf32>, vector<8x1xf32> -> vector<8x64xf32>
    %cst_58 = arith.constant 0.000000e+00 : f32
    %222 = vector.shape_cast %167 : vector<1x64xi1> to vector<1x64xi1>
    %223 = vector.broadcast %222 : vector<1x64xi1> to vector<8x64xi1>
    %224 = vector.broadcast %cst_58 : f32 to vector<8x64xf32>
    %225 = arith.select %223, %221, %224 : vector<8x64xi1>, vector<8x64xf32>
    %226 = arith.truncf %225 : vector<8x64xf32> to vector<8x64xbf16>
    %227 = vector.extract_strided_slice %36 {offsets = [0, 40], sizes = [8, 8], strides = [1, 1]} : vector<8x72xbf16> to vector<8x8xbf16>
    %cst_59 = arith.constant dense<0.000000e+00> : vector<8x64xf32>
    %228 = tpu.matmul %227, %226, %cst_59 {dimension_numbers = #tpu.dot_dimension_numbers<[1], [0], [0], [1], [0, 0, 1, 1], [], []>} : vector<8x8xbf16>, vector<8x64xbf16>, vector<8x64xf32> -> vector<8x64xf32>
    %229 = arith.addf %218, %228 : vector<8x64xf32>
    %230 = vector.extract_strided_slice %142 {offsets = [0, 7], sizes = [8, 57], strides = [1, 1]} : vector<8x64xf32> to vector<8x57xf32>
    %231 = vector.extract_strided_slice %142 {offsets = [0, 0], sizes = [8, 7], strides = [1, 1]} : vector<8x64xf32> to vector<8x7xf32>
    %232 = tpu.concatenate %230, %231 in 1 : vector<8x57xf32>, vector<8x7xf32> -> vector<8x64xf32>
    %cst_60 = arith.constant 0.000000e+00 : f32
    %233 = vector.shape_cast %170 : vector<1x64xi1> to vector<1x64xi1>
    %234 = vector.broadcast %233 : vector<1x64xi1> to vector<8x64xi1>
    %235 = vector.broadcast %cst_60 : f32 to vector<8x64xf32>
    %236 = arith.select %234, %232, %235 : vector<8x64xi1>, vector<8x64xf32>
    %237 = arith.truncf %236 : vector<8x64xf32> to vector<8x64xbf16>
    %238 = vector.extract_strided_slice %36 {offsets = [0, 48], sizes = [8, 8], strides = [1, 1]} : vector<8x72xbf16> to vector<8x8xbf16>
    %cst_61 = arith.constant dense<0.000000e+00> : vector<8x64xf32>
    %239 = tpu.matmul %238, %237, %cst_61 {dimension_numbers = #tpu.dot_dimension_numbers<[1], [0], [0], [1], [0, 0, 1, 1], [], []>} : vector<8x8xbf16>, vector<8x64xbf16>, vector<8x64xf32> -> vector<8x64xf32>
    %240 = arith.addf %229, %239 : vector<8x64xf32>
    %241 = vector.extract_strided_slice %142 {offsets = [0, 8], sizes = [8, 56], strides = [1, 1]} : vector<8x64xf32> to vector<8x56xf32>
    %242 = vector.extract_strided_slice %142 {offsets = [0, 0], sizes = [8, 8], strides = [1, 1]} : vector<8x64xf32> to vector<8x8xf32>
    %243 = tpu.concatenate %241, %242 in 1 : vector<8x56xf32>, vector<8x8xf32> -> vector<8x64xf32>
    %cst_62 = arith.constant 0.000000e+00 : f32
    %244 = vector.shape_cast %163 : vector<1x64xi1> to vector<1x64xi1>
    %245 = vector.broadcast %244 : vector<1x64xi1> to vector<8x64xi1>
    %246 = vector.broadcast %cst_62 : f32 to vector<8x64xf32>
    %247 = arith.select %245, %243, %246 : vector<8x64xi1>, vector<8x64xf32>
    %248 = arith.truncf %247 : vector<8x64xf32> to vector<8x64xbf16>
    %249 = vector.extract_strided_slice %36 {offsets = [0, 56], sizes = [8, 8], strides = [1, 1]} : vector<8x72xbf16> to vector<8x8xbf16>
    %cst_63 = arith.constant dense<0.000000e+00> : vector<8x64xf32>
    %250 = tpu.matmul %249, %248, %cst_63 {dimension_numbers = #tpu.dot_dimension_numbers<[1], [0], [0], [1], [0, 0, 1, 1], [], []>} : vector<8x8xbf16>, vector<8x64xbf16>, vector<8x64xf32> -> vector<8x64xf32>
    %251 = arith.addf %240, %250 : vector<8x64xf32>
    %252 = vector.extract_strided_slice %142 {offsets = [0, 9], sizes = [8, 55], strides = [1, 1]} : vector<8x64xf32> to vector<8x55xf32>
    %253 = vector.extract_strided_slice %142 {offsets = [0, 0], sizes = [8, 9], strides = [1, 1]} : vector<8x64xf32> to vector<8x9xf32>
    %254 = tpu.concatenate %252, %253 in 1 : vector<8x55xf32>, vector<8x9xf32> -> vector<8x64xf32>
    %cst_64 = arith.constant 0.000000e+00 : f32
    %255 = vector.shape_cast %171 : vector<1x64xi1> to vector<1x64xi1>
    %256 = vector.broadcast %255 : vector<1x64xi1> to vector<8x64xi1>
    %257 = vector.broadcast %cst_64 : f32 to vector<8x64xf32>
    %258 = arith.select %256, %254, %257 : vector<8x64xi1>, vector<8x64xf32>
    %259 = arith.truncf %258 : vector<8x64xf32> to vector<8x64xbf16>
    %260 = vector.extract_strided_slice %36 {offsets = [0, 64], sizes = [8, 8], strides = [1, 1]} : vector<8x72xbf16> to vector<8x8xbf16>
    %cst_65 = arith.constant dense<0.000000e+00> : vector<8x64xf32>
    %261 = tpu.matmul %260, %259, %cst_65 {dimension_numbers = #tpu.dot_dimension_numbers<[1], [0], [0], [1], [0, 0, 1, 1], [], []>} : vector<8x8xbf16>, vector<8x64xbf16>, vector<8x64xf32> -> vector<8x64xf32>
    %262 = arith.addf %251, %261 : vector<8x64xf32>
    %263 = vector.broadcast %37 : vector<8x1xf32> to vector<8x64xf32>
    %264 = arith.mulf %262, %263 : vector<8x64xf32>
    %265 = vector.broadcast %38 : vector<8x1xf32> to vector<8x64xf32>
    %266 = arith.addf %264, %265 : vector<8x64xf32>
    %267 = vector.extract_strided_slice %3 {offsets = [0, 239], sizes = [4, 17], strides = [1, 1]} : vector<4x256xf32> to vector<4x17xf32>
    %268 = vector.extract_strided_slice %3 {offsets = [0, 0], sizes = [4, 239], strides = [1, 1]} : vector<4x256xf32> to vector<4x239xf32>
    %269 = tpu.concatenate %267, %268 in 1 : vector<4x17xf32>, vector<4x239xf32> -> vector<4x256xf32>
    %cst_66 = arith.constant 0.000000e+00 : f32
    %270 = vector.shape_cast %29 : vector<1x256xi1> to vector<1x256xi1>
    %271 = vector.broadcast %270 : vector<1x256xi1> to vector<4x256xi1>
    %272 = vector.broadcast %cst_66 : f32 to vector<4x256xf32>
    %273 = arith.select %271, %269, %272 : vector<4x256xi1>, vector<4x256xf32>
    %274 = vector.extract_strided_slice %3 {offsets = [0, 240], sizes = [4, 16], strides = [1, 1]} : vector<4x256xf32> to vector<4x16xf32>
    %275 = vector.extract_strided_slice %3 {offsets = [0, 0], sizes = [4, 240], strides = [1, 1]} : vector<4x256xf32> to vector<4x240xf32>
    %276 = tpu.concatenate %274, %275 in 1 : vector<4x16xf32>, vector<4x240xf32> -> vector<4x256xf32>
    %cst_67 = arith.constant 0.000000e+00 : f32
    %277 = vector.shape_cast %22 : vector<1x256xi1> to vector<1x256xi1>
    %278 = vector.broadcast %277 : vector<1x256xi1> to vector<4x256xi1>
    %279 = vector.broadcast %cst_67 : f32 to vector<4x256xf32>
    %280 = arith.select %278, %276, %279 : vector<4x256xi1>, vector<4x256xf32>
    %281 = arith.addf %273, %280 : vector<4x256xf32>
    %282 = vector.extract_strided_slice %3 {offsets = [0, 241], sizes = [4, 15], strides = [1, 1]} : vector<4x256xf32> to vector<4x15xf32>
    %283 = vector.extract_strided_slice %3 {offsets = [0, 0], sizes = [4, 241], strides = [1, 1]} : vector<4x256xf32> to vector<4x241xf32>
    %284 = tpu.concatenate %282, %283 in 1 : vector<4x15xf32>, vector<4x241xf32> -> vector<4x256xf32>
    %cst_68 = arith.constant 0.000000e+00 : f32
    %285 = vector.shape_cast %30 : vector<1x256xi1> to vector<1x256xi1>
    %286 = vector.broadcast %285 : vector<1x256xi1> to vector<4x256xi1>
    %287 = vector.broadcast %cst_68 : f32 to vector<4x256xf32>
    %288 = arith.select %286, %284, %287 : vector<4x256xi1>, vector<4x256xf32>
    %289 = arith.addf %281, %288 : vector<4x256xf32>
    %290 = vector.extract_strided_slice %3 {offsets = [0, 255], sizes = [4, 1], strides = [1, 1]} : vector<4x256xf32> to vector<4x1xf32>
    %291 = vector.extract_strided_slice %3 {offsets = [0, 0], sizes = [4, 255], strides = [1, 1]} : vector<4x256xf32> to vector<4x255xf32>
    %292 = tpu.concatenate %290, %291 in 1 : vector<4x1xf32>, vector<4x255xf32> -> vector<4x256xf32>
    %cst_69 = arith.constant 0.000000e+00 : f32
    %293 = vector.shape_cast %26 : vector<1x256xi1> to vector<1x256xi1>
    %294 = vector.broadcast %293 : vector<1x256xi1> to vector<4x256xi1>
    %295 = vector.broadcast %cst_69 : f32 to vector<4x256xf32>
    %296 = arith.select %294, %292, %295 : vector<4x256xi1>, vector<4x256xf32>
    %297 = arith.addf %289, %296 : vector<4x256xf32>
    %298 = arith.addf %297, %3 : vector<4x256xf32>
    %299 = vector.extract_strided_slice %3 {offsets = [0, 1], sizes = [4, 255], strides = [1, 1]} : vector<4x256xf32> to vector<4x255xf32>
    %300 = vector.extract_strided_slice %3 {offsets = [0, 0], sizes = [4, 1], strides = [1, 1]} : vector<4x256xf32> to vector<4x1xf32>
    %301 = tpu.concatenate %299, %300 in 1 : vector<4x255xf32>, vector<4x1xf32> -> vector<4x256xf32>
    %cst_70 = arith.constant 0.000000e+00 : f32
    %302 = vector.shape_cast %28 : vector<1x256xi1> to vector<1x256xi1>
    %303 = vector.broadcast %302 : vector<1x256xi1> to vector<4x256xi1>
    %304 = vector.broadcast %cst_70 : f32 to vector<4x256xf32>
    %305 = arith.select %303, %301, %304 : vector<4x256xi1>, vector<4x256xf32>
    %306 = arith.addf %298, %305 : vector<4x256xf32>
    %307 = vector.extract_strided_slice %3 {offsets = [0, 15], sizes = [4, 241], strides = [1, 1]} : vector<4x256xf32> to vector<4x241xf32>
    %308 = vector.extract_strided_slice %3 {offsets = [0, 0], sizes = [4, 15], strides = [1, 1]} : vector<4x256xf32> to vector<4x15xf32>
    %309 = tpu.concatenate %307, %308 in 1 : vector<4x241xf32>, vector<4x15xf32> -> vector<4x256xf32>
    %cst_71 = arith.constant 0.000000e+00 : f32
    %310 = vector.shape_cast %31 : vector<1x256xi1> to vector<1x256xi1>
    %311 = vector.broadcast %310 : vector<1x256xi1> to vector<4x256xi1>
    %312 = vector.broadcast %cst_71 : f32 to vector<4x256xf32>
    %313 = arith.select %311, %309, %312 : vector<4x256xi1>, vector<4x256xf32>
    %314 = arith.addf %306, %313 : vector<4x256xf32>
    %315 = vector.extract_strided_slice %3 {offsets = [0, 16], sizes = [4, 240], strides = [1, 1]} : vector<4x256xf32> to vector<4x240xf32>
    %316 = vector.extract_strided_slice %3 {offsets = [0, 0], sizes = [4, 16], strides = [1, 1]} : vector<4x256xf32> to vector<4x16xf32>
    %317 = tpu.concatenate %315, %316 in 1 : vector<4x240xf32>, vector<4x16xf32> -> vector<4x256xf32>
    %cst_72 = arith.constant 0.000000e+00 : f32
    %318 = vector.shape_cast %24 : vector<1x256xi1> to vector<1x256xi1>
    %319 = vector.broadcast %318 : vector<1x256xi1> to vector<4x256xi1>
    %320 = vector.broadcast %cst_72 : f32 to vector<4x256xf32>
    %321 = arith.select %319, %317, %320 : vector<4x256xi1>, vector<4x256xf32>
    %322 = arith.addf %314, %321 : vector<4x256xf32>
    %323 = vector.extract_strided_slice %3 {offsets = [0, 17], sizes = [4, 239], strides = [1, 1]} : vector<4x256xf32> to vector<4x239xf32>
    %324 = vector.extract_strided_slice %3 {offsets = [0, 0], sizes = [4, 17], strides = [1, 1]} : vector<4x256xf32> to vector<4x17xf32>
    %325 = tpu.concatenate %323, %324 in 1 : vector<4x239xf32>, vector<4x17xf32> -> vector<4x256xf32>
    %cst_73 = arith.constant 0.000000e+00 : f32
    %326 = vector.shape_cast %32 : vector<1x256xi1> to vector<1x256xi1>
    %327 = vector.broadcast %326 : vector<1x256xi1> to vector<4x256xi1>
    %328 = vector.broadcast %cst_73 : f32 to vector<4x256xf32>
    %329 = arith.select %327, %325, %328 : vector<4x256xi1>, vector<4x256xf32>
    %330 = arith.addf %322, %329 : vector<4x256xf32>
    %cst_74 = arith.constant 0.111111112 : f32
    %331 = vector.broadcast %cst_74 : f32 to vector<4x256xf32>
    %332 = arith.mulf %330, %331 : vector<4x256xf32>
    %333 = arith.truncf %332 : vector<4x256xf32> to vector<4x256xbf16>
    %334 = arith.extf %333 : vector<4x256xbf16> to vector<4x256xf32>
    %335 = arith.subf %332, %334 : vector<4x256xf32>
    %336 = arith.truncf %335 : vector<4x256xf32> to vector<4x256xbf16>
    %cst_75 = arith.constant dense<0.000000e+00> : vector<4x64xf32>
    %337 = tpu.matmul %333, %0, %cst_75 {dimension_numbers = #tpu.dot_dimension_numbers<[1], [0], [0], [1], [0, 0, 1, 1], [], []>} : vector<4x256xbf16>, vector<256x64xbf16>, vector<4x64xf32> -> vector<4x64xf32>
    %cst_76 = arith.constant dense<0.000000e+00> : vector<4x64xf32>
    %338 = tpu.matmul %336, %0, %cst_76 {dimension_numbers = #tpu.dot_dimension_numbers<[1], [0], [0], [1], [0, 0, 1, 1], [], []>} : vector<4x256xbf16>, vector<256x64xbf16>, vector<4x64xf32> -> vector<4x64xf32>
    %339 = arith.addf %337, %338 : vector<4x64xf32>
    %c0_77 = arith.constant 0 : index
    %c0_78 = arith.constant 0 : index
    %340 = vector.load %arg9[%c0_77, %c0_78] : memref<8x4xbf16, #tpu.memory_space<vmem>>, vector<8x4xbf16>
    %c0_79 = arith.constant 0 : index
    %c0_80 = arith.constant 0 : index
    %341 = vector.load %arg10[%c0_79, %c0_80] : memref<8x1xf32, #tpu.memory_space<vmem>>, vector<8x1xf32>
    %c0_81 = arith.constant 0 : index
    %c0_82 = arith.constant 0 : index
    %342 = vector.load %arg11[%c0_81, %c0_82] : memref<8x1xf32, #tpu.memory_space<vmem>>, vector<8x1xf32>
    %343 = arith.truncf %339 : vector<4x64xf32> to vector<4x64xbf16>
    %cst_83 = arith.constant dense<0.000000e+00> : vector<8x64xf32>
    %344 = tpu.matmul %340, %343, %cst_83 {dimension_numbers = #tpu.dot_dimension_numbers<[1], [0], [0], [1], [0, 0, 1, 1], [], []>} : vector<8x4xbf16>, vector<4x64xbf16>, vector<8x64xf32> -> vector<8x64xf32>
    %345 = vector.broadcast %341 : vector<8x1xf32> to vector<8x64xf32>
    %346 = arith.mulf %344, %345 : vector<8x64xf32>
    %347 = vector.broadcast %342 : vector<8x1xf32> to vector<8x64xf32>
    %348 = arith.addf %346, %347 : vector<8x64xf32>
    %349 = arith.addf %266, %348 : vector<8x64xf32>
    %c0_84 = arith.constant 0 : index
    %c0_85 = arith.constant 0 : index
    %c0_86 = arith.constant 0 : index
    %350 = vector.load %arg2[%c0_84, %c0_85, %c0_86] : memref<1x4x256xf32, #tpu.memory_space<vmem>>, vector<1x4x256xf32>
    %351 = vector.shape_cast %350 : vector<1x4x256xf32> to vector<4x256xf32>
    %c0_87 = arith.constant 0 : index
    %c0_88 = arith.constant 0 : index
    %352 = vector.load %arg12[%c0_87, %c0_88] : memref<16x36xbf16, #tpu.memory_space<vmem>>, vector<16x36xbf16>
    %c0_89 = arith.constant 0 : index
    %c0_90 = arith.constant 0 : index
    %353 = vector.load %arg13[%c0_89, %c0_90] : memref<16x1xf32, #tpu.memory_space<vmem>>, vector<16x1xf32>
    %c0_91 = arith.constant 0 : index
    %c0_92 = arith.constant 0 : index
    %354 = vector.load %arg14[%c0_91, %c0_92] : memref<16x1xf32, #tpu.memory_space<vmem>>, vector<16x1xf32>
    %c0_93 = arith.constant 0 : index
    %c0_94 = arith.constant 0 : index
    %355 = vector.load %arg15[%c0_93, %c0_94] : memref<16x144xbf16, #tpu.memory_space<vmem>>, vector<16x144xbf16>
    %c0_95 = arith.constant 0 : index
    %c0_96 = arith.constant 0 : index
    %356 = vector.load %arg16[%c0_95, %c0_96] : memref<16x1xf32, #tpu.memory_space<vmem>>, vector<16x1xf32>
    %c0_97 = arith.constant 0 : index
    %c0_98 = arith.constant 0 : index
    %357 = vector.load %arg17[%c0_97, %c0_98] : memref<16x1xf32, #tpu.memory_space<vmem>>, vector<16x1xf32>
    %358 = vector.extract_strided_slice %351 {offsets = [0, 239], sizes = [4, 17], strides = [1, 1]} : vector<4x256xf32> to vector<4x17xf32>
    %359 = vector.extract_strided_slice %351 {offsets = [0, 0], sizes = [4, 239], strides = [1, 1]} : vector<4x256xf32> to vector<4x239xf32>
    %360 = tpu.concatenate %358, %359 in 1 : vector<4x17xf32>, vector<4x239xf32> -> vector<4x256xf32>
    %cst_99 = arith.constant 0.000000e+00 : f32
    %361 = vector.shape_cast %29 : vector<1x256xi1> to vector<1x256xi1>
    %362 = vector.broadcast %361 : vector<1x256xi1> to vector<4x256xi1>
    %363 = vector.broadcast %cst_99 : f32 to vector<4x256xf32>
    %364 = arith.select %362, %360, %363 : vector<4x256xi1>, vector<4x256xf32>
    %365 = arith.truncf %364 : vector<4x256xf32> to vector<4x256xbf16>
    %366 = vector.extract_strided_slice %352 {offsets = [0, 0], sizes = [16, 4], strides = [1, 1]} : vector<16x36xbf16> to vector<16x4xbf16>
    %cst_100 = arith.constant dense<0.000000e+00> : vector<16x256xf32>
    %367 = tpu.matmul %366, %365, %cst_100 {dimension_numbers = #tpu.dot_dimension_numbers<[1], [0], [0], [1], [0, 0, 1, 1], [], []>} : vector<16x4xbf16>, vector<4x256xbf16>, vector<16x256xf32> -> vector<16x256xf32>
    %368 = vector.extract_strided_slice %351 {offsets = [0, 240], sizes = [4, 16], strides = [1, 1]} : vector<4x256xf32> to vector<4x16xf32>
    %369 = vector.extract_strided_slice %351 {offsets = [0, 0], sizes = [4, 240], strides = [1, 1]} : vector<4x256xf32> to vector<4x240xf32>
    %370 = tpu.concatenate %368, %369 in 1 : vector<4x16xf32>, vector<4x240xf32> -> vector<4x256xf32>
    %cst_101 = arith.constant 0.000000e+00 : f32
    %371 = vector.shape_cast %22 : vector<1x256xi1> to vector<1x256xi1>
    %372 = vector.broadcast %371 : vector<1x256xi1> to vector<4x256xi1>
    %373 = vector.broadcast %cst_101 : f32 to vector<4x256xf32>
    %374 = arith.select %372, %370, %373 : vector<4x256xi1>, vector<4x256xf32>
    %375 = arith.truncf %374 : vector<4x256xf32> to vector<4x256xbf16>
    %376 = vector.extract_strided_slice %352 {offsets = [0, 4], sizes = [16, 4], strides = [1, 1]} : vector<16x36xbf16> to vector<16x4xbf16>
    %cst_102 = arith.constant dense<0.000000e+00> : vector<16x256xf32>
    %377 = tpu.matmul %376, %375, %cst_102 {dimension_numbers = #tpu.dot_dimension_numbers<[1], [0], [0], [1], [0, 0, 1, 1], [], []>} : vector<16x4xbf16>, vector<4x256xbf16>, vector<16x256xf32> -> vector<16x256xf32>
    %378 = arith.addf %367, %377 : vector<16x256xf32>
    %379 = vector.extract_strided_slice %351 {offsets = [0, 241], sizes = [4, 15], strides = [1, 1]} : vector<4x256xf32> to vector<4x15xf32>
    %380 = vector.extract_strided_slice %351 {offsets = [0, 0], sizes = [4, 241], strides = [1, 1]} : vector<4x256xf32> to vector<4x241xf32>
    %381 = tpu.concatenate %379, %380 in 1 : vector<4x15xf32>, vector<4x241xf32> -> vector<4x256xf32>
    %cst_103 = arith.constant 0.000000e+00 : f32
    %382 = vector.shape_cast %30 : vector<1x256xi1> to vector<1x256xi1>
    %383 = vector.broadcast %382 : vector<1x256xi1> to vector<4x256xi1>
    %384 = vector.broadcast %cst_103 : f32 to vector<4x256xf32>
    %385 = arith.select %383, %381, %384 : vector<4x256xi1>, vector<4x256xf32>
    %386 = arith.truncf %385 : vector<4x256xf32> to vector<4x256xbf16>
    %387 = vector.extract_strided_slice %352 {offsets = [0, 8], sizes = [16, 4], strides = [1, 1]} : vector<16x36xbf16> to vector<16x4xbf16>
    %cst_104 = arith.constant dense<0.000000e+00> : vector<16x256xf32>
    %388 = tpu.matmul %387, %386, %cst_104 {dimension_numbers = #tpu.dot_dimension_numbers<[1], [0], [0], [1], [0, 0, 1, 1], [], []>} : vector<16x4xbf16>, vector<4x256xbf16>, vector<16x256xf32> -> vector<16x256xf32>
    %389 = arith.addf %378, %388 : vector<16x256xf32>
    %390 = vector.extract_strided_slice %351 {offsets = [0, 255], sizes = [4, 1], strides = [1, 1]} : vector<4x256xf32> to vector<4x1xf32>
    %391 = vector.extract_strided_slice %351 {offsets = [0, 0], sizes = [4, 255], strides = [1, 1]} : vector<4x256xf32> to vector<4x255xf32>
    %392 = tpu.concatenate %390, %391 in 1 : vector<4x1xf32>, vector<4x255xf32> -> vector<4x256xf32>
    %cst_105 = arith.constant 0.000000e+00 : f32
    %393 = vector.shape_cast %26 : vector<1x256xi1> to vector<1x256xi1>
    %394 = vector.broadcast %393 : vector<1x256xi1> to vector<4x256xi1>
    %395 = vector.broadcast %cst_105 : f32 to vector<4x256xf32>
    %396 = arith.select %394, %392, %395 : vector<4x256xi1>, vector<4x256xf32>
    %397 = arith.truncf %396 : vector<4x256xf32> to vector<4x256xbf16>
    %398 = vector.extract_strided_slice %352 {offsets = [0, 12], sizes = [16, 4], strides = [1, 1]} : vector<16x36xbf16> to vector<16x4xbf16>
    %cst_106 = arith.constant dense<0.000000e+00> : vector<16x256xf32>
    %399 = tpu.matmul %398, %397, %cst_106 {dimension_numbers = #tpu.dot_dimension_numbers<[1], [0], [0], [1], [0, 0, 1, 1], [], []>} : vector<16x4xbf16>, vector<4x256xbf16>, vector<16x256xf32> -> vector<16x256xf32>
    %400 = arith.addf %389, %399 : vector<16x256xf32>
    %401 = arith.truncf %351 : vector<4x256xf32> to vector<4x256xbf16>
    %402 = vector.extract_strided_slice %352 {offsets = [0, 16], sizes = [16, 4], strides = [1, 1]} : vector<16x36xbf16> to vector<16x4xbf16>
    %cst_107 = arith.constant dense<0.000000e+00> : vector<16x256xf32>
    %403 = tpu.matmul %402, %401, %cst_107 {dimension_numbers = #tpu.dot_dimension_numbers<[1], [0], [0], [1], [0, 0, 1, 1], [], []>} : vector<16x4xbf16>, vector<4x256xbf16>, vector<16x256xf32> -> vector<16x256xf32>
    %404 = arith.addf %400, %403 : vector<16x256xf32>
    %405 = vector.extract_strided_slice %351 {offsets = [0, 1], sizes = [4, 255], strides = [1, 1]} : vector<4x256xf32> to vector<4x255xf32>
    %406 = vector.extract_strided_slice %351 {offsets = [0, 0], sizes = [4, 1], strides = [1, 1]} : vector<4x256xf32> to vector<4x1xf32>
    %407 = tpu.concatenate %405, %406 in 1 : vector<4x255xf32>, vector<4x1xf32> -> vector<4x256xf32>
    %cst_108 = arith.constant 0.000000e+00 : f32
    %408 = vector.shape_cast %28 : vector<1x256xi1> to vector<1x256xi1>
    %409 = vector.broadcast %408 : vector<1x256xi1> to vector<4x256xi1>
    %410 = vector.broadcast %cst_108 : f32 to vector<4x256xf32>
    %411 = arith.select %409, %407, %410 : vector<4x256xi1>, vector<4x256xf32>
    %412 = arith.truncf %411 : vector<4x256xf32> to vector<4x256xbf16>
    %413 = vector.extract_strided_slice %352 {offsets = [0, 20], sizes = [16, 4], strides = [1, 1]} : vector<16x36xbf16> to vector<16x4xbf16>
    %cst_109 = arith.constant dense<0.000000e+00> : vector<16x256xf32>
    %414 = tpu.matmul %413, %412, %cst_109 {dimension_numbers = #tpu.dot_dimension_numbers<[1], [0], [0], [1], [0, 0, 1, 1], [], []>} : vector<16x4xbf16>, vector<4x256xbf16>, vector<16x256xf32> -> vector<16x256xf32>
    %415 = arith.addf %404, %414 : vector<16x256xf32>
    %416 = vector.extract_strided_slice %351 {offsets = [0, 15], sizes = [4, 241], strides = [1, 1]} : vector<4x256xf32> to vector<4x241xf32>
    %417 = vector.extract_strided_slice %351 {offsets = [0, 0], sizes = [4, 15], strides = [1, 1]} : vector<4x256xf32> to vector<4x15xf32>
    %418 = tpu.concatenate %416, %417 in 1 : vector<4x241xf32>, vector<4x15xf32> -> vector<4x256xf32>
    %cst_110 = arith.constant 0.000000e+00 : f32
    %419 = vector.shape_cast %31 : vector<1x256xi1> to vector<1x256xi1>
    %420 = vector.broadcast %419 : vector<1x256xi1> to vector<4x256xi1>
    %421 = vector.broadcast %cst_110 : f32 to vector<4x256xf32>
    %422 = arith.select %420, %418, %421 : vector<4x256xi1>, vector<4x256xf32>
    %423 = arith.truncf %422 : vector<4x256xf32> to vector<4x256xbf16>
    %424 = vector.extract_strided_slice %352 {offsets = [0, 24], sizes = [16, 4], strides = [1, 1]} : vector<16x36xbf16> to vector<16x4xbf16>
    %cst_111 = arith.constant dense<0.000000e+00> : vector<16x256xf32>
    %425 = tpu.matmul %424, %423, %cst_111 {dimension_numbers = #tpu.dot_dimension_numbers<[1], [0], [0], [1], [0, 0, 1, 1], [], []>} : vector<16x4xbf16>, vector<4x256xbf16>, vector<16x256xf32> -> vector<16x256xf32>
    %426 = arith.addf %415, %425 : vector<16x256xf32>
    %427 = vector.extract_strided_slice %351 {offsets = [0, 16], sizes = [4, 240], strides = [1, 1]} : vector<4x256xf32> to vector<4x240xf32>
    %428 = vector.extract_strided_slice %351 {offsets = [0, 0], sizes = [4, 16], strides = [1, 1]} : vector<4x256xf32> to vector<4x16xf32>
    %429 = tpu.concatenate %427, %428 in 1 : vector<4x240xf32>, vector<4x16xf32> -> vector<4x256xf32>
    %cst_112 = arith.constant 0.000000e+00 : f32
    %430 = vector.shape_cast %24 : vector<1x256xi1> to vector<1x256xi1>
    %431 = vector.broadcast %430 : vector<1x256xi1> to vector<4x256xi1>
    %432 = vector.broadcast %cst_112 : f32 to vector<4x256xf32>
    %433 = arith.select %431, %429, %432 : vector<4x256xi1>, vector<4x256xf32>
    %434 = arith.truncf %433 : vector<4x256xf32> to vector<4x256xbf16>
    %435 = vector.extract_strided_slice %352 {offsets = [0, 28], sizes = [16, 4], strides = [1, 1]} : vector<16x36xbf16> to vector<16x4xbf16>
    %cst_113 = arith.constant dense<0.000000e+00> : vector<16x256xf32>
    %436 = tpu.matmul %435, %434, %cst_113 {dimension_numbers = #tpu.dot_dimension_numbers<[1], [0], [0], [1], [0, 0, 1, 1], [], []>} : vector<16x4xbf16>, vector<4x256xbf16>, vector<16x256xf32> -> vector<16x256xf32>
    %437 = arith.addf %426, %436 : vector<16x256xf32>
    %438 = vector.extract_strided_slice %351 {offsets = [0, 17], sizes = [4, 239], strides = [1, 1]} : vector<4x256xf32> to vector<4x239xf32>
    %439 = vector.extract_strided_slice %351 {offsets = [0, 0], sizes = [4, 17], strides = [1, 1]} : vector<4x256xf32> to vector<4x17xf32>
    %440 = tpu.concatenate %438, %439 in 1 : vector<4x239xf32>, vector<4x17xf32> -> vector<4x256xf32>
    %cst_114 = arith.constant 0.000000e+00 : f32
    %441 = vector.shape_cast %32 : vector<1x256xi1> to vector<1x256xi1>
    %442 = vector.broadcast %441 : vector<1x256xi1> to vector<4x256xi1>
    %443 = vector.broadcast %cst_114 : f32 to vector<4x256xf32>
    %444 = arith.select %442, %440, %443 : vector<4x256xi1>, vector<4x256xf32>
    %445 = arith.truncf %444 : vector<4x256xf32> to vector<4x256xbf16>
    %446 = vector.extract_strided_slice %352 {offsets = [0, 32], sizes = [16, 4], strides = [1, 1]} : vector<16x36xbf16> to vector<16x4xbf16>
    %cst_115 = arith.constant dense<0.000000e+00> : vector<16x256xf32>
    %447 = tpu.matmul %446, %445, %cst_115 {dimension_numbers = #tpu.dot_dimension_numbers<[1], [0], [0], [1], [0, 0, 1, 1], [], []>} : vector<16x4xbf16>, vector<4x256xbf16>, vector<16x256xf32> -> vector<16x256xf32>
    %448 = arith.addf %437, %447 : vector<16x256xf32>
    %449 = vector.broadcast %353 : vector<16x1xf32> to vector<16x256xf32>
    %450 = arith.mulf %448, %449 : vector<16x256xf32>
    %451 = vector.broadcast %354 : vector<16x1xf32> to vector<16x256xf32>
    %452 = arith.addf %450, %451 : vector<16x256xf32>
    %cst_116 = arith.constant 0.000000e+00 : f32
    %453 = vector.broadcast %cst_116 : f32 to vector<16x256xf32>
    %454 = arith.maximumf %452, %453 : vector<16x256xf32>
    %455 = vector.extract_strided_slice %454 {offsets = [0, 239], sizes = [16, 17], strides = [1, 1]} : vector<16x256xf32> to vector<16x17xf32>
    %456 = vector.extract_strided_slice %454 {offsets = [0, 0], sizes = [16, 239], strides = [1, 1]} : vector<16x256xf32> to vector<16x239xf32>
    %457 = tpu.concatenate %455, %456 in 1 : vector<16x17xf32>, vector<16x239xf32> -> vector<16x256xf32>
    %cst_117 = arith.constant 0.000000e+00 : f32
    %458 = vector.shape_cast %29 : vector<1x256xi1> to vector<1x256xi1>
    %459 = vector.broadcast %458 : vector<1x256xi1> to vector<16x256xi1>
    %460 = vector.broadcast %cst_117 : f32 to vector<16x256xf32>
    %461 = arith.select %459, %457, %460 : vector<16x256xi1>, vector<16x256xf32>
    %462 = arith.truncf %461 : vector<16x256xf32> to vector<16x256xbf16>
    %463 = vector.extract_strided_slice %355 {offsets = [0, 0], sizes = [16, 16], strides = [1, 1]} : vector<16x144xbf16> to vector<16x16xbf16>
    %cst_118 = arith.constant dense<0.000000e+00> : vector<16x256xf32>
    %464 = tpu.matmul %463, %462, %cst_118 {dimension_numbers = #tpu.dot_dimension_numbers<[1], [0], [0], [1], [0, 0, 1, 1], [], []>} : vector<16x16xbf16>, vector<16x256xbf16>, vector<16x256xf32> -> vector<16x256xf32>
    %465 = vector.extract_strided_slice %454 {offsets = [0, 240], sizes = [16, 16], strides = [1, 1]} : vector<16x256xf32> to vector<16x16xf32>
    %466 = vector.extract_strided_slice %454 {offsets = [0, 0], sizes = [16, 240], strides = [1, 1]} : vector<16x256xf32> to vector<16x240xf32>
    %467 = tpu.concatenate %465, %466 in 1 : vector<16x16xf32>, vector<16x240xf32> -> vector<16x256xf32>
    %cst_119 = arith.constant 0.000000e+00 : f32
    %468 = vector.shape_cast %22 : vector<1x256xi1> to vector<1x256xi1>
    %469 = vector.broadcast %468 : vector<1x256xi1> to vector<16x256xi1>
    %470 = vector.broadcast %cst_119 : f32 to vector<16x256xf32>
    %471 = arith.select %469, %467, %470 : vector<16x256xi1>, vector<16x256xf32>
    %472 = arith.truncf %471 : vector<16x256xf32> to vector<16x256xbf16>
    %473 = vector.extract_strided_slice %355 {offsets = [0, 16], sizes = [16, 16], strides = [1, 1]} : vector<16x144xbf16> to vector<16x16xbf16>
    %cst_120 = arith.constant dense<0.000000e+00> : vector<16x256xf32>
    %474 = tpu.matmul %473, %472, %cst_120 {dimension_numbers = #tpu.dot_dimension_numbers<[1], [0], [0], [1], [0, 0, 1, 1], [], []>} : vector<16x16xbf16>, vector<16x256xbf16>, vector<16x256xf32> -> vector<16x256xf32>
    %475 = arith.addf %464, %474 : vector<16x256xf32>
    %476 = vector.extract_strided_slice %454 {offsets = [0, 241], sizes = [16, 15], strides = [1, 1]} : vector<16x256xf32> to vector<16x15xf32>
    %477 = vector.extract_strided_slice %454 {offsets = [0, 0], sizes = [16, 241], strides = [1, 1]} : vector<16x256xf32> to vector<16x241xf32>
    %478 = tpu.concatenate %476, %477 in 1 : vector<16x15xf32>, vector<16x241xf32> -> vector<16x256xf32>
    %cst_121 = arith.constant 0.000000e+00 : f32
    %479 = vector.shape_cast %30 : vector<1x256xi1> to vector<1x256xi1>
    %480 = vector.broadcast %479 : vector<1x256xi1> to vector<16x256xi1>
    %481 = vector.broadcast %cst_121 : f32 to vector<16x256xf32>
    %482 = arith.select %480, %478, %481 : vector<16x256xi1>, vector<16x256xf32>
    %483 = arith.truncf %482 : vector<16x256xf32> to vector<16x256xbf16>
    %484 = vector.extract_strided_slice %355 {offsets = [0, 32], sizes = [16, 16], strides = [1, 1]} : vector<16x144xbf16> to vector<16x16xbf16>
    %cst_122 = arith.constant dense<0.000000e+00> : vector<16x256xf32>
    %485 = tpu.matmul %484, %483, %cst_122 {dimension_numbers = #tpu.dot_dimension_numbers<[1], [0], [0], [1], [0, 0, 1, 1], [], []>} : vector<16x16xbf16>, vector<16x256xbf16>, vector<16x256xf32> -> vector<16x256xf32>
    %486 = arith.addf %475, %485 : vector<16x256xf32>
    %487 = vector.extract_strided_slice %454 {offsets = [0, 255], sizes = [16, 1], strides = [1, 1]} : vector<16x256xf32> to vector<16x1xf32>
    %488 = vector.extract_strided_slice %454 {offsets = [0, 0], sizes = [16, 255], strides = [1, 1]} : vector<16x256xf32> to vector<16x255xf32>
    %489 = tpu.concatenate %487, %488 in 1 : vector<16x1xf32>, vector<16x255xf32> -> vector<16x256xf32>
    %cst_123 = arith.constant 0.000000e+00 : f32
    %490 = vector.shape_cast %26 : vector<1x256xi1> to vector<1x256xi1>
    %491 = vector.broadcast %490 : vector<1x256xi1> to vector<16x256xi1>
    %492 = vector.broadcast %cst_123 : f32 to vector<16x256xf32>
    %493 = arith.select %491, %489, %492 : vector<16x256xi1>, vector<16x256xf32>
    %494 = arith.truncf %493 : vector<16x256xf32> to vector<16x256xbf16>
    %495 = vector.extract_strided_slice %355 {offsets = [0, 48], sizes = [16, 16], strides = [1, 1]} : vector<16x144xbf16> to vector<16x16xbf16>
    %cst_124 = arith.constant dense<0.000000e+00> : vector<16x256xf32>
    %496 = tpu.matmul %495, %494, %cst_124 {dimension_numbers = #tpu.dot_dimension_numbers<[1], [0], [0], [1], [0, 0, 1, 1], [], []>} : vector<16x16xbf16>, vector<16x256xbf16>, vector<16x256xf32> -> vector<16x256xf32>
    %497 = arith.addf %486, %496 : vector<16x256xf32>
    %498 = arith.truncf %454 : vector<16x256xf32> to vector<16x256xbf16>
    %499 = vector.extract_strided_slice %355 {offsets = [0, 64], sizes = [16, 16], strides = [1, 1]} : vector<16x144xbf16> to vector<16x16xbf16>
    %cst_125 = arith.constant dense<0.000000e+00> : vector<16x256xf32>
    %500 = tpu.matmul %499, %498, %cst_125 {dimension_numbers = #tpu.dot_dimension_numbers<[1], [0], [0], [1], [0, 0, 1, 1], [], []>} : vector<16x16xbf16>, vector<16x256xbf16>, vector<16x256xf32> -> vector<16x256xf32>
    %501 = arith.addf %497, %500 : vector<16x256xf32>
    %502 = vector.extract_strided_slice %454 {offsets = [0, 1], sizes = [16, 255], strides = [1, 1]} : vector<16x256xf32> to vector<16x255xf32>
    %503 = vector.extract_strided_slice %454 {offsets = [0, 0], sizes = [16, 1], strides = [1, 1]} : vector<16x256xf32> to vector<16x1xf32>
    %504 = tpu.concatenate %502, %503 in 1 : vector<16x255xf32>, vector<16x1xf32> -> vector<16x256xf32>
    %cst_126 = arith.constant 0.000000e+00 : f32
    %505 = vector.shape_cast %28 : vector<1x256xi1> to vector<1x256xi1>
    %506 = vector.broadcast %505 : vector<1x256xi1> to vector<16x256xi1>
    %507 = vector.broadcast %cst_126 : f32 to vector<16x256xf32>
    %508 = arith.select %506, %504, %507 : vector<16x256xi1>, vector<16x256xf32>
    %509 = arith.truncf %508 : vector<16x256xf32> to vector<16x256xbf16>
    %510 = vector.extract_strided_slice %355 {offsets = [0, 80], sizes = [16, 16], strides = [1, 1]} : vector<16x144xbf16> to vector<16x16xbf16>
    %cst_127 = arith.constant dense<0.000000e+00> : vector<16x256xf32>
    %511 = tpu.matmul %510, %509, %cst_127 {dimension_numbers = #tpu.dot_dimension_numbers<[1], [0], [0], [1], [0, 0, 1, 1], [], []>} : vector<16x16xbf16>, vector<16x256xbf16>, vector<16x256xf32> -> vector<16x256xf32>
    %512 = arith.addf %501, %511 : vector<16x256xf32>
    %513 = vector.extract_strided_slice %454 {offsets = [0, 15], sizes = [16, 241], strides = [1, 1]} : vector<16x256xf32> to vector<16x241xf32>
    %514 = vector.extract_strided_slice %454 {offsets = [0, 0], sizes = [16, 15], strides = [1, 1]} : vector<16x256xf32> to vector<16x15xf32>
    %515 = tpu.concatenate %513, %514 in 1 : vector<16x241xf32>, vector<16x15xf32> -> vector<16x256xf32>
    %cst_128 = arith.constant 0.000000e+00 : f32
    %516 = vector.shape_cast %31 : vector<1x256xi1> to vector<1x256xi1>
    %517 = vector.broadcast %516 : vector<1x256xi1> to vector<16x256xi1>
    %518 = vector.broadcast %cst_128 : f32 to vector<16x256xf32>
    %519 = arith.select %517, %515, %518 : vector<16x256xi1>, vector<16x256xf32>
    %520 = arith.truncf %519 : vector<16x256xf32> to vector<16x256xbf16>
    %521 = vector.extract_strided_slice %355 {offsets = [0, 96], sizes = [16, 16], strides = [1, 1]} : vector<16x144xbf16> to vector<16x16xbf16>
    %cst_129 = arith.constant dense<0.000000e+00> : vector<16x256xf32>
    %522 = tpu.matmul %521, %520, %cst_129 {dimension_numbers = #tpu.dot_dimension_numbers<[1], [0], [0], [1], [0, 0, 1, 1], [], []>} : vector<16x16xbf16>, vector<16x256xbf16>, vector<16x256xf32> -> vector<16x256xf32>
    %523 = arith.addf %512, %522 : vector<16x256xf32>
    %524 = vector.extract_strided_slice %454 {offsets = [0, 16], sizes = [16, 240], strides = [1, 1]} : vector<16x256xf32> to vector<16x240xf32>
    %525 = vector.extract_strided_slice %454 {offsets = [0, 0], sizes = [16, 16], strides = [1, 1]} : vector<16x256xf32> to vector<16x16xf32>
    %526 = tpu.concatenate %524, %525 in 1 : vector<16x240xf32>, vector<16x16xf32> -> vector<16x256xf32>
    %cst_130 = arith.constant 0.000000e+00 : f32
    %527 = vector.shape_cast %24 : vector<1x256xi1> to vector<1x256xi1>
    %528 = vector.broadcast %527 : vector<1x256xi1> to vector<16x256xi1>
    %529 = vector.broadcast %cst_130 : f32 to vector<16x256xf32>
    %530 = arith.select %528, %526, %529 : vector<16x256xi1>, vector<16x256xf32>
    %531 = arith.truncf %530 : vector<16x256xf32> to vector<16x256xbf16>
    %532 = vector.extract_strided_slice %355 {offsets = [0, 112], sizes = [16, 16], strides = [1, 1]} : vector<16x144xbf16> to vector<16x16xbf16>
    %cst_131 = arith.constant dense<0.000000e+00> : vector<16x256xf32>
    %533 = tpu.matmul %532, %531, %cst_131 {dimension_numbers = #tpu.dot_dimension_numbers<[1], [0], [0], [1], [0, 0, 1, 1], [], []>} : vector<16x16xbf16>, vector<16x256xbf16>, vector<16x256xf32> -> vector<16x256xf32>
    %534 = arith.addf %523, %533 : vector<16x256xf32>
    %535 = vector.extract_strided_slice %454 {offsets = [0, 17], sizes = [16, 239], strides = [1, 1]} : vector<16x256xf32> to vector<16x239xf32>
    %536 = vector.extract_strided_slice %454 {offsets = [0, 0], sizes = [16, 17], strides = [1, 1]} : vector<16x256xf32> to vector<16x17xf32>
    %537 = tpu.concatenate %535, %536 in 1 : vector<16x239xf32>, vector<16x17xf32> -> vector<16x256xf32>
    %cst_132 = arith.constant 0.000000e+00 : f32
    %538 = vector.shape_cast %32 : vector<1x256xi1> to vector<1x256xi1>
    %539 = vector.broadcast %538 : vector<1x256xi1> to vector<16x256xi1>
    %540 = vector.broadcast %cst_132 : f32 to vector<16x256xf32>
    %541 = arith.select %539, %537, %540 : vector<16x256xi1>, vector<16x256xf32>
    %542 = arith.truncf %541 : vector<16x256xf32> to vector<16x256xbf16>
    %543 = vector.extract_strided_slice %355 {offsets = [0, 128], sizes = [16, 16], strides = [1, 1]} : vector<16x144xbf16> to vector<16x16xbf16>
    %cst_133 = arith.constant dense<0.000000e+00> : vector<16x256xf32>
    %544 = tpu.matmul %543, %542, %cst_133 {dimension_numbers = #tpu.dot_dimension_numbers<[1], [0], [0], [1], [0, 0, 1, 1], [], []>} : vector<16x16xbf16>, vector<16x256xbf16>, vector<16x256xf32> -> vector<16x256xf32>
    %545 = arith.addf %534, %544 : vector<16x256xf32>
    %546 = vector.broadcast %356 : vector<16x1xf32> to vector<16x256xf32>
    %547 = arith.mulf %545, %546 : vector<16x256xf32>
    %548 = vector.broadcast %357 : vector<16x1xf32> to vector<16x256xf32>
    %549 = arith.addf %547, %548 : vector<16x256xf32>
    %c0_134 = arith.constant 0 : index
    %c0_135 = arith.constant 0 : index
    %550 = vector.load %arg18[%c0_134, %c0_135] : memref<16x4xbf16, #tpu.memory_space<vmem>>, vector<16x4xbf16>
    %c0_136 = arith.constant 0 : index
    %c0_137 = arith.constant 0 : index
    %551 = vector.load %arg19[%c0_136, %c0_137] : memref<16x1xf32, #tpu.memory_space<vmem>>, vector<16x1xf32>
    %c0_138 = arith.constant 0 : index
    %c0_139 = arith.constant 0 : index
    %552 = vector.load %arg20[%c0_138, %c0_139] : memref<16x1xf32, #tpu.memory_space<vmem>>, vector<16x1xf32>
    %553 = arith.truncf %351 : vector<4x256xf32> to vector<4x256xbf16>
    %cst_140 = arith.constant dense<0.000000e+00> : vector<16x256xf32>
    %554 = tpu.matmul %550, %553, %cst_140 {dimension_numbers = #tpu.dot_dimension_numbers<[1], [0], [0], [1], [0, 0, 1, 1], [], []>} : vector<16x4xbf16>, vector<4x256xbf16>, vector<16x256xf32> -> vector<16x256xf32>
    %555 = vector.broadcast %551 : vector<16x1xf32> to vector<16x256xf32>
    %556 = arith.mulf %554, %555 : vector<16x256xf32>
    %557 = vector.broadcast %552 : vector<16x1xf32> to vector<16x256xf32>
    %558 = arith.addf %556, %557 : vector<16x256xf32>
    %559 = arith.addf %549, %558 : vector<16x256xf32>
    %c0_141 = arith.constant 0 : index
    %c0_142 = arith.constant 0 : index
    %560 = vector.load %arg21[%c0_141, %c0_142] : memref<16x8xbf16, #tpu.memory_space<vmem>>, vector<16x8xbf16>
    %c0_143 = arith.constant 0 : index
    %c0_144 = arith.constant 0 : index
    %561 = vector.load %arg22[%c0_143, %c0_144] : memref<16x1xf32, #tpu.memory_space<vmem>>, vector<16x1xf32>
    %c0_145 = arith.constant 0 : index
    %c0_146 = arith.constant 0 : index
    %562 = vector.load %arg23[%c0_145, %c0_146] : memref<16x1xf32, #tpu.memory_space<vmem>>, vector<16x1xf32>
    %c0_147 = arith.constant 0 : index
    %c0_148 = arith.constant 0 : index
    %563 = vector.load %arg24[%c0_147, %c0_148] : memref<8x16xbf16, #tpu.memory_space<vmem>>, vector<8x16xbf16>
    %c0_149 = arith.constant 0 : index
    %c0_150 = arith.constant 0 : index
    %564 = vector.load %arg25[%c0_149, %c0_150] : memref<8x1xf32, #tpu.memory_space<vmem>>, vector<8x1xf32>
    %c0_151 = arith.constant 0 : index
    %c0_152 = arith.constant 0 : index
    %565 = vector.load %arg26[%c0_151, %c0_152] : memref<8x1xf32, #tpu.memory_space<vmem>>, vector<8x1xf32>
    %566 = arith.truncf %349 : vector<8x64xf32> to vector<8x64xbf16>
    %cst_153 = arith.constant dense<0.000000e+00> : vector<16x64xf32>
    %567 = tpu.matmul %560, %566, %cst_153 {dimension_numbers = #tpu.dot_dimension_numbers<[1], [0], [0], [1], [0, 0, 1, 1], [], []>} : vector<16x8xbf16>, vector<8x64xbf16>, vector<16x64xf32> -> vector<16x64xf32>
    %568 = vector.broadcast %561 : vector<16x1xf32> to vector<16x64xf32>
    %569 = arith.mulf %567, %568 : vector<16x64xf32>
    %570 = vector.broadcast %562 : vector<16x1xf32> to vector<16x64xf32>
    %571 = arith.addf %569, %570 : vector<16x64xf32>
    %572 = arith.truncf %559 : vector<16x256xf32> to vector<16x256xbf16>
    %cst_154 = arith.constant dense<0.000000e+00> : vector<8x256xf32>
    %573 = tpu.matmul %563, %572, %cst_154 {dimension_numbers = #tpu.dot_dimension_numbers<[1], [0], [0], [1], [0, 0, 1, 1], [], []>} : vector<8x16xbf16>, vector<16x256xbf16>, vector<8x256xf32> -> vector<8x256xf32>
    %574 = vector.broadcast %564 : vector<8x1xf32> to vector<8x256xf32>
    %575 = arith.mulf %573, %574 : vector<8x256xf32>
    %576 = vector.broadcast %565 : vector<8x1xf32> to vector<8x256xf32>
    %577 = arith.addf %575, %576 : vector<8x256xf32>
    %578 = arith.truncf %571 : vector<16x64xf32> to vector<16x64xbf16>
    %579 = arith.extf %578 : vector<16x64xbf16> to vector<16x64xf32>
    %580 = arith.subf %571, %579 : vector<16x64xf32>
    %581 = arith.truncf %580 : vector<16x64xf32> to vector<16x64xbf16>
    %cst_155 = arith.constant dense<0.000000e+00> : vector<16x256xf32>
    %582 = tpu.matmul %578, %1, %cst_155 {dimension_numbers = #tpu.dot_dimension_numbers<[1], [0], [0], [1], [0, 0, 1, 1], [], []>} : vector<16x64xbf16>, vector<64x256xbf16>, vector<16x256xf32> -> vector<16x256xf32>
    %cst_156 = arith.constant dense<0.000000e+00> : vector<16x256xf32>
    %583 = tpu.matmul %581, %1, %cst_156 {dimension_numbers = #tpu.dot_dimension_numbers<[1], [0], [0], [1], [0, 0, 1, 1], [], []>} : vector<16x64xbf16>, vector<64x256xbf16>, vector<16x256xf32> -> vector<16x256xf32>
    %584 = arith.addf %582, %583 : vector<16x256xf32>
    %585 = vector.extract_strided_slice %577 {offsets = [0, 239], sizes = [8, 17], strides = [1, 1]} : vector<8x256xf32> to vector<8x17xf32>
    %586 = vector.extract_strided_slice %577 {offsets = [0, 0], sizes = [8, 239], strides = [1, 1]} : vector<8x256xf32> to vector<8x239xf32>
    %587 = tpu.concatenate %585, %586 in 1 : vector<8x17xf32>, vector<8x239xf32> -> vector<8x256xf32>
    %cst_157 = arith.constant 0.000000e+00 : f32
    %588 = vector.shape_cast %29 : vector<1x256xi1> to vector<1x256xi1>
    %589 = vector.broadcast %588 : vector<1x256xi1> to vector<8x256xi1>
    %590 = vector.broadcast %cst_157 : f32 to vector<8x256xf32>
    %591 = arith.select %589, %587, %590 : vector<8x256xi1>, vector<8x256xf32>
    %592 = vector.extract_strided_slice %577 {offsets = [0, 240], sizes = [8, 16], strides = [1, 1]} : vector<8x256xf32> to vector<8x16xf32>
    %593 = vector.extract_strided_slice %577 {offsets = [0, 0], sizes = [8, 240], strides = [1, 1]} : vector<8x256xf32> to vector<8x240xf32>
    %594 = tpu.concatenate %592, %593 in 1 : vector<8x16xf32>, vector<8x240xf32> -> vector<8x256xf32>
    %cst_158 = arith.constant 0.000000e+00 : f32
    %595 = vector.shape_cast %22 : vector<1x256xi1> to vector<1x256xi1>
    %596 = vector.broadcast %595 : vector<1x256xi1> to vector<8x256xi1>
    %597 = vector.broadcast %cst_158 : f32 to vector<8x256xf32>
    %598 = arith.select %596, %594, %597 : vector<8x256xi1>, vector<8x256xf32>
    %599 = arith.addf %591, %598 : vector<8x256xf32>
    %600 = vector.extract_strided_slice %577 {offsets = [0, 241], sizes = [8, 15], strides = [1, 1]} : vector<8x256xf32> to vector<8x15xf32>
    %601 = vector.extract_strided_slice %577 {offsets = [0, 0], sizes = [8, 241], strides = [1, 1]} : vector<8x256xf32> to vector<8x241xf32>
    %602 = tpu.concatenate %600, %601 in 1 : vector<8x15xf32>, vector<8x241xf32> -> vector<8x256xf32>
    %cst_159 = arith.constant 0.000000e+00 : f32
    %603 = vector.shape_cast %30 : vector<1x256xi1> to vector<1x256xi1>
    %604 = vector.broadcast %603 : vector<1x256xi1> to vector<8x256xi1>
    %605 = vector.broadcast %cst_159 : f32 to vector<8x256xf32>
    %606 = arith.select %604, %602, %605 : vector<8x256xi1>, vector<8x256xf32>
    %607 = arith.addf %599, %606 : vector<8x256xf32>
    %608 = vector.extract_strided_slice %577 {offsets = [0, 255], sizes = [8, 1], strides = [1, 1]} : vector<8x256xf32> to vector<8x1xf32>
    %609 = vector.extract_strided_slice %577 {offsets = [0, 0], sizes = [8, 255], strides = [1, 1]} : vector<8x256xf32> to vector<8x255xf32>
    %610 = tpu.concatenate %608, %609 in 1 : vector<8x1xf32>, vector<8x255xf32> -> vector<8x256xf32>
    %cst_160 = arith.constant 0.000000e+00 : f32
    %611 = vector.shape_cast %26 : vector<1x256xi1> to vector<1x256xi1>
    %612 = vector.broadcast %611 : vector<1x256xi1> to vector<8x256xi1>
    %613 = vector.broadcast %cst_160 : f32 to vector<8x256xf32>
    %614 = arith.select %612, %610, %613 : vector<8x256xi1>, vector<8x256xf32>
    %615 = arith.addf %607, %614 : vector<8x256xf32>
    %616 = arith.addf %615, %577 : vector<8x256xf32>
    %617 = vector.extract_strided_slice %577 {offsets = [0, 1], sizes = [8, 255], strides = [1, 1]} : vector<8x256xf32> to vector<8x255xf32>
    %618 = vector.extract_strided_slice %577 {offsets = [0, 0], sizes = [8, 1], strides = [1, 1]} : vector<8x256xf32> to vector<8x1xf32>
    %619 = tpu.concatenate %617, %618 in 1 : vector<8x255xf32>, vector<8x1xf32> -> vector<8x256xf32>
    %cst_161 = arith.constant 0.000000e+00 : f32
    %620 = vector.shape_cast %28 : vector<1x256xi1> to vector<1x256xi1>
    %621 = vector.broadcast %620 : vector<1x256xi1> to vector<8x256xi1>
    %622 = vector.broadcast %cst_161 : f32 to vector<8x256xf32>
    %623 = arith.select %621, %619, %622 : vector<8x256xi1>, vector<8x256xf32>
    %624 = arith.addf %616, %623 : vector<8x256xf32>
    %625 = vector.extract_strided_slice %577 {offsets = [0, 15], sizes = [8, 241], strides = [1, 1]} : vector<8x256xf32> to vector<8x241xf32>
    %626 = vector.extract_strided_slice %577 {offsets = [0, 0], sizes = [8, 15], strides = [1, 1]} : vector<8x256xf32> to vector<8x15xf32>
    %627 = tpu.concatenate %625, %626 in 1 : vector<8x241xf32>, vector<8x15xf32> -> vector<8x256xf32>
    %cst_162 = arith.constant 0.000000e+00 : f32
    %628 = vector.shape_cast %31 : vector<1x256xi1> to vector<1x256xi1>
    %629 = vector.broadcast %628 : vector<1x256xi1> to vector<8x256xi1>
    %630 = vector.broadcast %cst_162 : f32 to vector<8x256xf32>
    %631 = arith.select %629, %627, %630 : vector<8x256xi1>, vector<8x256xf32>
    %632 = arith.addf %624, %631 : vector<8x256xf32>
    %633 = vector.extract_strided_slice %577 {offsets = [0, 16], sizes = [8, 240], strides = [1, 1]} : vector<8x256xf32> to vector<8x240xf32>
    %634 = vector.extract_strided_slice %577 {offsets = [0, 0], sizes = [8, 16], strides = [1, 1]} : vector<8x256xf32> to vector<8x16xf32>
    %635 = tpu.concatenate %633, %634 in 1 : vector<8x240xf32>, vector<8x16xf32> -> vector<8x256xf32>
    %cst_163 = arith.constant 0.000000e+00 : f32
    %636 = vector.shape_cast %24 : vector<1x256xi1> to vector<1x256xi1>
    %637 = vector.broadcast %636 : vector<1x256xi1> to vector<8x256xi1>
    %638 = vector.broadcast %cst_163 : f32 to vector<8x256xf32>
    %639 = arith.select %637, %635, %638 : vector<8x256xi1>, vector<8x256xf32>
    %640 = arith.addf %632, %639 : vector<8x256xf32>
    %641 = vector.extract_strided_slice %577 {offsets = [0, 17], sizes = [8, 239], strides = [1, 1]} : vector<8x256xf32> to vector<8x239xf32>
    %642 = vector.extract_strided_slice %577 {offsets = [0, 0], sizes = [8, 17], strides = [1, 1]} : vector<8x256xf32> to vector<8x17xf32>
    %643 = tpu.concatenate %641, %642 in 1 : vector<8x239xf32>, vector<8x17xf32> -> vector<8x256xf32>
    %cst_164 = arith.constant 0.000000e+00 : f32
    %644 = vector.shape_cast %32 : vector<1x256xi1> to vector<1x256xi1>
    %645 = vector.broadcast %644 : vector<1x256xi1> to vector<8x256xi1>
    %646 = vector.broadcast %cst_164 : f32 to vector<8x256xf32>
    %647 = arith.select %645, %643, %646 : vector<8x256xi1>, vector<8x256xf32>
    %648 = arith.addf %640, %647 : vector<8x256xf32>
    %cst_165 = arith.constant 0.111111112 : f32
    %649 = vector.broadcast %cst_165 : f32 to vector<8x256xf32>
    %650 = arith.mulf %648, %649 : vector<8x256xf32>
    %651 = arith.truncf %650 : vector<8x256xf32> to vector<8x256xbf16>
    %652 = arith.extf %651 : vector<8x256xbf16> to vector<8x256xf32>
    %653 = arith.subf %650, %652 : vector<8x256xf32>
    %654 = arith.truncf %653 : vector<8x256xf32> to vector<8x256xbf16>
    %cst_166 = arith.constant dense<0.000000e+00> : vector<8x64xf32>
    %655 = tpu.matmul %651, %0, %cst_166 {dimension_numbers = #tpu.dot_dimension_numbers<[1], [0], [0], [1], [0, 0, 1, 1], [], []>} : vector<8x256xbf16>, vector<256x64xbf16>, vector<8x64xf32> -> vector<8x64xf32>
    %cst_167 = arith.constant dense<0.000000e+00> : vector<8x64xf32>
    %656 = tpu.matmul %654, %0, %cst_167 {dimension_numbers = #tpu.dot_dimension_numbers<[1], [0], [0], [1], [0, 0, 1, 1], [], []>} : vector<8x256xbf16>, vector<256x64xbf16>, vector<8x64xf32> -> vector<8x64xf32>
    %657 = arith.addf %655, %656 : vector<8x64xf32>
    %658 = arith.addf %349, %657 : vector<8x64xf32>
    %cst_168 = arith.constant 0.000000e+00 : f32
    %659 = vector.broadcast %cst_168 : f32 to vector<8x64xf32>
    %660 = arith.maximumf %658, %659 : vector<8x64xf32>
    %661 = arith.addf %559, %584 : vector<16x256xf32>
    %cst_169 = arith.constant 0.000000e+00 : f32
    %662 = vector.broadcast %cst_169 : f32 to vector<16x256xf32>
    %663 = arith.maximumf %661, %662 : vector<16x256xf32>
    %c0_170 = arith.constant 0 : index
    %c0_171 = arith.constant 0 : index
    %c0_172 = arith.constant 0 : index
    %664 = vector.load %arg29[%c0_170, %c0_171, %c0_172] : memref<1x8x64xf32, #tpu.memory_space<vmem>>, vector<1x8x64xf32>
    %665 = vector.shape_cast %664 : vector<1x8x64xf32> to vector<8x64xf32>
    %666 = vector.shape_cast %660 : vector<8x64xf32> to vector<1x8x64xf32>
    tpu.vector_store %arg29[%c0_170, %c0_171, %c0_172], %666 {strides = array<i32>} : memref<1x8x64xf32, #tpu.memory_space<vmem>>, vector<1x8x64xf32>,
    %c0_173 = arith.constant 0 : index
    %c0_174 = arith.constant 0 : index
    %c0_175 = arith.constant 0 : index
    %667 = vector.load %arg30[%c0_173, %c0_174, %c0_175] : memref<1x16x256xf32, #tpu.memory_space<vmem>>, vector<1x16x256xf32>
    %668 = vector.shape_cast %667 : vector<1x16x256xf32> to vector<16x256xf32>
    %669 = vector.shape_cast %663 : vector<16x256xf32> to vector<1x16x256xf32>
    tpu.vector_store %arg30[%c0_173, %c0_174, %c0_175], %669 {strides = array<i32>} : memref<1x16x256xf32, #tpu.memory_space<vmem>>, vector<1x16x256xf32>,
    return
  }
  func.func @transform_0(%arg0: i32) -> (i32, i32, i32) {
    %c0_i32 = arith.constant 0 : i32
    %c0_i32_0 = arith.constant 0 : i32
    %c0_i32_1 = arith.constant 0 : i32
    return %arg0, %c0_i32, %c0_i32_0 : i32, i32, i32
  }
  func.func @transform_1(%arg0: i32) -> (i32, i32, i32) {
    %c0_i32 = arith.constant 0 : i32
    %c0_i32_0 = arith.constant 0 : i32
    %c0_i32_1 = arith.constant 0 : i32
    return %arg0, %c0_i32, %c0_i32_0 : i32, i32, i32
  }
  func.func @transform_2(%arg0: i32) -> (i32, i32) {
    %c0_i32 = arith.constant 0 : i32
    %c0_i32_0 = arith.constant 0 : i32
    %c0_i32_1 = arith.constant 0 : i32
    return %c0_i32, %c0_i32_0 : i32, i32
  }
  func.func @transform_3(%arg0: i32) -> (i32, i32) {
    %c0_i32 = arith.constant 0 : i32
    %c0_i32_0 = arith.constant 0 : i32
    %c0_i32_1 = arith.constant 0 : i32
    return %c0_i32, %c0_i32_0 : i32, i32
  }
  func.func @transform_4(%arg0: i32) -> (i32, i32) {
    %c0_i32 = arith.constant 0 : i32
    %c0_i32_0 = arith.constant 0 : i32
    %c0_i32_1 = arith.constant 0 : i32
    return %c0_i32, %c0_i32_0 : i32, i32
  }
  func.func @transform_5(%arg0: i32) -> (i32, i32) {
    %c0_i32 = arith.constant 0 : i32
    %c0_i32_0 = arith.constant 0 : i32
    %c0_i32_1 = arith.constant 0 : i32
    return %c0_i32, %c0_i32_0 : i32, i32
  }
  func.func @transform_6(%arg0: i32) -> (i32, i32) {
    %c0_i32 = arith.constant 0 : i32
    %c0_i32_0 = arith.constant 0 : i32
    %c0_i32_1 = arith.constant 0 : i32
    return %c0_i32, %c0_i32_0 : i32, i32
  }
  func.func @transform_7(%arg0: i32) -> (i32, i32) {
    %c0_i32 = arith.constant 0 : i32
    %c0_i32_0 = arith.constant 0 : i32
    %c0_i32_1 = arith.constant 0 : i32
    return %c0_i32, %c0_i32_0 : i32, i32
  }
  func.func @transform_8(%arg0: i32) -> (i32, i32) {
    %c0_i32 = arith.constant 0 : i32
    %c0_i32_0 = arith.constant 0 : i32
    %c0_i32_1 = arith.constant 0 : i32
    return %c0_i32, %c0_i32_0 : i32, i32
  }
  func.func @transform_9(%arg0: i32) -> (i32, i32) {
    %c0_i32 = arith.constant 0 : i32
    %c0_i32_0 = arith.constant 0 : i32
    %c0_i32_1 = arith.constant 0 : i32
    return %c0_i32, %c0_i32_0 : i32, i32
  }
  func.func @transform_10(%arg0: i32) -> (i32, i32) {
    %c0_i32 = arith.constant 0 : i32
    %c0_i32_0 = arith.constant 0 : i32
    %c0_i32_1 = arith.constant 0 : i32
    return %c0_i32, %c0_i32_0 : i32, i32
  }
  func.func @transform_11(%arg0: i32) -> (i32, i32) {
    %c0_i32 = arith.constant 0 : i32
    %c0_i32_0 = arith.constant 0 : i32
    %c0_i32_1 = arith.constant 0 : i32
    return %c0_i32, %c0_i32_0 : i32, i32
  }
  func.func @transform_12(%arg0: i32) -> (i32, i32) {
    %c0_i32 = arith.constant 0 : i32
    %c0_i32_0 = arith.constant 0 : i32
    %c0_i32_1 = arith.constant 0 : i32
    return %c0_i32, %c0_i32_0 : i32, i32
  }
  func.func @transform_13(%arg0: i32) -> (i32, i32) {
    %c0_i32 = arith.constant 0 : i32
    %c0_i32_0 = arith.constant 0 : i32
    %c0_i32_1 = arith.constant 0 : i32
    return %c0_i32, %c0_i32_0 : i32, i32
  }
  func.func @transform_14(%arg0: i32) -> (i32, i32) {
    %c0_i32 = arith.constant 0 : i32
    %c0_i32_0 = arith.constant 0 : i32
    %c0_i32_1 = arith.constant 0 : i32
    return %c0_i32, %c0_i32_0 : i32, i32
  }
  func.func @transform_15(%arg0: i32) -> (i32, i32) {
    %c0_i32 = arith.constant 0 : i32
    %c0_i32_0 = arith.constant 0 : i32
    %c0_i32_1 = arith.constant 0 : i32
    return %c0_i32, %c0_i32_0 : i32, i32
  }
  func.func @transform_16(%arg0: i32) -> (i32, i32) {
    %c0_i32 = arith.constant 0 : i32
    %c0_i32_0 = arith.constant 0 : i32
    %c0_i32_1 = arith.constant 0 : i32
    return %c0_i32, %c0_i32_0 : i32, i32
  }
  func.func @transform_17(%arg0: i32) -> (i32, i32) {
    %c0_i32 = arith.constant 0 : i32
    %c0_i32_0 = arith.constant 0 : i32
    %c0_i32_1 = arith.constant 0 : i32
    return %c0_i32, %c0_i32_0 : i32, i32
  }
  func.func @transform_18(%arg0: i32) -> (i32, i32) {
    %c0_i32 = arith.constant 0 : i32
    %c0_i32_0 = arith.constant 0 : i32
    %c0_i32_1 = arith.constant 0 : i32
    return %c0_i32, %c0_i32_0 : i32, i32
  }
  func.func @transform_19(%arg0: i32) -> (i32, i32) {
    %c0_i32 = arith.constant 0 : i32
    %c0_i32_0 = arith.constant 0 : i32
    %c0_i32_1 = arith.constant 0 : i32
    return %c0_i32, %c0_i32_0 : i32, i32
  }
  func.func @transform_20(%arg0: i32) -> (i32, i32) {
    %c0_i32 = arith.constant 0 : i32
    %c0_i32_0 = arith.constant 0 : i32
    %c0_i32_1 = arith.constant 0 : i32
    return %c0_i32, %c0_i32_0 : i32, i32
  }
  func.func @transform_21(%arg0: i32) -> (i32, i32) {
    %c0_i32 = arith.constant 0 : i32
    %c0_i32_0 = arith.constant 0 : i32
    %c0_i32_1 = arith.constant 0 : i32
    return %c0_i32, %c0_i32_0 : i32, i32
  }
  func.func @transform_22(%arg0: i32) -> (i32, i32) {
    %c0_i32 = arith.constant 0 : i32
    %c0_i32_0 = arith.constant 0 : i32
    %c0_i32_1 = arith.constant 0 : i32
    return %c0_i32, %c0_i32_0 : i32, i32
  }
  func.func @transform_23(%arg0: i32) -> (i32, i32) {
    %c0_i32 = arith.constant 0 : i32
    %c0_i32_0 = arith.constant 0 : i32
    %c0_i32_1 = arith.constant 0 : i32
    return %c0_i32, %c0_i32_0 : i32, i32
  }
  func.func @transform_24(%arg0: i32) -> (i32, i32) {
    %c0_i32 = arith.constant 0 : i32
    %c0_i32_0 = arith.constant 0 : i32
    %c0_i32_1 = arith.constant 0 : i32
    return %c0_i32, %c0_i32_0 : i32, i32
  }
  func.func @transform_25(%arg0: i32) -> (i32, i32) {
    %c0_i32 = arith.constant 0 : i32
    %c0_i32_0 = arith.constant 0 : i32
    %c0_i32_1 = arith.constant 0 : i32
    return %c0_i32, %c0_i32_0 : i32, i32
  }
  func.func @transform_26(%arg0: i32) -> (i32, i32) {
    %c0_i32 = arith.constant 0 : i32
    %c0_i32_0 = arith.constant 0 : i32
    %c0_i32_1 = arith.constant 0 : i32
    return %c0_i32, %c0_i32_0 : i32, i32
  }
  func.func @transform_27(%arg0: i32) -> (i32, i32) {
    %c0_i32 = arith.constant 0 : i32
    %c0_i32_0 = arith.constant 0 : i32
    %c0_i32_1 = arith.constant 0 : i32
    return %c0_i32, %c0_i32_0 : i32, i32
  }
  func.func @transform_28(%arg0: i32) -> (i32, i32, i32) {
    %c0_i32 = arith.constant 0 : i32
    %c0_i32_0 = arith.constant 0 : i32
    %c0_i32_1 = arith.constant 0 : i32
    return %arg0, %c0_i32, %c0_i32_0 : i32, i32, i32
  }
  func.func @transform_29(%arg0: i32) -> (i32, i32, i32) {
    %c0_i32 = arith.constant 0 : i32
    %c0_i32_0 = arith.constant 0 : i32
    %c0_i32_1 = arith.constant 0 : i32
    return %arg0, %c0_i32, %c0_i32_0 : i32, i32, i32
  }
}

</mosaic_0001>

<llo_original>
// kernel: tpu_custom_call.1
$region0: #{tpu_custom_call.1}
  #allocation0 [shape = 'u32[]', space=smem, size = 0x4, offset = 0x4, fixed_abs, tag = 'smem constant byte address 0x4 - core index']
  #allocation1 [shape = 'u32[144,128]{1,0:T(1,128)}', space=vmem, size = 0x12000, scoped, tag = 'internal scratch']
  %s0 = inlined_call_operand.smem [shape: u32[30], index: -1, kind: input, shape index: {}]
  %s1 = sld [smem:[%s0]]
  %s2 = scalar_lea.smem %s0, 1
  %s3 = sld [smem:[%s2]]
  %s4 = scalar_lea.smem %s0, 2
  %s5 = sld [smem:[%s4]]
  %s6 = scalar_lea.smem %s0, 3
  %s7 = sld [smem:[%s6]]
  %s8 = scalar_lea.smem %s0, 4
  %s9 = sld [smem:[%s8]]
  %s10 = scalar_lea.smem %s0, 5
  %s11 = sld [smem:[%s10]]
  %s12 = scalar_lea.smem %s0, 6
  %s13 = sld [smem:[%s12]]
  %s14 = scalar_lea.smem %s0, 7
  %s15 = sld [smem:[%s14]]
  %s16 = scalar_lea.smem %s0, 8
  %s17 = sld [smem:[%s16]]
  %s18 = scalar_lea.smem %s0, 9
  %s19 = sld [smem:[%s18]]
  %s20 = scalar_lea.smem %s0, 10
  %s21 = sld [smem:[%s20]]
  %s22 = scalar_lea.smem %s0, 11
  %s23 = sld [smem:[%s22]]
  %s24 = scalar_lea.smem %s0, 12
  %s25 = sld [smem:[%s24]]
  %s26 = scalar_lea.smem %s0, 13
  %s27 = sld [smem:[%s26]]
  %s28 = scalar_lea.smem %s0, 14
  %s29 = sld [smem:[%s28]]
  %s30 = scalar_lea.smem %s0, 15
  %s31 = sld [smem:[%s30]]
  %s32 = scalar_lea.smem %s0, 16
  %s33 = sld [smem:[%s32]]
  %s34 = scalar_lea.smem %s0, 17
  %s35 = sld [smem:[%s34]]
  %s36 = scalar_lea.smem %s0, 18
  %s37 = sld [smem:[%s36]]
  %s38 = scalar_lea.smem %s0, 19
  %s39 = sld [smem:[%s38]]
  %s40 = scalar_lea.smem %s0, 20
  %s41 = sld [smem:[%s40]]
  %s42 = scalar_lea.smem %s0, 21
  %s43 = sld [smem:[%s42]]
  %s44 = scalar_lea.smem %s0, 22
  %s45 = sld [smem:[%s44]]
  %s46 = scalar_lea.smem %s0, 23
  %s47 = sld [smem:[%s46]]
  %s48 = scalar_lea.smem %s0, 24
  %s49 = sld [smem:[%s48]]
  %s50 = scalar_lea.smem %s0, 25
  %s51 = sld [smem:[%s50]]
  %s52 = scalar_lea.smem %s0, 26
  %s53 = sld [smem:[%s52]]
  %s54 = scalar_lea.smem %s0, 27
  %s55 = sld [smem:[%s54]]
  %s56 = scalar_lea.smem %s0, 28
  %s57 = sld [smem:[%s56]]
  %s58 = scalar_lea.smem %s0, 29
  %s59 = sld [smem:[%s58]]
  %60 = xla_tuple %s57, %s59
  %s61 = sld [smem:[#allocation0]]
  $region153: #{tpu_custom_call.1} parent=0
    _
  %s63 = ssub.s32 1, %s61
  %s64 = scalar_select 0, %s63, %s61
  $region1: #{tpu_custom_call.1} parent=0
    #allocation2 [shape = 'u8[8192]{0}', space=vmem, size = 0x2000, scoped, tag = 'output window, operand 0']
    #allocation3 [shape = 's32[2]{0}', space=sflag, size = 0x8, scoped, tag = 'scoped memory for tpu_custom_call.1']
    #allocation4 [shape = 'u8[32768]{0}', space=vmem, size = 0x8000, scoped, tag = 'output window, operand 1']
    #allocation5 [shape = 's32[2]{0}', space=sflag, size = 0x8, scoped, tag = 'scoped memory for tpu_custom_call.1']
    %65 = vsyncpa [#allocation3], 0
    %s66 = scalar_lea.sflag [#allocation3], 1
    %67 = vsyncpa %s66, 0
    %68 = vsyncpa [#allocation5], 0
    %s69 = scalar_lea.sflag [#allocation5], 1
    %70 = vsyncpa %s69, 0
    loop: start=0, step=1, limit=4
    $region2: #{tpu_custom_call.1} parent=1 // loop_pre_header
      _
    $region3: #{tpu_custom_call.1} parent=1 // loop_header
      %s72 = sphi 0, %s76
      %p73 = scmp.ge.s32.totalorder %s72, 4
      %s82 = sphi 0, %s84
      %s85 = sphi 0, %s82
      %s86 = sphi 0, %s85
      %s102 = sphi 0, %s86
      %s108 = sphi 0, %s110
      %s111 = sphi 0, %s108
      %s112 = sphi 0, %s111
      %s128 = sphi 0, %s112
      %s132 = sphi 0, %s132
      %s134 = sphi 0, %s132
      %s135 = sphi 0, %s134
      %s149 = sphi 0, %s135
      %s153 = sphi 0, %s153
      %s155 = sphi 0, %s153
      %s156 = sphi 0, %s155
      %s170 = sphi 0, %s156
      %s174 = sphi 0, %s174
      %s176 = sphi 0, %s174
      %s177 = sphi 0, %s176
      %s191 = sphi 0, %s177
      %s195 = sphi 0, %s195
      %s197 = sphi 0, %s195
      %s198 = sphi 0, %s197
      %s212 = sphi 0, %s198
      %s216 = sphi 0, %s216
      %s218 = sphi 0, %s216
      %s219 = sphi 0, %s218
      %s233 = sphi 0, %s219
      %s237 = sphi 0, %s237
      %s239 = sphi 0, %s237
      %s240 = sphi 0, %s239
      %s254 = sphi 0, %s240
      %s258 = sphi 0, %s258
      %s260 = sphi 0, %s258
      %s261 = sphi 0, %s260
      %s275 = sphi 0, %s261
      %s279 = sphi 0, %s279
      %s281 = sphi 0, %s279
      %s282 = sphi 0, %s281
      %s296 = sphi 0, %s282
      %s300 = sphi 0, %s300
      %s302 = sphi 0, %s300
      %s303 = sphi 0, %s302
      %s317 = sphi 0, %s303
      %s321 = sphi 0, %s321
      %s323 = sphi 0, %s321
      %s324 = sphi 0, %s323
      %s338 = sphi 0, %s324
      %s342 = sphi 0, %s342
      %s344 = sphi 0, %s342
      %s345 = sphi 0, %s344
      %s359 = sphi 0, %s345
      %s363 = sphi 0, %s363
      %s365 = sphi 0, %s363
      %s366 = sphi 0, %s365
      %s380 = sphi 0, %s366
      %s384 = sphi 0, %s384
      %s386 = sphi 0, %s384
      %s387 = sphi 0, %s386
      %s401 = sphi 0, %s387
      %s405 = sphi 0, %s405
      %s407 = sphi 0, %s405
      %s408 = sphi 0, %s407
      %s422 = sphi 0, %s408
      %s426 = sphi 0, %s426
      %s428 = sphi 0, %s426
      %s429 = sphi 0, %s428
      %s443 = sphi 0, %s429
      %s447 = sphi 0, %s447
      %s449 = sphi 0, %s447
      %s450 = sphi 0, %s449
      %s464 = sphi 0, %s450
      %s468 = sphi 0, %s468
      %s470 = sphi 0, %s468
      %s471 = sphi 0, %s470
      %s485 = sphi 0, %s471
      %s489 = sphi 0, %s489
      %s491 = sphi 0, %s489
      %s492 = sphi 0, %s491
      %s506 = sphi 0, %s492
      %s510 = sphi 0, %s510
      %s512 = sphi 0, %s510
      %s513 = sphi 0, %s512
      %s527 = sphi 0, %s513
      %s531 = sphi 0, %s531
      %s533 = sphi 0, %s531
      %s534 = sphi 0, %s533
      %s548 = sphi 0, %s534
      %s552 = sphi 0, %s552
      %s554 = sphi 0, %s552
      %s555 = sphi 0, %s554
      %s569 = sphi 0, %s555
      %s573 = sphi 0, %s573
      %s575 = sphi 0, %s573
      %s576 = sphi 0, %s575
      %s590 = sphi 0, %s576
      %s594 = sphi 0, %s594
      %s596 = sphi 0, %s594
      %s597 = sphi 0, %s596
      %s611 = sphi 0, %s597
      %s615 = sphi 0, %s615
      %s617 = sphi 0, %s615
      %s618 = sphi 0, %s617
      %s632 = sphi 0, %s618
      %s636 = sphi 0, %s636
      %s638 = sphi 0, %s636
      %s639 = sphi 0, %s638
      %s653 = sphi 0, %s639
      %s657 = sphi 0, %s657
      %s659 = sphi 0, %s657
      %s660 = sphi 0, %s659
      %s674 = sphi 0, %s660
      %s680 = sphi 0, %s682
      %s683 = sphi 0, %s680
      %s684 = sphi 0, %s683
      %s700 = sphi 0, %s684
      %s706 = sphi 0, %s708
      %s709 = sphi 0, %s706
      %s710 = sphi 0, %s709
      %s726 = sphi 0, %s710
    $region4: #{tpu_custom_call.1} parent=1 // loop_header_branch
      %75 = sbr.rel (%p73) target = $region8
    $region5: #{tpu_custom_call.1} parent=1 // loop_body
      %s77 = ssub.s32 %s72, 1
      %s78 = ssub.s32 %s72, 2
      %s79 = sadd.s32 %s72, 1
      %s80 = ssub.s32 %s72, %s79
      %p81 = scmp.eq.s32.totalorder %s80, 0
      %s83 = sadd.s32 %s82, 1
      %s84 = scalar_select %p81, %s82, %s83
      %p87 = pneg %p81
      %p88 = scmp.eq.s32.totalorder %s72, 1
      %p89 = por %p87, %p88
      %p90 = scmp.ne.s32.totalorder %s82, %s85
      %p91 = scmp.eq.s32.totalorder %s72, 0
      %p92 = por %p90, %p91
      %p93 = scmp.ne.s32.totalorder %s82, %s85
      %p94 = scmp.eq.s32.totalorder %s77, 1
      %p95 = por %p93, %p94
      %p96 = scmp.ne.s32.totalorder %s85, %s86
      %p97 = scmp.eq.s32.totalorder %s77, 0
      %p98 = por %p96, %p97
      %p99 = scmp.ne.s32.totalorder %s85, %s86
      %p100 = scmp.eq.s32.totalorder %s78, 1
      %p101 = por %p99, %p100
      %p103 = scmp.ne.s32.totalorder %s86, %s102
      %p104 = scmp.eq.s32.totalorder %s78, 0
      %p105 = por %p103, %p104
      %s106 = ssub.s32 %s72, %s79
      %p107 = scmp.eq.s32.totalorder %s106, 0
      %s109 = sadd.s32 %s108, 1
      %s110 = scalar_select %p107, %s108, %s109
      %p113 = pneg %p107
      %p114 = scmp.eq.s32.totalorder %s72, 1
      %p115 = por %p113, %p114
      %p116 = scmp.ne.s32.totalorder %s108, %s111
      %p117 = scmp.eq.s32.totalorder %s72, 0
      %p118 = por %p116, %p117
      %p119 = scmp.ne.s32.totalorder %s108, %s111
      %p120 = scmp.eq.s32.totalorder %s77, 1
      %p121 = por %p119, %p120
      %p122 = scmp.ne.s32.totalorder %s111, %s112
      %p123 = scmp.eq.s32.totalorder %s77, 0
      %p124 = por %p122, %p123
      %p125 = scmp.ne.s32.totalorder %s111, %s112
      %p126 = scmp.eq.s32.totalorder %s78, 1
      %p127 = por %p125, %p126
      %p129 = scmp.ne.s32.totalorder %s112, %s128
      %p130 = scmp.eq.s32.totalorder %s78, 0
      %p131 = por %p129, %p130
      %s133 = sadd.s32 %s132, 1
      %p136 = scmp.eq.s32.totalorder %s72, 1
      %p137 = scmp.ne.s32.totalorder %s132, %s134
      %p138 = scmp.eq.s32.totalorder %s72, 0
      %p139 = por %p137, %p138
      %p140 = scmp.ne.s32.totalorder %s132, %s134
      %p141 = scmp.eq.s32.totalorder %s77, 1
      %p142 = por %p140, %p141
      %p143 = scmp.ne.s32.totalorder %s134, %s135
      %p144 = scmp.eq.s32.totalorder %s77, 0
      %p145 = por %p143, %p144
      %p146 = scmp.ne.s32.totalorder %s134, %s135
      %p147 = scmp.eq.s32.totalorder %s78, 1
      %p148 = por %p146, %p147
      %p150 = scmp.ne.s32.totalorder %s135, %s149
      %p151 = scmp.eq.s32.totalorder %s78, 0
      %p152 = por %p150, %p151
      %s154 = sadd.s32 %s153, 1
      %p157 = scmp.eq.s32.totalorder %s72, 1
      %p158 = scmp.ne.s32.totalorder %s153, %s155
      %p159 = scmp.eq.s32.totalorder %s72, 0
      %p160 = por %p158, %p159
      %p161 = scmp.ne.s32.totalorder %s153, %s155
      %p162 = scmp.eq.s32.totalorder %s77, 1
      %p163 = por %p161, %p162
      %p164 = scmp.ne.s32.totalorder %s155, %s156
      %p165 = scmp.eq.s32.totalorder %s77, 0
      %p166 = por %p164, %p165
      %p167 = scmp.ne.s32.totalorder %s155, %s156
      %p168 = scmp.eq.s32.totalorder %s78, 1
      %p169 = por %p167, %p168
      %p171 = scmp.ne.s32.totalorder %s156, %s170
      %p172 = scmp.eq.s32.totalorder %s78, 0
      %p173 = por %p171, %p172
      %s175 = sadd.s32 %s174, 1
      %p178 = scmp.eq.s32.totalorder %s72, 1
      %p179 = scmp.ne.s32.totalorder %s174, %s176
      %p180 = scmp.eq.s32.totalorder %s72, 0
      %p181 = por %p179, %p180
      %p182 = scmp.ne.s32.totalorder %s174, %s176
      %p183 = scmp.eq.s32.totalorder %s77, 1
      %p184 = por %p182, %p183
      %p185 = scmp.ne.s32.totalorder %s176, %s177
      %p186 = scmp.eq.s32.totalorder %s77, 0
      %p187 = por %p185, %p186
      %p188 = scmp.ne.s32.totalorder %s176, %s177
      %p189 = scmp.eq.s32.totalorder %s78, 1
      %p190 = por %p188, %p189
      %p192 = scmp.ne.s32.totalorder %s177, %s191
      %p193 = scmp.eq.s32.totalorder %s78, 0
      %p194 = por %p192, %p193
      %s196 = sadd.s32 %s195, 1
      %p199 = scmp.eq.s32.totalorder %s72, 1
      %p200 = scmp.ne.s32.totalorder %s195, %s197
      %p201 = scmp.eq.s32.totalorder %s72, 0
      %p202 = por %p200, %p201
      %p203 = scmp.ne.s32.totalorder %s195, %s197
      %p204 = scmp.eq.s32.totalorder %s77, 1
      %p205 = por %p203, %p204
      %p206 = scmp.ne.s32.totalorder %s197, %s198
      %p207 = scmp.eq.s32.totalorder %s77, 0
      %p208 = por %p206, %p207
      %p209 = scmp.ne.s32.totalorder %s197, %s198
      %p210 = scmp.eq.s32.totalorder %s78, 1
      %p211 = por %p209, %p210
      %p213 = scmp.ne.s32.totalorder %s198, %s212
      %p214 = scmp.eq.s32.totalorder %s78, 0
      %p215 = por %p213, %p214
      %s217 = sadd.s32 %s216, 1
      %p220 = scmp.eq.s32.totalorder %s72, 1
      %p221 = scmp.ne.s32.totalorder %s216, %s218
      %p222 = scmp.eq.s32.totalorder %s72, 0
      %p223 = por %p221, %p222
      %p224 = scmp.ne.s32.totalorder %s216, %s218
      %p225 = scmp.eq.s32.totalorder %s77, 1
      %p226 = por %p224, %p225
      %p227 = scmp.ne.s32.totalorder %s218, %s219
      %p228 = scmp.eq.s32.totalorder %s77, 0
      %p229 = por %p227, %p228
      %p230 = scmp.ne.s32.totalorder %s218, %s219
      %p231 = scmp.eq.s32.totalorder %s78, 1
      %p232 = por %p230, %p231
      %p234 = scmp.ne.s32.totalorder %s219, %s233
      %p235 = scmp.eq.s32.totalorder %s78, 0
      %p236 = por %p234, %p235
      %s238 = sadd.s32 %s237, 1
      %p241 = scmp.eq.s32.totalorder %s72, 1
      %p242 = scmp.ne.s32.totalorder %s237, %s239
      %p243 = scmp.eq.s32.totalorder %s72, 0
      %p244 = por %p242, %p243
      %p245 = scmp.ne.s32.totalorder %s237, %s239
      %p246 = scmp.eq.s32.totalorder %s77, 1
      %p247 = por %p245, %p246
      %p248 = scmp.ne.s32.totalorder %s239, %s240
      %p249 = scmp.eq.s32.totalorder %s77, 0
      %p250 = por %p248, %p249
      %p251 = scmp.ne.s32.totalorder %s239, %s240
      %p252 = scmp.eq.s32.totalorder %s78, 1
      %p253 = por %p251, %p252
      %p255 = scmp.ne.s32.totalorder %s240, %s254
      %p256 = scmp.eq.s32.totalorder %s78, 0
      %p257 = por %p255, %p256
      %s259 = sadd.s32 %s258, 1
      %p262 = scmp.eq.s32.totalorder %s72, 1
      %p263 = scmp.ne.s32.totalorder %s258, %s260
      %p264 = scmp.eq.s32.totalorder %s72, 0
      %p265 = por %p263, %p264
      %p266 = scmp.ne.s32.totalorder %s258, %s260
      %p267 = scmp.eq.s32.totalorder %s77, 1
      %p268 = por %p266, %p267
      %p269 = scmp.ne.s32.totalorder %s260, %s261
      %p270 = scmp.eq.s32.totalorder %s77, 0
      %p271 = por %p269, %p270
      %p272 = scmp.ne.s32.totalorder %s260, %s261
      %p273 = scmp.eq.s32.totalorder %s78, 1
      %p274 = por %p272, %p273
      %p276 = scmp.ne.s32.totalorder %s261, %s275
      %p277 = scmp.eq.s32.totalorder %s78, 0
      %p278 = por %p276, %p277
      %s280 = sadd.s32 %s279, 1
      %p283 = scmp.eq.s32.totalorder %s72, 1
      %p284 = scmp.ne.s32.totalorder %s279, %s281
      %p285 = scmp.eq.s32.totalorder %s72, 0
      %p286 = por %p284, %p285
      %p287 = scmp.ne.s32.totalorder %s279, %s281
      %p288 = scmp.eq.s32.totalorder %s77, 1
      %p289 = por %p287, %p288
      %p290 = scmp.ne.s32.totalorder %s281, %s282
      %p291 = scmp.eq.s32.totalorder %s77, 0
      %p292 = por %p290, %p291
      %p293 = scmp.ne.s32.totalorder %s281, %s282
      %p294 = scmp.eq.s32.totalorder %s78, 1
      %p295 = por %p293, %p294
      %p297 = scmp.ne.s32.totalorder %s282, %s296
      %p298 = scmp.eq.s32.totalorder %s78, 0
      %p299 = por %p297, %p298
      %s301 = sadd.s32 %s300, 1
      %p304 = scmp.eq.s32.totalorder %s72, 1
      %p305 = scmp.ne.s32.totalorder %s300, %s302
      %p306 = scmp.eq.s32.totalorder %s72, 0
      %p307 = por %p305, %p306
      %p308 = scmp.ne.s32.totalorder %s300, %s302
      %p309 = scmp.eq.s32.totalorder %s77, 1
      %p310 = por %p308, %p309
      %p311 = scmp.ne.s32.totalorder %s302, %s303
      %p312 = scmp.eq.s32.totalorder %s77, 0
      %p313 = por %p311, %p312
      %p314 = scmp.ne.s32.totalorder %s302, %s303
      %p315 = scmp.eq.s32.totalorder %s78, 1
      %p316 = por %p314, %p315
      %p318 = scmp.ne.s32.totalorder %s303, %s317
      %p319 = scmp.eq.s32.totalorder %s78, 0
      %p320 = por %p318, %p319
      %s322 = sadd.s32 %s321, 1
      %p325 = scmp.eq.s32.totalorder %s72, 1
      %p326 = scmp.ne.s32.totalorder %s321, %s323
      %p327 = scmp.eq.s32.totalorder %s72, 0
      %p328 = por %p326, %p327
      %p329 = scmp.ne.s32.totalorder %s321, %s323
      %p330 = scmp.eq.s32.totalorder %s77, 1
      %p331 = por %p329, %p330
      %p332 = scmp.ne.s32.totalorder %s323, %s324
      %p333 = scmp.eq.s32.totalorder %s77, 0
      %p334 = por %p332, %p333
      %p335 = scmp.ne.s32.totalorder %s323, %s324
      %p336 = scmp.eq.s32.totalorder %s78, 1
      %p337 = por %p335, %p336
      %p339 = scmp.ne.s32.totalorder %s324, %s338
      %p340 = scmp.eq.s32.totalorder %s78, 0
      %p341 = por %p339, %p340
      %s343 = sadd.s32 %s342, 1
      %p346 = scmp.eq.s32.totalorder %s72, 1
      %p347 = scmp.ne.s32.totalorder %s342, %s344
      %p348 = scmp.eq.s32.totalorder %s72, 0
      %p349 = por %p347, %p348
      %p350 = scmp.ne.s32.totalorder %s342, %s344
      %p351 = scmp.eq.s32.totalorder %s77, 1
      %p352 = por %p350, %p351
      %p353 = scmp.ne.s32.totalorder %s344, %s345
      %p354 = scmp.eq.s32.totalorder %s77, 0
      %p355 = por %p353, %p354
      %p356 = scmp.ne.s32.totalorder %s344, %s345
      %p357 = scmp.eq.s32.totalorder %s78, 1
      %p358 = por %p356, %p357
      %p360 = scmp.ne.s32.totalorder %s345, %s359
      %p361 = scmp.eq.s32.totalorder %s78, 0
      %p362 = por %p360, %p361
      %s364 = sadd.s32 %s363, 1
      %p367 = scmp.eq.s32.totalorder %s72, 1
      %p368 = scmp.ne.s32.totalorder %s363, %s365
      %p369 = scmp.eq.s32.totalorder %s72, 0
      %p370 = por %p368, %p369
      %p371 = scmp.ne.s32.totalorder %s363, %s365
      %p372 = scmp.eq.s32.totalorder %s77, 1
      %p373 = por %p371, %p372
      %p374 = scmp.ne.s32.totalorder %s365, %s366
      %p375 = scmp.eq.s32.totalorder %s77, 0
      %p376 = por %p374, %p375
      %p377 = scmp.ne.s32.totalorder %s365, %s366
      %p378 = scmp.eq.s32.totalorder %s78, 1
      %p379 = por %p377, %p378
      %p381 = scmp.ne.s32.totalorder %s366, %s380
      %p382 = scmp.eq.s32.totalorder %s78, 0
      %p383 = por %p381, %p382
      %s385 = sadd.s32 %s384, 1
      %p388 = scmp.eq.s32.totalorder %s72, 1
      %p389 = scmp.ne.s32.totalorder %s384, %s386
      %p390 = scmp.eq.s32.totalorder %s72, 0
      %p391 = por %p389, %p390
      %p392 = scmp.ne.s32.totalorder %s384, %s386
      %p393 = scmp.eq.s32.totalorder %s77, 1
      %p394 = por %p392, %p393
      %p395 = scmp.ne.s32.totalorder %s386, %s387
      %p396 = scmp.eq.s32.totalorder %s77, 0
      %p397 = por %p395, %p396
      %p398 = scmp.ne.s32.totalorder %s386, %s387
      %p399 = scmp.eq.s32.totalorder %s78, 1
      %p400 = por %p398, %p399
      %p402 = scmp.ne.s32.totalorder %s387, %s401
      %p403 = scmp.eq.s32.totalorder %s78, 0
      %p404 = por %p402, %p403
      %s406 = sadd.s32 %s405, 1
      %p409 = scmp.eq.s32.totalorder %s72, 1
      %p410 = scmp.ne.s32.totalorder %s405, %s407
      %p411 = scmp.eq.s32.totalorder %s72, 0
      %p412 = por %p410, %p411
      %p413 = scmp.ne.s32.totalorder %s405, %s407
      %p414 = scmp.eq.s32.totalorder %s77, 1
      %p415 = por %p413, %p414
      %p416 = scmp.ne.s32.totalorder %s407, %s408
      %p417 = scmp.eq.s32.totalorder %s77, 0
      %p418 = por %p416, %p417
      %p419 = scmp.ne.s32.totalorder %s407, %s408
      %p420 = scmp.eq.s32.totalorder %s78, 1
      %p421 = por %p419, %p420
      %p423 = scmp.ne.s32.totalorder %s408, %s422
      %p424 = scmp.eq.s32.totalorder %s78, 0
      %p425 = por %p423, %p424
      %s427 = sadd.s32 %s426, 1
      %p430 = scmp.eq.s32.totalorder %s72, 1
      %p431 = scmp.ne.s32.totalorder %s426, %s428
      %p432 = scmp.eq.s32.totalorder %s72, 0
      %p433 = por %p431, %p432
      %p434 = scmp.ne.s32.totalorder %s426, %s428
      %p435 = scmp.eq.s32.totalorder %s77, 1
      %p436 = por %p434, %p435
      %p437 = scmp.ne.s32.totalorder %s428, %s429
      %p438 = scmp.eq.s32.totalorder %s77, 0
      %p439 = por %p437, %p438
      %p440 = scmp.ne.s32.totalorder %s428, %s429
      %p441 = scmp.eq.s32.totalorder %s78, 1
      %p442 = por %p440, %p441
      %p444 = scmp.ne.s32.totalorder %s429, %s443
      %p445 = scmp.eq.s32.totalorder %s78, 0
      %p446 = por %p444, %p445
      %s448 = sadd.s32 %s447, 1
      %p451 = scmp.eq.s32.totalorder %s72, 1
      %p452 = scmp.ne.s32.totalorder %s447, %s449
      %p453 = scmp.eq.s32.totalorder %s72, 0
      %p454 = por %p452, %p453
      %p455 = scmp.ne.s32.totalorder %s447, %s449
      %p456 = scmp.eq.s32.totalorder %s77, 1
      %p457 = por %p455, %p456
      %p458 = scmp.ne.s32.totalorder %s449, %s450
      %p459 = scmp.eq.s32.totalorder %s77, 0
      %p460 = por %p458, %p459
      %p461 = scmp.ne.s32.totalorder %s449, %s450
      %p462 = scmp.eq.s32.totalorder %s78, 1
      %p463 = por %p461, %p462
      %p465 = scmp.ne.s32.totalorder %s450, %s464
      %p466 = scmp.eq.s32.totalorder %s78, 0
      %p467 = por %p465, %p466
      %s469 = sadd.s32 %s468, 1
      %p472 = scmp.eq.s32.totalorder %s72, 1
      %p473 = scmp.ne.s32.totalorder %s468, %s470
      %p474 = scmp.eq.s32.totalorder %s72, 0
      %p475 = por %p473, %p474
      %p476 = scmp.ne.s32.totalorder %s468, %s470
      %p477 = scmp.eq.s32.totalorder %s77, 1
      %p478 = por %p476, %p477
      %p479 = scmp.ne.s32.totalorder %s470, %s471
      %p480 = scmp.eq.s32.totalorder %s77, 0
      %p481 = por %p479, %p480
      %p482 = scmp.ne.s32.totalorder %s470, %s471
      %p483 = scmp.eq.s32.totalorder %s78, 1
      %p484 = por %p482, %p483
      %p486 = scmp.ne.s32.totalorder %s471, %s485
      %p487 = scmp.eq.s32.totalorder %s78, 0
      %p488 = por %p486, %p487
      %s490 = sadd.s32 %s489, 1
      %p493 = scmp.eq.s32.totalorder %s72, 1
      %p494 = scmp.ne.s32.totalorder %s489, %s491
      %p495 = scmp.eq.s32.totalorder %s72, 0
      %p496 = por %p494, %p495
      %p497 = scmp.ne.s32.totalorder %s489, %s491
      %p498 = scmp.eq.s32.totalorder %s77, 1
      %p499 = por %p497, %p498
      %p500 = scmp.ne.s32.totalorder %s491, %s492
      %p501 = scmp.eq.s32.totalorder %s77, 0
      %p502 = por %p500, %p501
      %p503 = scmp.ne.s32.totalorder %s491, %s492
      %p504 = scmp.eq.s32.totalorder %s78, 1
      %p505 = por %p503, %p504
      %p507 = scmp.ne.s32.totalorder %s492, %s506
      %p508 = scmp.eq.s32.totalorder %s78, 0
      %p509 = por %p507, %p508
      %s511 = sadd.s32 %s510, 1
      %p514 = scmp.eq.s32.totalorder %s72, 1
      %p515 = scmp.ne.s32.totalorder %s510, %s512
      %p516 = scmp.eq.s32.totalorder %s72, 0
      %p517 = por %p515, %p516
      %p518 = scmp.ne.s32.totalorder %s510, %s512
      %p519 = scmp.eq.s32.totalorder %s77, 1
      %p520 = por %p518, %p519
      %p521 = scmp.ne.s32.totalorder %s512, %s513
      %p522 = scmp.eq.s32.totalorder %s77, 0
      %p523 = por %p521, %p522
      %p524 = scmp.ne.s32.totalorder %s512, %s513
      %p525 = scmp.eq.s32.totalorder %s78, 1
      %p526 = por %p524, %p525
      %p528 = scmp.ne.s32.totalorder %s513, %s527
      %p529 = scmp.eq.s32.totalorder %s78, 0
      %p530 = por %p528, %p529
      %s532 = sadd.s32 %s531, 1
      %p535 = scmp.eq.s32.totalorder %s72, 1
      %p536 = scmp.ne.s32.totalorder %s531, %s533
      %p537 = scmp.eq.s32.totalorder %s72, 0
      %p538 = por %p536, %p537
      %p539 = scmp.ne.s32.totalorder %s531, %s533
      %p540 = scmp.eq.s32.totalorder %s77, 1
      %p541 = por %p539, %p540
      %p542 = scmp.ne.s32.totalorder %s533, %s534
      %p543 = scmp.eq.s32.totalorder %s77, 0
      %p544 = por %p542, %p543
      %p545 = scmp.ne.s32.totalorder %s533, %s534
      %p546 = scmp.eq.s32.totalorder %s78, 1
      %p547 = por %p545, %p546
      %p549 = scmp.ne.s32.totalorder %s534, %s548
      %p550 = scmp.eq.s32.totalorder %s78, 0
      %p551 = por %p549, %p550
      %s553 = sadd.s32 %s552, 1
      %p556 = scmp.eq.s32.totalorder %s72, 1
      %p557 = scmp.ne.s32.totalorder %s552, %s554
      %p558 = scmp.eq.s32.totalorder %s72, 0
      %p559 = por %p557, %p558
      %p560 = scmp.ne.s32.totalorder %s552, %s554
      %p561 = scmp.eq.s32.totalorder %s77, 1
      %p562 = por %p560, %p561
      %p563 = scmp.ne.s32.totalorder %s554, %s555
      %p564 = scmp.eq.s32.totalorder %s77, 0
      %p565 = por %p563, %p564
      %p566 = scmp.ne.s32.totalorder %s554, %s555
      %p567 = scmp.eq.s32.totalorder %s78, 1
      %p568 = por %p566, %p567
      %p570 = scmp.ne.s32.totalorder %s555, %s569
      %p571 = scmp.eq.s32.totalorder %s78, 0
      %p572 = por %p570, %p571
      %s574 = sadd.s32 %s573, 1
      %p577 = scmp.eq.s32.totalorder %s72, 1
      %p578 = scmp.ne.s32.totalorder %s573, %s575
      %p579 = scmp.eq.s32.totalorder %s72, 0
      %p580 = por %p578, %p579
      %p581 = scmp.ne.s32.totalorder %s573, %s575
      %p582 = scmp.eq.s32.totalorder %s77, 1
      %p583 = por %p581, %p582
      %p584 = scmp.ne.s32.totalorder %s575, %s576
      %p585 = scmp.eq.s32.totalorder %s77, 0
      %p586 = por %p584, %p585
      %p587 = scmp.ne.s32.totalorder %s575, %s576
      %p588 = scmp.eq.s32.totalorder %s78, 1
      %p589 = por %p587, %p588
      %p591 = scmp.ne.s32.totalorder %s576, %s590
      %p592 = scmp.eq.s32.totalorder %s78, 0
      %p593 = por %p591, %p592
      %s595 = sadd.s32 %s594, 1
      %p598 = scmp.eq.s32.totalorder %s72, 1
      %p599 = scmp.ne.s32.totalorder %s594, %s596
      %p600 = scmp.eq.s32.totalorder %s72, 0
      %p601 = por %p599, %p600
      %p602 = scmp.ne.s32.totalorder %s594, %s596
      %p603 = scmp.eq.s32.totalorder %s77, 1
      %p604 = por %p602, %p603
      %p605 = scmp.ne.s32.totalorder %s596, %s597
      %p606 = scmp.eq.s32.totalorder %s77, 0
      %p607 = por %p605, %p606
      %p608 = scmp.ne.s32.totalorder %s596, %s597
      %p609 = scmp.eq.s32.totalorder %s78, 1
      %p610 = por %p608, %p609
      %p612 = scmp.ne.s32.totalorder %s597, %s611
      %p613 = scmp.eq.s32.totalorder %s78, 0
      %p614 = por %p612, %p613
      %s616 = sadd.s32 %s615, 1
      %p619 = scmp.eq.s32.totalorder %s72, 1
      %p620 = scmp.ne.s32.totalorder %s615, %s617
      %p621 = scmp.eq.s32.totalorder %s72, 0
      %p622 = por %p620, %p621
      %p623 = scmp.ne.s32.totalorder %s615, %s617
      %p624 = scmp.eq.s32.totalorder %s77, 1
      %p625 = por %p623, %p624
      %p626 = scmp.ne.s32.totalorder %s617, %s618
      %p627 = scmp.eq.s32.totalorder %s77, 0
      %p628 = por %p626, %p627
      %p629 = scmp.ne.s32.totalorder %s617, %s618
      %p630 = scmp.eq.s32.totalorder %s78, 1
      %p631 = por %p629, %p630
      %p633 = scmp.ne.s32.totalorder %s618, %s632
      %p634 = scmp.eq.s32.totalorder %s78, 0
      %p635 = por %p633, %p634
      %s637 = sadd.s32 %s636, 1
      %p640 = scmp.eq.s32.totalorder %s72, 1
      %p641 = scmp.ne.s32.totalorder %s636, %s638
      %p642 = scmp.eq.s32.totalorder %s72, 0
      %p643 = por %p641, %p642
      %p644 = scmp.ne.s32.totalorder %s636, %s638
      %p645 = scmp.eq.s32.totalorder %s77, 1
      %p646 = por %p644, %p645
      %p647 = scmp.ne.s32.totalorder %s638, %s639
      %p648 = scmp.eq.s32.totalorder %s77, 0
      %p649 = por %p647, %p648
      %p650 = scmp.ne.s32.totalorder %s638, %s639
      %p651 = scmp.eq.s32.totalorder %s78, 1
      %p652 = por %p650, %p651
      %p654 = scmp.ne.s32.totalorder %s639, %s653
      %p655 = scmp.eq.s32.totalorder %s78, 0
      %p656 = por %p654, %p655
      %s658 = sadd.s32 %s657, 1
      %p661 = scmp.eq.s32.totalorder %s72, 1
      %p662 = scmp.ne.s32.totalorder %s657, %s659
      %p663 = scmp.eq.s32.totalorder %s72, 0
      %p664 = por %p662, %p663
      %p665 = scmp.ne.s32.totalorder %s657, %s659
      %p666 = scmp.eq.s32.totalorder %s77, 1
      %p667 = por %p665, %p666
      %p668 = scmp.ne.s32.totalorder %s659, %s660
      %p669 = scmp.eq.s32.totalorder %s77, 0
      %p670 = por %p668, %p669
      %p671 = scmp.ne.s32.totalorder %s659, %s660
      %p672 = scmp.eq.s32.totalorder %s78, 1
      %p673 = por %p671, %p672
      %p675 = scmp.ne.s32.totalorder %s660, %s674
      %p676 = scmp.eq.s32.totalorder %s78, 0
      %p677 = por %p675, %p676
      %s678 = ssub.s32 %s72, %s79
      %p679 = scmp.eq.s32.totalorder %s678, 0
      %s681 = sadd.s32 %s680, 1
      %s682 = scalar_select %p679, %s680, %s681
      %p685 = pneg %p679
      %p686 = scmp.eq.s32.totalorder %s72, 1
      %p687 = por %p685, %p686
      %p688 = scmp.ne.s32.totalorder %s680, %s683
      %p689 = scmp.eq.s32.totalorder %s72, 0
      %p690 = por %p688, %p689
      %p691 = scmp.ne.s32.totalorder %s680, %s683
      %p692 = scmp.eq.s32.totalorder %s77, 1
      %p693 = por %p691, %p692
      %p694 = scmp.ne.s32.totalorder %s683, %s684
      %p695 = scmp.eq.s32.totalorder %s77, 0
      %p696 = por %p694, %p695
      %p697 = scmp.ne.s32.totalorder %s683, %s684
      %p698 = scmp.eq.s32.totalorder %s78, 1
      %p699 = por %p697, %p698
      %p701 = scmp.ne.s32.totalorder %s684, %s700
      %p702 = scmp.eq.s32.totalorder %s78, 0
      %p703 = por %p701, %p702
      %s704 = ssub.s32 %s72, %s79
      %p705 = scmp.eq.s32.totalorder %s704, 0
      %s707 = sadd.s32 %s706, 1
      %s708 = scalar_select %p705, %s706, %s707
      %p711 = pneg %p705
      %p712 = scmp.eq.s32.totalorder %s72, 1
      %p713 = por %p711, %p712
      %p714 = scmp.ne.s32.totalorder %s706, %s709
      %p715 = scmp.eq.s32.totalorder %s72, 0
      %p716 = por %p714, %p715
      %p717 = scmp.ne.s32.totalorder %s706, %s709
      %p718 = scmp.eq.s32.totalorder %s77, 1
      %p719 = por %p717, %p718
      %p720 = scmp.ne.s32.totalorder %s709, %s710
      %p721 = scmp.eq.s32.totalorder %s77, 0
      %p722 = por %p720, %p721
      %p723 = scmp.ne.s32.totalorder %s709, %s710
      %p724 = scmp.eq.s32.totalorder %s78, 1
      %p725 = por %p723, %p724
      %p727 = scmp.ne.s32.totalorder %s710, %s726
      %p728 = scmp.eq.s32.totalorder %s78, 0
      %p729 = por %p727, %p728
      %p730 = scmp.le.s32.totalorder 1, %s72
      %p731 = scmp.lt.s32.totalorder %s72, 3
      %p732 = pnand %p730, %p731
      %p733 = pneg %p732
      // Predicated region
      $region9: #{tpu_custom_call.1} parent=5 // pred_check
        _
      $region10: #{tpu_custom_call.1} parent=5 // pred_check_branch
        %735 = sbr.rel (%p732) target = $region12
      $region11: #{tpu_custom_call.1} parent=5 // pred_region
        %s736 = ssub.s32 %s72, 1
        // Predicated region
        $region13: #{tpu_custom_call.1} parent=11 // pred_check
          %p737 = pneg %p145
        $region14: #{tpu_custom_call.1} parent=11 // pred_check_branch
          %739 = sbr.rel (%p737) target = $region16
        $region15: #{tpu_custom_call.1} parent=11 // pred_region
          _
        $region16: #{tpu_custom_call.1} parent=11 // pred_fallthru
          _
        // Predicated region
        $region17: #{tpu_custom_call.1} parent=11 // pred_check
          %p740 = pneg %p166
        $region18: #{tpu_custom_call.1} parent=11 // pred_check_branch
          %742 = sbr.rel (%p740) target = $region20
        $region19: #{tpu_custom_call.1} parent=11 // pred_region
          _
        $region20: #{tpu_custom_call.1} parent=11 // pred_fallthru
          _
        // Predicated region
        $region21: #{tpu_custom_call.1} parent=11 // pred_check
          %p743 = pneg %p187
        $region22: #{tpu_custom_call.1} parent=11 // pred_check_branch
          %745 = sbr.rel (%p743) target = $region24
        $region23: #{tpu_custom_call.1} parent=11 // pred_region
          _
        $region24: #{tpu_custom_call.1} parent=11 // pred_fallthru
          _
        // Predicated region
        $region25: #{tpu_custom_call.1} parent=11 // pred_check
          %p746 = pneg %p208
        $region26: #{tpu_custom_call.1} parent=11 // pred_check_branch
          %748 = sbr.rel (%p746) target = $region28
        $region27: #{tpu_custom_call.1} parent=11 // pred_region
          _
        $region28: #{tpu_custom_call.1} parent=11 // pred_fallthru
          _
        // Predicated region
        $region29: #{tpu_custom_call.1} parent=11 // pred_check
          %p749 = pneg %p229
        $region30: #{tpu_custom_call.1} parent=11 // pred_check_branch
          %751 = sbr.rel (%p749) target = $region32
        $region31: #{tpu_custom_call.1} parent=11 // pred_region
          _
        $region32: #{tpu_custom_call.1} parent=11 // pred_fallthru
          _
        // Predicated region
        $region33: #{tpu_custom_call.1} parent=11 // pred_check
          %p752 = pneg %p250
        $region34: #{tpu_custom_call.1} parent=11 // pred_check_branch
          %754 = sbr.rel (%p752) target = $region36
        $region35: #{tpu_custom_call.1} parent=11 // pred_region
          _
        $region36: #{tpu_custom_call.1} parent=11 // pred_fallthru
          _
        // Predicated region
        $region37: #{tpu_custom_call.1} parent=11 // pred_check
          %p755 = pneg %p271
        $region38: #{tpu_custom_call.1} parent=11 // pred_check_branch
          %757 = sbr.rel (%p755) target = $region40
        $region39: #{tpu_custom_call.1} parent=11 // pred_region
          _
        $region40: #{tpu_custom_call.1} parent=11 // pred_fallthru
          _
        // Predicated region
        $region41: #{tpu_custom_call.1} parent=11 // pred_check
          %p758 = pneg %p292
        $region42: #{tpu_custom_call.1} parent=11 // pred_check_branch
          %760 = sbr.rel (%p758) target = $region44
        $region43: #{tpu_custom_call.1} parent=11 // pred_region
          _
        $region44: #{tpu_custom_call.1} parent=11 // pred_fallthru
          _
        // Predicated region
        $region45: #{tpu_custom_call.1} parent=11 // pred_check
          %p761 = pneg %p313
        $region46: #{tpu_custom_call.1} parent=11 // pred_check_branch
          %763 = sbr.rel (%p761) target = $region48
        $region47: #{tpu_custom_call.1} parent=11 // pred_region
          _
        $region48: #{tpu_custom_call.1} parent=11 // pred_fallthru
          _
        // Predicated region
        $region49: #{tpu_custom_call.1} parent=11 // pred_check
          %p764 = pneg %p334
        $region50: #{tpu_custom_call.1} parent=11 // pred_check_branch
          %766 = sbr.rel (%p764) target = $region52
        $region51: #{tpu_custom_call.1} parent=11 // pred_region
          _
        $region52: #{tpu_custom_call.1} parent=11 // pred_fallthru
          _
        // Predicated region
        $region53: #{tpu_custom_call.1} parent=11 // pred_check
          %p767 = pneg %p355
        $region54: #{tpu_custom_call.1} parent=11 // pred_check_branch
          %769 = sbr.rel (%p767) target = $region56
        $region55: #{tpu_custom_call.1} parent=11 // pred_region
          _
        $region56: #{tpu_custom_call.1} parent=11 // pred_fallthru
          _
        // Predicated region
        $region57: #{tpu_custom_call.1} parent=11 // pred_check
          %p770 = pneg %p376
        $region58: #{tpu_custom_call.1} parent=11 // pred_check_branch
          %772 = sbr.rel (%p770) target = $region60
        $region59: #{tpu_custom_call.1} parent=11 // pred_region
          _
        $region60: #{tpu_custom_call.1} parent=11 // pred_fallthru
          _
        // Predicated region
        $region61: #{tpu_custom_call.1} parent=11 // pred_check
          %p773 = pneg %p397
        $region62: #{tpu_custom_call.1} parent=11 // pred_check_branch
          %775 = sbr.rel (%p773) target = $region64
        $region63: #{tpu_custom_call.1} parent=11 // pred_region
          _
        $region64: #{tpu_custom_call.1} parent=11 // pred_fallthru
          _
        // Predicated region
        $region65: #{tpu_custom_call.1} parent=11 // pred_check
          %p776 = pneg %p418
        $region66: #{tpu_custom_call.1} parent=11 // pred_check_branch
          %778 = sbr.rel (%p776) target = $region68
        $region67: #{tpu_custom_call.1} parent=11 // pred_region
          _
        $region68: #{tpu_custom_call.1} parent=11 // pred_fallthru
          _
        // Predicated region
        $region69: #{tpu_custom_call.1} parent=11 // pred_check
          %p779 = pneg %p439
        $region70: #{tpu_custom_call.1} parent=11 // pred_check_branch
          %781 = sbr.rel (%p779) target = $region72
        $region71: #{tpu_custom_call.1} parent=11 // pred_region
          _
        $region72: #{tpu_custom_call.1} parent=11 // pred_fallthru
          _
        // Predicated region
        $region73: #{tpu_custom_call.1} parent=11 // pred_check
          %p782 = pneg %p460
        $region74: #{tpu_custom_call.1} parent=11 // pred_check_branch
          %784 = sbr.rel (%p782) target = $region76
        $region75: #{tpu_custom_call.1} parent=11 // pred_region
          _
        $region76: #{tpu_custom_call.1} parent=11 // pred_fallthru
          _
        // Predicated region
        $region77: #{tpu_custom_call.1} parent=11 // pred_check
          %p785 = pneg %p481
        $region78: #{tpu_custom_call.1} parent=11 // pred_check_branch
          %787 = sbr.rel (%p785) target = $region80
        $region79: #{tpu_custom_call.1} parent=11 // pred_region
          _
        $region80: #{tpu_custom_call.1} parent=11 // pred_fallthru
          _
        // Predicated region
        $region81: #{tpu_custom_call.1} parent=11 // pred_check
          %p788 = pneg %p502
        $region82: #{tpu_custom_call.1} parent=11 // pred_check_branch
          %790 = sbr.rel (%p788) target = $region84
        $region83: #{tpu_custom_call.1} parent=11 // pred_region
          _
        $region84: #{tpu_custom_call.1} parent=11 // pred_fallthru
          _
        // Predicated region
        $region85: #{tpu_custom_call.1} parent=11 // pred_check
          %p791 = pneg %p523
        $region86: #{tpu_custom_call.1} parent=11 // pred_check_branch
          %793 = sbr.rel (%p791) target = $region88
        $region87: #{tpu_custom_call.1} parent=11 // pred_region
          _
        $region88: #{tpu_custom_call.1} parent=11 // pred_fallthru
          _
        // Predicated region
        $region89: #{tpu_custom_call.1} parent=11 // pred_check
          %p794 = pneg %p544
        $region90: #{tpu_custom_call.1} parent=11 // pred_check_branch
          %796 = sbr.rel (%p794) target = $region92
        $region91: #{tpu_custom_call.1} parent=11 // pred_region
          _
        $region92: #{tpu_custom_call.1} parent=11 // pred_fallthru
          _
        // Predicated region
        $region93: #{tpu_custom_call.1} parent=11 // pred_check
          %p797 = pneg %p565
        $region94: #{tpu_custom_call.1} parent=11 // pred_check_branch
          %799 = sbr.rel (%p797) target = $region96
        $region95: #{tpu_custom_call.1} parent=11 // pred_region
          _
        $region96: #{tpu_custom_call.1} parent=11 // pred_fallthru
          _
        // Predicated region
        $region97: #{tpu_custom_call.1} parent=11 // pred_check
          %p800 = pneg %p586
        $region98: #{tpu_custom_call.1} parent=11 // pred_check_branch
          %802 = sbr.rel (%p800) target = $region100
        $region99: #{tpu_custom_call.1} parent=11 // pred_region
          _
        $region100: #{tpu_custom_call.1} parent=11 // pred_fallthru
          _
        // Predicated region
        $region101: #{tpu_custom_call.1} parent=11 // pred_check
          %p803 = pneg %p607
        $region102: #{tpu_custom_call.1} parent=11 // pred_check_branch
          %805 = sbr.rel (%p803) target = $region104
        $region103: #{tpu_custom_call.1} parent=11 // pred_region
          _
        $region104: #{tpu_custom_call.1} parent=11 // pred_fallthru
          _
        // Predicated region
        $region105: #{tpu_custom_call.1} parent=11 // pred_check
          %p806 = pneg %p628
        $region106: #{tpu_custom_call.1} parent=11 // pred_check_branch
          %808 = sbr.rel (%p806) target = $region108
        $region107: #{tpu_custom_call.1} parent=11 // pred_region
          _
        $region108: #{tpu_custom_call.1} parent=11 // pred_fallthru
          _
        // Predicated region
        $region109: #{tpu_custom_call.1} parent=11 // pred_check
          %p809 = pneg %p649
        $region110: #{tpu_custom_call.1} parent=11 // pred_check_branch
          %811 = sbr.rel (%p809) target = $region112
        $region111: #{tpu_custom_call.1} parent=11 // pred_region
          _
        $region112: #{tpu_custom_call.1} parent=11 // pred_fallthru
          _
        // Predicated region
        $region113: #{tpu_custom_call.1} parent=11 // pred_check
          %p812 = pneg %p670
        $region114: #{tpu_custom_call.1} parent=11 // pred_check_branch
          %814 = sbr.rel (%p812) target = $region116
        $region115: #{tpu_custom_call.1} parent=11 // pred_region
          _
        $region116: #{tpu_custom_call.1} parent=11 // pred_fallthru
          _
      $region12: #{tpu_custom_call.1} parent=5 // pred_fallthru
        _
      %p815 = scmp.lt.s32.totalorder %s72, 2
      // Predicated region
      $region117: #{tpu_custom_call.1} parent=5 // pred_check
        %p816 = pneg %p815
      $region118: #{tpu_custom_call.1} parent=5 // pred_check_branch
        %818 = sbr.rel (%p816) target = $region120
      $region119: #{tpu_custom_call.1} parent=5 // pred_region
        // Predicated region
        $region121: #{tpu_custom_call.1} parent=119 // pred_check
          %p819 = pneg %p92
        $region122: #{tpu_custom_call.1} parent=119 // pred_check_branch
          %821 = sbr.rel (%p819) target = $region124
        $region123: #{tpu_custom_call.1} parent=119 // pred_region
          %p822 = scmp.lt.s32.totalorder %s72, 1
          %s823 = scalar_select %p822, %s72, 1
          %s824 = smul.addr %s823, 2
          %s825 = smul.addr %s824, 4
          %s826 = scalar_lea.vmem %s1, %s825
        $region124: #{tpu_custom_call.1} parent=119 // pred_fallthru
          _
        // Predicated region
        $region125: #{tpu_custom_call.1} parent=119 // pred_check
          %p827 = pneg %p118
        $region126: #{tpu_custom_call.1} parent=119 // pred_check_branch
          %829 = sbr.rel (%p827) target = $region128
        $region127: #{tpu_custom_call.1} parent=119 // pred_region
          %p830 = scmp.lt.s32.totalorder %s72, 1
          %s831 = scalar_select %p830, %s72, 1
          %s832 = smul.addr %s831, 2
          %s833 = smul.addr %s832, 4
          %s834 = scalar_lea.vmem %s3, %s833
        $region128: #{tpu_custom_call.1} parent=119 // pred_fallthru
          _
      $region120: #{tpu_custom_call.1} parent=5 // pred_fallthru
        _
      %p835 = scmp.le.s32.totalorder 1, %s72
      %p836 = scmp.lt.s32.totalorder %s72, 3
      %p837 = pnand %p835, %p836
      %p838 = pneg %p837
      // Predicated region
      $region129: #{tpu_custom_call.1} parent=5 // pred_check
        _
      $region130: #{tpu_custom_call.1} parent=5 // pred_check_branch
        %840 = sbr.rel (%p837) target = $region132
      $region131: #{tpu_custom_call.1} parent=5 // pred_region
        %s841 = ssub.s32 %s72, 1
        %p842 = scmp.lt.s32.totalorder %s77, 1
        %s843 = scalar_select %p842, %s77, 1
        %s844 = smul.addr %s843, 2
        %s845 = smul.addr %s844, 4
        %s846 = scalar_lea.vmem %s1, %s845
        %p847 = pneg %p98
        %p848 = pneg %p95
        %p849 = scmp.lt.s32.totalorder %s77, 1
        %s850 = scalar_select %p849, %s77, 1
        %s851 = smul.addr %s850, 2
        %s852 = smul.addr %s851, 4
        %s853 = scalar_lea.vmem %s3, %s852
        %p854 = pneg %p124
        %p855 = pneg %p121
        %p856 = pneg %p145
        %p857 = pneg %p142
        %p858 = pneg %p166
        %p859 = pneg %p163
        %p860 = pneg %p187
        %p861 = pneg %p184
        %p862 = pneg %p208
        %p863 = pneg %p205
        %p864 = pneg %p229
        %p865 = pneg %p226
        %p866 = pneg %p250
        %p867 = pneg %p247
        %p868 = pneg %p271
        %p869 = pneg %p268
        %p870 = pneg %p292
        %p871 = pneg %p289
        %p872 = pneg %p313
        %p873 = pneg %p310
        %p874 = pneg %p334
        %p875 = pneg %p331
        %p876 = pneg %p355
        %p877 = pneg %p352
        %p878 = pneg %p376
        %p879 = pneg %p373
        %p880 = pneg %p397
        %p881 = pneg %p394
        %p882 = pneg %p418
        %p883 = pneg %p415
        %p884 = pneg %p439
        %p885 = pneg %p436
        %p886 = pneg %p460
        %p887 = pneg %p457
        %p888 = pneg %p481
        %p889 = pneg %p478
        %p890 = pneg %p502
        %p891 = pneg %p499
        %p892 = pneg %p523
        %p893 = pneg %p520
        %p894 = pneg %p544
        %p895 = pneg %p541
        %p896 = pneg %p565
        %p897 = pneg %p562
        %p898 = pneg %p586
        %p899 = pneg %p583
        %p900 = pneg %p607
        %p901 = pneg %p604
        %p902 = pneg %p628
        %p903 = pneg %p625
        %p904 = pneg %p649
        %p905 = pneg %p646
        %p906 = pneg %p670
        %p907 = pneg %p667
        %p908 = pneg %p696
        %p909 = pneg %p693
        %s910 = sand.u32 %s683, 1
        %s911 = scalar_lea.sflag [#allocation3], %s910
        %s912 = sand.u32 %s683, 1
        %s913 = smul.addr %s912, 8
        %s914 = scalar_lea.vmem [#allocation2], %s913
        %p915 = pneg %p722
        %p916 = pneg %p719
        %s917 = sand.u32 %s709, 1
        %s918 = scalar_lea.sflag [#allocation5], %s917
        %s919 = sand.u32 %s709, 1
        %s920 = smul.addr %s919, 32
        %s921 = scalar_lea.vmem [#allocation4], %s920
        %p922 = scmp.lt.s32.totalorder %s77, 1
        %s923 = scalar_select %p922, %s77, 1
        %s924 = smul.addr %s923, 2
        %s925 = smul.addr %s924, 4
        %s926 = scalar_lea.vmem %s1, %s925
        %p927 = scmp.lt.s32.totalorder %s77, 1
        %s928 = scalar_select %p927, %s77, 1
        %s929 = smul.addr %s928, 2
        %s930 = smul.addr %s929, 4
        %s931 = scalar_lea.vmem %s3, %s930
        %v933 = vld [vmem:[%s53] sm:$0xf]
        %v934 = vld [vmem:[%s53 + $0x4] sm:$0xf]
        %v935 = vld [vmem:[%s53 + $0x8] sm:$0xf]
        %v936 = vld [vmem:[%s53 + $0xc] sm:$0xf]
        %v937 = vld [vmem:[%s53 + $0x10] sm:$0xf]
        %v938 = vld [vmem:[%s53 + $0x14] sm:$0xf]
        %v939 = vld [vmem:[%s53 + $0x18] sm:$0xf]
        %v940 = vld [vmem:[%s53 + $0x1c] sm:$0xf]
        %v941 = vld [vmem:[%s53 + $0x20] sm:$0xf]
        %v942 = vld [vmem:[%s53 + $0x24] sm:$0xf]
        %v943 = vld [vmem:[%s53 + $0x28] sm:$0xf]
        %v944 = vld [vmem:[%s53 + $0x2c] sm:$0xf]
        %v945 = vld [vmem:[%s53 + $0x30] sm:$0xf]
        %v946 = vld [vmem:[%s53 + $0x34] sm:$0xf]
        %v947 = vld [vmem:[%s53 + $0x38] sm:$0xf]
        %v948 = vld [vmem:[%s53 + $0x3c] sm:$0xf]
        %v949 = vld [vmem:[%s53 + $0x40] sm:$0xf]
        %v950 = vld [vmem:[%s53 + $0x44] sm:$0xf]
        %v951 = vld [vmem:[%s53 + $0x48] sm:$0xf]
        %v952 = vld [vmem:[%s53 + $0x4c] sm:$0xf]
        %v953 = vld [vmem:[%s53 + $0x50] sm:$0xf]
        %v954 = vld [vmem:[%s53 + $0x54] sm:$0xf]
        %v955 = vld [vmem:[%s53 + $0x58] sm:$0xf]
        %v956 = vld [vmem:[%s53 + $0x5c] sm:$0xf]
        %v957 = vld [vmem:[%s53 + $0x60] sm:$0xf]
        %v958 = vld [vmem:[%s53 + $0x64] sm:$0xf]
        %v959 = vld [vmem:[%s53 + $0x68] sm:$0xf]
        %v960 = vld [vmem:[%s53 + $0x6c] sm:$0xf]
        %v961 = vld [vmem:[%s53 + $0x70] sm:$0xf]
        %v962 = vld [vmem:[%s53 + $0x74] sm:$0xf]
        %v963 = vld [vmem:[%s53 + $0x78] sm:$0xf]
        %v964 = vld [vmem:[%s53 + $0x7c] sm:$0xf]
        %v965 = vld [vmem:[%s55] sm:$0xff]
        %v966 = vld [vmem:[%s55 + $0x8] sm:$0xff]
        %v967 = vld [vmem:[%s55 + $0x10] sm:$0xff]
        %v968 = vld [vmem:[%s55 + $0x18] sm:$0xff]
        %v969 = vld [vmem:[%s55 + $0x20] sm:$0xff]
        %v970 = vld [vmem:[%s55 + $0x28] sm:$0xff]
        %v971 = vld [vmem:[%s55 + $0x30] sm:$0xff]
        %v972 = vld [vmem:[%s55 + $0x38] sm:$0xff]
        %v973 = vld [vmem:[%s926] sm:$0xff]
        %v974 = vlaneseq
        %v975 = vand.u32 %v974, 127
        %v976 = vadd.s32 %v975, 128
        %vm977 = vcmp.lt.s32.totalorder %v975, 0
        %v978 = vsub.s32 0, %v975
        %v979 = vsel %vm977, %v978, %v975
        %v980 = vshrl.u32 %v979, 4
        %v981 = vand.u32 %v979, 15
        %v982 = vsub.s32 0, %v981
        %v983 = vsel %vm977, %v982, %v981
        %vm984 = vcmp.lt.s32.totalorder %v976, 0
        %v985 = vsub.s32 0, %v976
        %v986 = vsel %vm984, %v985, %v976
        %v987 = vshrl.u32 %v986, 4
        %v988 = vand.u32 %v986, 15
        %v989 = vsub.s32 0, %v988
        %v990 = vsel %vm984, %v989, %v988
        %vm991 = vcmp.ne.s32.totalorder %v983, 0
        %vm992 = vcmp.ne.s32.totalorder %v990, 0
        %vm993 = vcmp.lt.s32.totalorder %v983, 0
        %vm994 = vcmp.lt.s32.totalorder %v990, 0
        %vm995 = vmand %vm993, %vm991
        %vm996 = vmand %vm994, %vm992
        %v997 = vadd.s32 %v983, 16
        %v998 = vadd.s32 %v990, 16
        %v999 = vsel %vm995, %v997, %v983
        %v1000 = vsel %vm996, %v998, %v990
        %vm1001 = vcmp.ge.s32.totalorder %v975, 16
        %vm1002 = vcmp.ge.s32.totalorder %v976, 16
        %vm1003 = vcmp.lt.s32.totalorder %v975, 240
        %vm1004 = vcmp.lt.s32.totalorder %v976, 240
        %vm1005 = vcmp.ge.s32.totalorder %v999, 1
        %vm1006 = vcmp.ge.s32.totalorder %v1000, 1
        %vm1007 = vcmp.le.s32.totalorder %v999, 14
        %vm1008 = vcmp.le.s32.totalorder %v1000, 14
        %vm1009 = vmand %vm1001, %vm1005
        %vm1010 = vmand %vm1002, %vm1006
        %vm1011 = vmand %vm1001, %vm1007
        %vm1012 = vmand %vm1002, %vm1008
        %vm1013 = vmand %vm1003, %vm1005
        %vm1014 = vmand %vm1004, %vm1006
        %vm1015 = vmand %vm1003, %vm1007
        %vm1016 = vmand %vm1004, %vm1008
        %v1017 = vld [vmem:[%s5] sm:$0xf]
        %v1018 = vld [vmem:[%s7] sm:$0xff]
        %v1019 = vld [vmem:[%s9] sm:$0xff]
        %v1020 = vld [vmem:[%s11] sm:$0xf]
        %v1021 = vld [vmem:[%s13] sm:$0xff]
        %v1022 = vld [vmem:[%s15] sm:$0xff]
        %v1024 = vcombine.high %v973, %v973
        %1025 = vrot.lane.b32.xlu0 %v1024, 17
        %v1026 = vpop.permute.xlu0 %1025
        %1028 = vrot.lane.b32.xlu0 %v973, 17
        %v1029 = vpop.permute.xlu0 %1028
        %vm1030 = vcmask 138240
        %v1031 = vsel %vm1030, %v1029, %v1026
        %v1034 = vsel %vm1030, %v1026, %v1029
        %v1035 = vsel %vm1009, 1, 0
        %v1036 = vsel %vm1010, 1, 0
        %vm1037 = vcmp.eq.s32.totalorder %v1035, 1
        %vm1038 = vcmp.eq.s32.totalorder %v1036, 1
        %v1039 = vsel %vm1037, %v1034, 0.0
        %v1040 = vsel %vm1038, %v1031, 0.0
        %v1041 = vpack.c.bf16 %v1039, %v1039
        %v1042 = vpack.c.bf16 %v1040, %v1040
        %1043 = vrot.lane.b32.xlu0 %v1024, 16
        %v1044 = vpop.permute.xlu0 %1043
        %1046 = vrot.lane.b32.xlu0 %v973, 16
        %v1047 = vpop.permute.xlu0 %1046
        %vm1048 = vcmask 130048
        %v1049 = vsel %vm1048, %v1047, %v1044
        %v1052 = vsel %vm1048, %v1044, %v1047
        %v1053 = vsel %vm1001, 1, 0
        %v1054 = vsel %vm1002, 1, 0
        %vm1055 = vcmp.eq.s32.totalorder %v1053, 1
        %vm1056 = vcmp.eq.s32.totalorder %v1054, 1
        %v1057 = vsel %vm1055, %v1052, 0.0
        %v1058 = vsel %vm1056, %v1049, 0.0
        %v1059 = vpack.c.bf16 %v1057, %v1057
        %v1060 = vpack.c.bf16 %v1058, %v1058
        %v1062 = vunpack.c.l.b16 %v1017
        %v1063 = vpack.c.b16 %v1062, %v1062
        %1064 = vrot.lane.b32.xlu0 %v1063, 124
        %v1065 = vpop.permute.xlu0 %1064
        %vm1066 = vcmask 31744
        %v1068 = vsel %vm1066, %v1065, 0
        %vm1070 = vcmask 1041408
        %v1072 = vsel %vm1070, %v1059, 0
        %v1075 = vsel %vm1070, %v1060, 0
        %1077 = vmatprep.subr.bf16.mxu0 %v1075
        %1078 = vmatpush1.bf16.msra.mxu0 %v1072
        %1079 = vmatprep.subr.bf16.mxu0 0
        %1080 = vmatpush1.bf16.msra.mxu0 0
        %1081 = vmatprep.subr.bf16.mxu0 0
        %1082 = vmatpush1.bf16.msra.mxu0 0
        %1083 = vmatprep.subr.bf16.mxu0 0
        %1084 = vmatpush1.bf16.msra.mxu0 0
        %1085 = vmatprep.subr.bf16.mxu0 0
        %1086 = vmatpush1.bf16.msra.mxu0 0
        %1087 = vmatprep.subr.bf16.mxu0 0
        %1088 = vmatpush1.bf16.msra.mxu0 0
        %1089 = vmatprep.subr.bf16.mxu0 0
        %1090 = vmatpush1.bf16.msra.mxu0 0
        %1091 = vmatprep.subr.bf16.mxu0 0
        %1092 = vmatpush1.bf16.msra.mxu0 0
        %1093 = vmatprep.subr.bf16.mxu0 0
        %1094 = vmatpush1.bf16.msra.mxu0 0
        %1095 = vmatprep.subr.bf16.mxu0 0
        %1096 = vmatpush1.bf16.msra.mxu0 0
        %1097 = vmatprep.subr.bf16.mxu0 0
        %1098 = vmatpush1.bf16.msra.mxu0 0
        %1099 = vmatprep.subr.bf16.mxu0 0
        %1100 = vmatpush1.bf16.msra.mxu0 0
        %1101 = vmatprep.subr.bf16.mxu0 0
        %1102 = vmatpush1.bf16.msra.mxu0 0
        %1103 = vmatprep.subr.bf16.mxu0 0
        %1104 = vmatpush1.bf16.msra.mxu0 0
        %1105 = vmatprep.subr.bf16.mxu0 0
        %1106 = vmatpush1.bf16.msra.mxu0 0
        %1107 = vmatprep.subr.bf16.mxu0 0
        %1108 = vmatpush1.bf16.msra.mxu0 0
        %1109 = vmatprep.mubr.bf16.mxu0 0
        %1110 = vmatmul.mubr.bf16.gmra.mrb[0].mxu0 %v1068
        %v1111 = vpop.f32.mrb[0].mxu0
        %v1112 = vadd.f32 0.0, %v1111
        %v1113 = vpop.f32.mrb[0].mxu0
        %v1114 = vadd.f32 0.0, %v1113
        %v1115 = vpop.f32.mrb[0].mxu0
        %v1116 = vpop.f32.mrb[0].mxu0
        %1117 = vdwg.mxu0
        %v1119 = vsel %vm1066, %v1017, 0
        %v1122 = vsel %vm1070, %v1041, 0
        %v1125 = vsel %vm1070, %v1042, 0
        %1127 = vmatprep.subr.bf16.mxu0 %v1125
        %1128 = vmatpush1.bf16.msra.mxu0 %v1122
        %1129 = vmatprep.subr.bf16.mxu0 0
        %1130 = vmatpush1.bf16.msra.mxu0 0
        %1131 = vmatprep.subr.bf16.mxu0 0
        %1132 = vmatpush1.bf16.msra.mxu0 0
        %1133 = vmatprep.subr.bf16.mxu0 0
        %1134 = vmatpush1.bf16.msra.mxu0 0
        %1135 = vmatprep.subr.bf16.mxu0 0
        %1136 = vmatpush1.bf16.msra.mxu0 0
        %1137 = vmatprep.subr.bf16.mxu0 0
        %1138 = vmatpush1.bf16.msra.mxu0 0
        %1139 = vmatprep.subr.bf16.mxu0 0
        %1140 = vmatpush1.bf16.msra.mxu0 0
        %1141 = vmatprep.subr.bf16.mxu0 0
        %1142 = vmatpush1.bf16.msra.mxu0 0
        %1143 = vmatprep.subr.bf16.mxu0 0
        %1144 = vmatpush1.bf16.msra.mxu0 0
        %1145 = vmatprep.subr.bf16.mxu0 0
        %1146 = vmatpush1.bf16.msra.mxu0 0
        %1147 = vmatprep.subr.bf16.mxu0 0
        %1148 = vmatpush1.bf16.msra.mxu0 0
        %1149 = vmatprep.subr.bf16.mxu0 0
        %1150 = vmatpush1.bf16.msra.mxu0 0
        %1151 = vmatprep.subr.bf16.mxu0 0
        %1152 = vmatpush1.bf16.msra.mxu0 0
        %1153 = vmatprep.subr.bf16.mxu0 0
        %1154 = vmatpush1.bf16.msra.mxu0 0
        %1155 = vmatprep.subr.bf16.mxu0 0
        %1156 = vmatpush1.bf16.msra.mxu0 0
        %1157 = vmatprep.subr.bf16.mxu0 0
        %1158 = vmatpush1.bf16.msra.mxu0 0
        %1159 = vmatprep.mubr.bf16.mxu0 0
        %1160 = vmatmul.mubr.bf16.gmra.mrb[0].mxu0 %v1119
        %v1161 = vpop.f32.mrb[0].mxu0
        %v1162 = vadd.f32 %v1112, %v1161
        %v1163 = vpop.f32.mrb[0].mxu0
        %v1164 = vadd.f32 %v1114, %v1163
        %v1165 = vpop.f32.mrb[0].mxu0
        %v1166 = vpop.f32.mrb[0].mxu0
        %1167 = vdwg.mxu0
        %1168 = vrot.lane.b32.xlu0 %v1024, 15
        %v1169 = vpop.permute.xlu0 %1168
        %1171 = vrot.lane.b32.xlu0 %v973, 15
        %v1172 = vpop.permute.xlu0 %1171
        %vm1173 = vcmask 121856
        %v1174 = vsel %vm1173, %v1172, %v1169
        %v1177 = vsel %vm1173, %v1169, %v1172
        %v1178 = vsel %vm1011, 1, 0
        %v1179 = vsel %vm1012, 1, 0
        %vm1180 = vcmp.eq.s32.totalorder %v1178, 1
        %vm1181 = vcmp.eq.s32.totalorder %v1179, 1
        %v1182 = vsel %vm1180, %v1177, 0.0
        %v1183 = vsel %vm1181, %v1174, 0.0
        %v1184 = vpack.c.bf16 %v1182, %v1182
        %v1185 = vpack.c.bf16 %v1183, %v1183
        %1186 = vrot.lane.b32.xlu0 %v1063, 120
        %v1187 = vpop.permute.xlu0 %1186
        %v1189 = vsel %vm1066, %v1187, 0
        %v1192 = vsel %vm1070, %v1184, 0
        %v1195 = vsel %vm1070, %v1185, 0
        %1197 = vmatprep.subr.bf16.mxu0 %v1195
        %1198 = vmatpush1.bf16.msra.mxu0 %v1192
        %1199 = vmatprep.subr.bf16.mxu0 0
        %1200 = vmatpush1.bf16.msra.mxu0 0
        %1201 = vmatprep.subr.bf16.mxu0 0
        %1202 = vmatpush1.bf16.msra.mxu0 0
        %1203 = vmatprep.subr.bf16.mxu0 0
        %1204 = vmatpush1.bf16.msra.mxu0 0
        %1205 = vmatprep.subr.bf16.mxu0 0
        %1206 = vmatpush1.bf16.msra.mxu0 0
        %1207 = vmatprep.subr.bf16.mxu0 0
        %1208 = vmatpush1.bf16.msra.mxu0 0
        %1209 = vmatprep.subr.bf16.mxu0 0
        %1210 = vmatpush1.bf16.msra.mxu0 0
        %1211 = vmatprep.subr.bf16.mxu0 0
        %1212 = vmatpush1.bf16.msra.mxu0 0
        %1213 = vmatprep.subr.bf16.mxu0 0
        %1214 = vmatpush1.bf16.msra.mxu0 0
        %1215 = vmatprep.subr.bf16.mxu0 0
        %1216 = vmatpush1.bf16.msra.mxu0 0
        %1217 = vmatprep.subr.bf16.mxu0 0
        %1218 = vmatpush1.bf16.msra.mxu0 0
        %1219 = vmatprep.subr.bf16.mxu0 0
        %1220 = vmatpush1.bf16.msra.mxu0 0
        %1221 = vmatprep.subr.bf16.mxu0 0
        %1222 = vmatpush1.bf16.msra.mxu0 0
        %1223 = vmatprep.subr.bf16.mxu0 0
        %1224 = vmatpush1.bf16.msra.mxu0 0
        %1225 = vmatprep.subr.bf16.mxu0 0
        %1226 = vmatpush1.bf16.msra.mxu0 0
        %1227 = vmatprep.subr.bf16.mxu0 0
        %1228 = vmatpush1.bf16.msra.mxu0 0
        %1229 = vmatprep.mubr.bf16.mxu0 0
        %1230 = vmatmul.mubr.bf16.gmra.mrb[0].mxu0 %v1189
        %v1231 = vpop.f32.mrb[0].mxu0
        %v1232 = vadd.f32 0.0, %v1231
        %v1233 = vpop.f32.mrb[0].mxu0
        %v1234 = vadd.f32 0.0, %v1233
        %v1235 = vpop.f32.mrb[0].mxu0
        %v1236 = vpop.f32.mrb[0].mxu0
        %1237 = vdwg.mxu0
        %v1238 = vadd.f32 %v1162, %v1232
        %v1239 = vadd.f32 %v1164, %v1234
        %1240 = vrot.lane.b32.xlu0 %v1024, 1
        %v1241 = vpop.permute.xlu0 %1240
        %1243 = vrot.lane.b32.xlu0 %v973, 1
        %v1244 = vpop.permute.xlu0 %1243
        %vm1245 = vcmask 7168
        %v1246 = vsel %vm1245, %v1244, %v1241
        %v1249 = vsel %vm1245, %v1241, %v1244
        %v1250 = vsel %vm1005, 1, 0
        %v1251 = vsel %vm1006, 1, 0
        %vm1252 = vcmp.eq.s32.totalorder %v1250, 1
        %vm1253 = vcmp.eq.s32.totalorder %v1251, 1
        %v1254 = vsel %vm1252, %v1249, 0.0
        %v1255 = vsel %vm1253, %v1246, 0.0
        %v1256 = vpack.c.bf16 %v1254, %v1254
        %v1257 = vpack.c.bf16 %v1255, %v1255
        %1258 = vrot.lane.b32.xlu0 %v1063, 116
        %v1259 = vpop.permute.xlu0 %1258
        %v1261 = vsel %vm1066, %v1259, 0
        %v1264 = vsel %vm1070, %v1256, 0
        %v1267 = vsel %vm1070, %v1257, 0
        %1269 = vmatprep.subr.bf16.mxu0 %v1267
        %1270 = vmatpush1.bf16.msra.mxu0 %v1264
        %1271 = vmatprep.subr.bf16.mxu0 0
        %1272 = vmatpush1.bf16.msra.mxu0 0
        %1273 = vmatprep.subr.bf16.mxu0 0
        %1274 = vmatpush1.bf16.msra.mxu0 0
        %1275 = vmatprep.subr.bf16.mxu0 0
        %1276 = vmatpush1.bf16.msra.mxu0 0
        %1277 = vmatprep.subr.bf16.mxu0 0
        %1278 = vmatpush1.bf16.msra.mxu0 0
        %1279 = vmatprep.subr.bf16.mxu0 0
        %1280 = vmatpush1.bf16.msra.mxu0 0
        %1281 = vmatprep.subr.bf16.mxu0 0
        %1282 = vmatpush1.bf16.msra.mxu0 0
        %1283 = vmatprep.subr.bf16.mxu0 0
        %1284 = vmatpush1.bf16.msra.mxu0 0
        %1285 = vmatprep.subr.bf16.mxu0 0
        %1286 = vmatpush1.bf16.msra.mxu0 0
        %1287 = vmatprep.subr.bf16.mxu0 0
        %1288 = vmatpush1.bf16.msra.mxu0 0
        %1289 = vmatprep.subr.bf16.mxu0 0
        %1290 = vmatpush1.bf16.msra.mxu0 0
        %1291 = vmatprep.subr.bf16.mxu0 0
        %1292 = vmatpush1.bf16.msra.mxu0 0
        %1293 = vmatprep.subr.bf16.mxu0 0
        %1294 = vmatpush1.bf16.msra.mxu0 0
        %1295 = vmatprep.subr.bf16.mxu0 0
        %1296 = vmatpush1.bf16.msra.mxu0 0
        %1297 = vmatprep.subr.bf16.mxu0 0
        %1298 = vmatpush1.bf16.msra.mxu0 0
        %1299 = vmatprep.subr.bf16.mxu0 0
        %1300 = vmatpush1.bf16.msra.mxu0 0
        %1301 = vmatprep.mubr.bf16.mxu0 0
        %1302 = vmatmul.mubr.bf16.gmra.mrb[0].mxu0 %v1261
        %v1303 = vpop.f32.mrb[0].mxu0
        %v1304 = vadd.f32 0.0, %v1303
        %v1305 = vpop.f32.mrb[0].mxu0
        %v1306 = vadd.f32 0.0, %v1305
        %v1307 = vpop.f32.mrb[0].mxu0
        %v1308 = vpop.f32.mrb[0].mxu0
        %1309 = vdwg.mxu0
        %v1310 = vadd.f32 %v1238, %v1304
        %v1311 = vadd.f32 %v1239, %v1306
        %v1313 = vpack.c.bf16 %v973, %v973
        %v1314 = vpack.c.bf16 %v1024, %v1024
        %1315 = vrot.lane.b32.xlu0 %v1063, 112
        %v1316 = vpop.permute.xlu0 %1315
        %v1318 = vsel %vm1066, %v1316, 0
        %v1321 = vsel %vm1070, %v1313, 0
        %v1324 = vsel %vm1070, %v1314, 0
        %1326 = vmatprep.subr.bf16.mxu0 %v1324
        %1327 = vmatpush1.bf16.msra.mxu0 %v1321
        %1328 = vmatprep.subr.bf16.mxu0 0
        %1329 = vmatpush1.bf16.msra.mxu0 0
        %1330 = vmatprep.subr.bf16.mxu0 0
        %1331 = vmatpush1.bf16.msra.mxu0 0
        %1332 = vmatprep.subr.bf16.mxu0 0
        %1333 = vmatpush1.bf16.msra.mxu0 0
        %1334 = vmatprep.subr.bf16.mxu0 0
        %1335 = vmatpush1.bf16.msra.mxu0 0
        %1336 = vmatprep.subr.bf16.mxu0 0
        %1337 = vmatpush1.bf16.msra.mxu0 0
        %1338 = vmatprep.subr.bf16.mxu0 0
        %1339 = vmatpush1.bf16.msra.mxu0 0
        %1340 = vmatprep.subr.bf16.mxu0 0
        %1341 = vmatpush1.bf16.msra.mxu0 0
        %1342 = vmatprep.subr.bf16.mxu0 0
        %1343 = vmatpush1.bf16.msra.mxu0 0
        %1344 = vmatprep.subr.bf16.mxu0 0
        %1345 = vmatpush1.bf16.msra.mxu0 0
        %1346 = vmatprep.subr.bf16.mxu0 0
        %1347 = vmatpush1.bf16.msra.mxu0 0
        %1348 = vmatprep.subr.bf16.mxu0 0
        %1349 = vmatpush1.bf16.msra.mxu0 0
        %1350 = vmatprep.subr.bf16.mxu0 0
        %1351 = vmatpush1.bf16.msra.mxu0 0
        %1352 = vmatprep.subr.bf16.mxu0 0
        %1353 = vmatpush1.bf16.msra.mxu0 0
        %1354 = vmatprep.subr.bf16.mxu0 0
        %1355 = vmatpush1.bf16.msra.mxu0 0
        %1356 = vmatprep.subr.bf16.mxu0 0
        %1357 = vmatpush1.bf16.msra.mxu0 0
        %1358 = vmatprep.mubr.bf16.mxu0 0
        %1359 = vmatmul.mubr.bf16.gmra.mrb[0].mxu0 %v1318
        %v1360 = vpop.f32.mrb[0].mxu0
        %v1361 = vadd.f32 0.0, %v1360
        %v1362 = vpop.f32.mrb[0].mxu0
        %v1363 = vadd.f32 0.0, %v1362
        %v1364 = vpop.f32.mrb[0].mxu0
        %v1365 = vpop.f32.mrb[0].mxu0
        %1366 = vdwg.mxu0
        %v1367 = vadd.f32 %v1310, %v1361
        %v1368 = vadd.f32 %v1311, %v1363
        %1369 = vrot.lane.b32.xlu0 %v973, 127
        %v1370 = vpop.permute.xlu0 %1369
        %1371 = vrot.lane.b32.xlu0 %v1024, 127
        %v1372 = vpop.permute.xlu0 %1371
        %vm1373 = vcmask 1039360
        %v1374 = vsel %vm1373, %v1370, %v1372
        %v1378 = vsel %vm1373, %v1372, %v1370
        %v1379 = vsel %vm1007, 1, 0
        %v1380 = vsel %vm1008, 1, 0
        %vm1381 = vcmp.eq.s32.totalorder %v1379, 1
        %vm1382 = vcmp.eq.s32.totalorder %v1380, 1
        %v1383 = vsel %vm1381, %v1374, 0.0
        %v1384 = vsel %vm1382, %v1378, 0.0
        %v1385 = vpack.c.bf16 %v1383, %v1383
        %v1386 = vpack.c.bf16 %v1384, %v1384
        %1387 = vrot.lane.b32.xlu0 %v1063, 108
        %v1388 = vpop.permute.xlu0 %1387
        %v1390 = vsel %vm1066, %v1388, 0
        %v1393 = vsel %vm1070, %v1385, 0
        %v1396 = vsel %vm1070, %v1386, 0
        %1398 = vmatprep.subr.bf16.mxu0 %v1396
        %1399 = vmatpush1.bf16.msra.mxu0 %v1393
        %1400 = vmatprep.subr.bf16.mxu0 0
        %1401 = vmatpush1.bf16.msra.mxu0 0
        %1402 = vmatprep.subr.bf16.mxu0 0
        %1403 = vmatpush1.bf16.msra.mxu0 0
        %1404 = vmatprep.subr.bf16.mxu0 0
        %1405 = vmatpush1.bf16.msra.mxu0 0
        %1406 = vmatprep.subr.bf16.mxu0 0
        %1407 = vmatpush1.bf16.msra.mxu0 0
        %1408 = vmatprep.subr.bf16.mxu0 0
        %1409 = vmatpush1.bf16.msra.mxu0 0
        %1410 = vmatprep.subr.bf16.mxu0 0
        %1411 = vmatpush1.bf16.msra.mxu0 0
        %1412 = vmatprep.subr.bf16.mxu0 0
        %1413 = vmatpush1.bf16.msra.mxu0 0
        %1414 = vmatprep.subr.bf16.mxu0 0
        %1415 = vmatpush1.bf16.msra.mxu0 0
        %1416 = vmatprep.subr.bf16.mxu0 0
        %1417 = vmatpush1.bf16.msra.mxu0 0
        %1418 = vmatprep.subr.bf16.mxu0 0
        %1419 = vmatpush1.bf16.msra.mxu0 0
        %1420 = vmatprep.subr.bf16.mxu0 0
        %1421 = vmatpush1.bf16.msra.mxu0 0
        %1422 = vmatprep.subr.bf16.mxu0 0
        %1423 = vmatpush1.bf16.msra.mxu0 0
        %1424 = vmatprep.subr.bf16.mxu0 0
        %1425 = vmatpush1.bf16.msra.mxu0 0
        %1426 = vmatprep.subr.bf16.mxu0 0
        %1427 = vmatpush1.bf16.msra.mxu0 0
        %1428 = vmatprep.subr.bf16.mxu0 0
        %1429 = vmatpush1.bf16.msra.mxu0 0
        %1430 = vmatprep.mubr.bf16.mxu0 0
        %1431 = vmatmul.mubr.bf16.gmra.mrb[0].mxu0 %v1390
        %v1432 = vpop.f32.mrb[0].mxu0
        %v1433 = vadd.f32 0.0, %v1432
        %v1434 = vpop.f32.mrb[0].mxu0
        %v1435 = vadd.f32 0.0, %v1434
        %v1436 = vpop.f32.mrb[0].mxu0
        %v1437 = vpop.f32.mrb[0].mxu0
        %1438 = vdwg.mxu0
        %v1439 = vadd.f32 %v1367, %v1433
        %v1440 = vadd.f32 %v1368, %v1435
        %1441 = vrot.lane.b32.xlu0 %v973, 113
        %v1442 = vpop.permute.xlu0 %1441
        %1443 = vrot.lane.b32.xlu0 %v1024, 113
        %v1444 = vpop.permute.xlu0 %1443
        %vm1445 = vcmask 924672
        %v1446 = vsel %vm1445, %v1442, %v1444
        %v1450 = vsel %vm1445, %v1444, %v1442
        %v1451 = vsel %vm1013, 1, 0
        %v1452 = vsel %vm1014, 1, 0
        %vm1453 = vcmp.eq.s32.totalorder %v1451, 1
        %vm1454 = vcmp.eq.s32.totalorder %v1452, 1
        %v1455 = vsel %vm1453, %v1446, 0.0
        %v1456 = vsel %vm1454, %v1450, 0.0
        %v1457 = vpack.c.bf16 %v1455, %v1455
        %v1458 = vpack.c.bf16 %v1456, %v1456
        %1459 = vrot.lane.b32.xlu0 %v1063, 104
        %v1460 = vpop.permute.xlu0 %1459
        %v1462 = vsel %vm1066, %v1460, 0
        %v1465 = vsel %vm1070, %v1457, 0
        %v1468 = vsel %vm1070, %v1458, 0
        %1470 = vmatprep.subr.bf16.mxu0 %v1468
        %1471 = vmatpush1.bf16.msra.mxu0 %v1465
        %1472 = vmatprep.subr.bf16.mxu0 0
        %1473 = vmatpush1.bf16.msra.mxu0 0
        %1474 = vmatprep.subr.bf16.mxu0 0
        %1475 = vmatpush1.bf16.msra.mxu0 0
        %1476 = vmatprep.subr.bf16.mxu0 0
        %1477 = vmatpush1.bf16.msra.mxu0 0
        %1478 = vmatprep.subr.bf16.mxu0 0
        %1479 = vmatpush1.bf16.msra.mxu0 0
        %1480 = vmatprep.subr.bf16.mxu0 0
        %1481 = vmatpush1.bf16.msra.mxu0 0
        %1482 = vmatprep.subr.bf16.mxu0 0
        %1483 = vmatpush1.bf16.msra.mxu0 0
        %1484 = vmatprep.subr.bf16.mxu0 0
        %1485 = vmatpush1.bf16.msra.mxu0 0
        %1486 = vmatprep.subr.bf16.mxu0 0
        %1487 = vmatpush1.bf16.msra.mxu0 0
        %1488 = vmatprep.subr.bf16.mxu0 0
        %1489 = vmatpush1.bf16.msra.mxu0 0
        %1490 = vmatprep.subr.bf16.mxu0 0
        %1491 = vmatpush1.bf16.msra.mxu0 0
        %1492 = vmatprep.subr.bf16.mxu0 0
        %1493 = vmatpush1.bf16.msra.mxu0 0
        %1494 = vmatprep.subr.bf16.mxu0 0
        %1495 = vmatpush1.bf16.msra.mxu0 0
        %1496 = vmatprep.subr.bf16.mxu0 0
        %1497 = vmatpush1.bf16.msra.mxu0 0
        %1498 = vmatprep.subr.bf16.mxu0 0
        %1499 = vmatpush1.bf16.msra.mxu0 0
        %1500 = vmatprep.subr.bf16.mxu0 0
        %1501 = vmatpush1.bf16.msra.mxu0 0
        %1502 = vmatprep.mubr.bf16.mxu0 0
        %1503 = vmatmul.mubr.bf16.gmra.mrb[0].mxu0 %v1462
        %v1504 = vpop.f32.mrb[0].mxu0
        %v1505 = vadd.f32 0.0, %v1504
        %v1506 = vpop.f32.mrb[0].mxu0
        %v1507 = vadd.f32 0.0, %v1506
        %v1508 = vpop.f32.mrb[0].mxu0
        %v1509 = vpop.f32.mrb[0].mxu0
        %1510 = vdwg.mxu0
        %v1511 = vadd.f32 %v1439, %v1505
        %v1512 = vadd.f32 %v1440, %v1507
        %1513 = vrot.lane.b32.xlu0 %v973, 112
        %v1514 = vpop.permute.xlu0 %1513
        %1515 = vrot.lane.b32.xlu0 %v1024, 112
        %v1516 = vpop.permute.xlu0 %1515
        %vm1517 = vcmask 916480
        %v1518 = vsel %vm1517, %v1514, %v1516
        %v1522 = vsel %vm1517, %v1516, %v1514
        %v1523 = vsel %vm1003, 1, 0
        %v1524 = vsel %vm1004, 1, 0
        %vm1525 = vcmp.eq.s32.totalorder %v1523, 1
        %vm1526 = vcmp.eq.s32.totalorder %v1524, 1
        %v1527 = vsel %vm1525, %v1518, 0.0
        %v1528 = vsel %vm1526, %v1522, 0.0
        %v1529 = vpack.c.bf16 %v1527, %v1527
        %v1530 = vpack.c.bf16 %v1528, %v1528
        %1531 = vrot.lane.b32.xlu0 %v1063, 100
        %v1532 = vpop.permute.xlu0 %1531
        %v1534 = vsel %vm1066, %v1532, 0
        %v1537 = vsel %vm1070, %v1529, 0
        %v1540 = vsel %vm1070, %v1530, 0
        %1542 = vmatprep.subr.bf16.mxu0 %v1540
        %1543 = vmatpush1.bf16.msra.mxu0 %v1537
        %1544 = vmatprep.subr.bf16.mxu0 0
        %1545 = vmatpush1.bf16.msra.mxu0 0
        %1546 = vmatprep.subr.bf16.mxu0 0
        %1547 = vmatpush1.bf16.msra.mxu0 0
        %1548 = vmatprep.subr.bf16.mxu0 0
        %1549 = vmatpush1.bf16.msra.mxu0 0
        %1550 = vmatprep.subr.bf16.mxu0 0
        %1551 = vmatpush1.bf16.msra.mxu0 0
        %1552 = vmatprep.subr.bf16.mxu0 0
        %1553 = vmatpush1.bf16.msra.mxu0 0
        %1554 = vmatprep.subr.bf16.mxu0 0
        %1555 = vmatpush1.bf16.msra.mxu0 0
        %1556 = vmatprep.subr.bf16.mxu0 0
        %1557 = vmatpush1.bf16.msra.mxu0 0
        %1558 = vmatprep.subr.bf16.mxu0 0
        %1559 = vmatpush1.bf16.msra.mxu0 0
        %1560 = vmatprep.subr.bf16.mxu0 0
        %1561 = vmatpush1.bf16.msra.mxu0 0
        %1562 = vmatprep.subr.bf16.mxu0 0
        %1563 = vmatpush1.bf16.msra.mxu0 0
        %1564 = vmatprep.subr.bf16.mxu0 0
        %1565 = vmatpush1.bf16.msra.mxu0 0
        %1566 = vmatprep.subr.bf16.mxu0 0
        %1567 = vmatpush1.bf16.msra.mxu0 0
        %1568 = vmatprep.subr.bf16.mxu0 0
        %1569 = vmatpush1.bf16.msra.mxu0 0
        %1570 = vmatprep.subr.bf16.mxu0 0
        %1571 = vmatpush1.bf16.msra.mxu0 0
        %1572 = vmatprep.subr.bf16.mxu0 0
        %1573 = vmatpush1.bf16.msra.mxu0 0
        %1574 = vmatprep.mubr.bf16.mxu0 0
        %1575 = vmatmul.mubr.bf16.gmra.mrb[0].mxu0 %v1534
        %v1576 = vpop.f32.mrb[0].mxu0
        %v1577 = vadd.f32 0.0, %v1576
        %v1578 = vpop.f32.mrb[0].mxu0
        %v1579 = vadd.f32 0.0, %v1578
        %v1580 = vpop.f32.mrb[0].mxu0
        %v1581 = vpop.f32.mrb[0].mxu0
        %1582 = vdwg.mxu0
        %v1583 = vadd.f32 %v1511, %v1577
        %v1584 = vadd.f32 %v1512, %v1579
        %1585 = vrot.lane.b32.xlu0 %v973, 111
        %v1586 = vpop.permute.xlu0 %1585
        %1587 = vrot.lane.b32.xlu0 %v1024, 111
        %v1588 = vpop.permute.xlu0 %1587
        %vm1589 = vcmask 908288
        %v1590 = vsel %vm1589, %v1586, %v1588
        %v1594 = vsel %vm1589, %v1588, %v1586
        %v1595 = vsel %vm1015, 1, 0
        %v1596 = vsel %vm1016, 1, 0
        %vm1597 = vcmp.eq.s32.totalorder %v1595, 1
        %vm1598 = vcmp.eq.s32.totalorder %v1596, 1
        %v1599 = vsel %vm1597, %v1590, 0.0
        %v1600 = vsel %vm1598, %v1594, 0.0
        %v1601 = vpack.c.bf16 %v1599, %v1599
        %v1602 = vpack.c.bf16 %v1600, %v1600
        %1603 = vrot.lane.b32.xlu0 %v1063, 96
        %v1604 = vpop.permute.xlu0 %1603
        %v1606 = vsel %vm1066, %v1604, 0
        %v1609 = vsel %vm1070, %v1601, 0
        %v1612 = vsel %vm1070, %v1602, 0
        %1614 = vmatprep.subr.bf16.mxu0 %v1612
        %1615 = vmatpush1.bf16.msra.mxu0 %v1609
        %1616 = vmatprep.subr.bf16.mxu0 0
        %1617 = vmatpush1.bf16.msra.mxu0 0
        %1618 = vmatprep.subr.bf16.mxu0 0
        %1619 = vmatpush1.bf16.msra.mxu0 0
        %1620 = vmatprep.subr.bf16.mxu0 0
        %1621 = vmatpush1.bf16.msra.mxu0 0
        %1622 = vmatprep.subr.bf16.mxu0 0
        %1623 = vmatpush1.bf16.msra.mxu0 0
        %1624 = vmatprep.subr.bf16.mxu0 0
        %1625 = vmatpush1.bf16.msra.mxu0 0
        %1626 = vmatprep.subr.bf16.mxu0 0
        %1627 = vmatpush1.bf16.msra.mxu0 0
        %1628 = vmatprep.subr.bf16.mxu0 0
        %1629 = vmatpush1.bf16.msra.mxu0 0
        %1630 = vmatprep.subr.bf16.mxu0 0
        %1631 = vmatpush1.bf16.msra.mxu0 0
        %1632 = vmatprep.subr.bf16.mxu0 0
        %1633 = vmatpush1.bf16.msra.mxu0 0
        %1634 = vmatprep.subr.bf16.mxu0 0
        %1635 = vmatpush1.bf16.msra.mxu0 0
        %1636 = vmatprep.subr.bf16.mxu0 0
        %1637 = vmatpush1.bf16.msra.mxu0 0
        %1638 = vmatprep.subr.bf16.mxu0 0
        %1639 = vmatpush1.bf16.msra.mxu0 0
        %1640 = vmatprep.subr.bf16.mxu0 0
        %1641 = vmatpush1.bf16.msra.mxu0 0
        %1642 = vmatprep.subr.bf16.mxu0 0
        %1643 = vmatpush1.bf16.msra.mxu0 0
        %1644 = vmatprep.subr.bf16.mxu0 0
        %1645 = vmatpush1.bf16.msra.mxu0 0
        %1646 = vmatprep.mubr.bf16.mxu0 0
        %1647 = vmatmul.mubr.bf16.gmra.mrb[0].mxu0 %v1606
        %v1648 = vpop.f32.mrb[0].mxu0
        %v1649 = vadd.f32 0.0, %v1648
        %v1650 = vpop.f32.mrb[0].mxu0
        %v1651 = vadd.f32 0.0, %v1650
        %v1652 = vpop.f32.mrb[0].mxu0
        %v1653 = vpop.f32.mrb[0].mxu0
        %1654 = vdwg.mxu0
        %v1655 = vadd.f32 %v1583, %v1649
        %v1656 = vadd.f32 %v1584, %v1651
        %1658 = vset.pattern.permute.xlu0 0
        %1659 = vperm.xlu0 %1658, %v1018
        %v1660 = vpop.permute.xlu0 %1659
        %v1662 = vmul.f32 %v1655, %v1660
        %v1663 = vmul.f32 %v1656, %v1660
        %1665 = vset.pattern.permute.xlu0 0
        %1666 = vperm.xlu0 %1665, %v1019
        %v1667 = vpop.permute.xlu0 %1666
        %v1669 = vadd.f32 %v1662, %v1667
        %v1670 = vadd.f32 %v1663, %v1667
        %v1671 = vmax.f32 %v1669, 0.0
        %v1672 = vmax.f32 %v1670, 0.0
        %v1673 = vpack.c.bf16 %v1671, %v1671
        %v1674 = vpack.c.bf16 %v1672, %v1672
        %v1675 = vunpack.c.l.bf16 %v1673
        %v1676 = vunpack.c.l.bf16 %v1674
        %v1677 = vsub.f32 %v1671, %v1675
        %v1678 = vsub.f32 %v1672, %v1676
        %v1679 = vpack.c.bf16 %v1677, %v1677
        %v1680 = vpack.c.bf16 %v1678, %v1678
        %v1713 = vunpack.c.l.b16 %v933
        %v1714 = vunpack.c.l.b16 %v934
        %v1715 = vunpack.c.l.b16 %v935
        %v1716 = vunpack.c.l.b16 %v936
        %v1717 = vunpack.c.l.b16 %v937
        %v1718 = vunpack.c.l.b16 %v938
        %v1719 = vunpack.c.l.b16 %v939
        %v1720 = vunpack.c.l.b16 %v940
        %v1721 = vunpack.c.l.b16 %v941
        %v1722 = vunpack.c.l.b16 %v942
        %v1723 = vunpack.c.l.b16 %v943
        %v1724 = vunpack.c.l.b16 %v944
        %v1725 = vunpack.c.l.b16 %v945
        %v1726 = vunpack.c.l.b16 %v946
        %v1727 = vunpack.c.l.b16 %v947
        %v1728 = vunpack.c.l.b16 %v948
        %v1729 = vunpack.c.l.b16 %v949
        %v1730 = vunpack.c.l.b16 %v950
        %v1731 = vunpack.c.l.b16 %v951
        %v1732 = vunpack.c.l.b16 %v952
        %v1733 = vunpack.c.l.b16 %v953
        %v1734 = vunpack.c.l.b16 %v954
        %v1735 = vunpack.c.l.b16 %v955
        %v1736 = vunpack.c.l.b16 %v956
        %v1737 = vunpack.c.l.b16 %v957
        %v1738 = vunpack.c.l.b16 %v958
        %v1739 = vunpack.c.l.b16 %v959
        %v1740 = vunpack.c.l.b16 %v960
        %v1741 = vunpack.c.l.b16 %v961
        %v1742 = vunpack.c.l.b16 %v962
        %v1743 = vunpack.c.l.b16 %v963
        %v1744 = vunpack.c.l.b16 %v964
        %v1745 = vpack.c.b16 %v1714, %v1713
        %v1746 = vpack.c.b16 %v1716, %v1715
        %v1747 = vpack.c.b16 %v1718, %v1717
        %v1748 = vpack.c.b16 %v1720, %v1719
        %v1749 = vpack.c.b16 %v1722, %v1721
        %v1750 = vpack.c.b16 %v1724, %v1723
        %v1751 = vpack.c.b16 %v1726, %v1725
        %v1752 = vpack.c.b16 %v1728, %v1727
        %v1753 = vpack.c.b16 %v1730, %v1729
        %v1754 = vpack.c.b16 %v1732, %v1731
        %v1755 = vpack.c.b16 %v1734, %v1733
        %v1756 = vpack.c.b16 %v1736, %v1735
        %v1757 = vpack.c.b16 %v1738, %v1737
        %v1758 = vpack.c.b16 %v1740, %v1739
        %v1759 = vpack.c.b16 %v1742, %v1741
        %v1760 = vpack.c.b16 %v1744, %v1743
        %1777 = vmatprep.subr.bf16.mxu0 0
        %1778 = vmatpush1.bf16.msra.mxu0 %v1745
        %1779 = vmatprep.subr.bf16.mxu0 0
        %1780 = vmatpush1.bf16.msra.mxu0 %v1746
        %1781 = vmatprep.subr.bf16.mxu0 0
        %1782 = vmatpush1.bf16.msra.mxu0 %v1747
        %1783 = vmatprep.subr.bf16.mxu0 0
        %1784 = vmatpush1.bf16.msra.mxu0 %v1748
        %1785 = vmatprep.subr.bf16.mxu0 0
        %1786 = vmatpush1.bf16.msra.mxu0 %v1749
        %1787 = vmatprep.subr.bf16.mxu0 0
        %1788 = vmatpush1.bf16.msra.mxu0 %v1750
        %1789 = vmatprep.subr.bf16.mxu0 0
        %1790 = vmatpush1.bf16.msra.mxu0 %v1751
        %1791 = vmatprep.subr.bf16.mxu0 0
        %1792 = vmatpush1.bf16.msra.mxu0 %v1752
        %1793 = vmatprep.subr.bf16.mxu0 0
        %1794 = vmatpush1.bf16.msra.mxu0 %v1753
        %1795 = vmatprep.subr.bf16.mxu0 0
        %1796 = vmatpush1.bf16.msra.mxu0 %v1754
        %1797 = vmatprep.subr.bf16.mxu0 0
        %1798 = vmatpush1.bf16.msra.mxu0 %v1755
        %1799 = vmatprep.subr.bf16.mxu0 0
        %1800 = vmatpush1.bf16.msra.mxu0 %v1756
        %1801 = vmatprep.subr.bf16.mxu0 0
        %1802 = vmatpush1.bf16.msra.mxu0 %v1757
        %1803 = vmatprep.subr.bf16.mxu0 0
        %1804 = vmatpush1.bf16.msra.mxu0 %v1758
        %1805 = vmatprep.subr.bf16.mxu0 0
        %1806 = vmatpush1.bf16.msra.mxu0 %v1759
        %1807 = vmatprep.subr.bf16.mxu0 0
        %1808 = vmatpush1.bf16.msra.mxu0 %v1760
        %1809 = vmatprep.mubr.bf16.mxu0 %v1680
        %1810 = vmatmul.mubr.bf16.gmra.mrb[0].mxu0 %v1679
        %v1811 = vpop.f32.mrb[0].mxu0
        %v1812 = vadd.f32 0.0, %v1811
        %v1813 = vpop.f32.mrb[0].mxu0
        %v1814 = vpop.f32.mrb[0].mxu0
        %v1815 = vpop.f32.mrb[0].mxu0
        %1816 = vdwg.mxu0
        %1817 = vmatprep.subr.bf16.mxu0 0
        %1818 = vmatpush1.bf16.msra.mxu0 %v1745
        %1819 = vmatprep.subr.bf16.mxu0 0
        %1820 = vmatpush1.bf16.msra.mxu0 %v1746
        %1821 = vmatprep.subr.bf16.mxu0 0
        %1822 = vmatpush1.bf16.msra.mxu0 %v1747
        %1823 = vmatprep.subr.bf16.mxu0 0
        %1824 = vmatpush1.bf16.msra.mxu0 %v1748
        %1825 = vmatprep.subr.bf16.mxu0 0
        %1826 = vmatpush1.bf16.msra.mxu0 %v1749
        %1827 = vmatprep.subr.bf16.mxu0 0
        %1828 = vmatpush1.bf16.msra.mxu0 %v1750
        %1829 = vmatprep.subr.bf16.mxu0 0
        %1830 = vmatpush1.bf16.msra.mxu0 %v1751
        %1831 = vmatprep.subr.bf16.mxu0 0
        %1832 = vmatpush1.bf16.msra.mxu0 %v1752
        %1833 = vmatprep.subr.bf16.mxu0 0
        %1834 = vmatpush1.bf16.msra.mxu0 %v1753
        %1835 = vmatprep.subr.bf16.mxu0 0
        %1836 = vmatpush1.bf16.msra.mxu0 %v1754
        %1837 = vmatprep.subr.bf16.mxu0 0
        %1838 = vmatpush1.bf16.msra.mxu0 %v1755
        %1839 = vmatprep.subr.bf16.mxu0 0
        %1840 = vmatpush1.bf16.msra.mxu0 %v1756
        %1841 = vmatprep.subr.bf16.mxu0 0
        %1842 = vmatpush1.bf16.msra.mxu0 %v1757
        %1843 = vmatprep.subr.bf16.mxu0 0
        %1844 = vmatpush1.bf16.msra.mxu0 %v1758
        %1845 = vmatprep.subr.bf16.mxu0 0
        %1846 = vmatpush1.bf16.msra.mxu0 %v1759
        %1847 = vmatprep.subr.bf16.mxu0 0
        %1848 = vmatpush1.bf16.msra.mxu0 %v1760
        %1849 = vmatprep.mubr.bf16.mxu0 %v1674
        %1850 = vmatmul.mubr.bf16.gmra.mrb[0].mxu0 %v1673
        %v1851 = vpop.f32.mrb[0].mxu0
        %v1852 = vadd.f32 %v1812, %v1851
        %v1853 = vpop.f32.mrb[0].mxu0
        %v1854 = vpop.f32.mrb[0].mxu0
        %v1855 = vpop.f32.mrb[0].mxu0
        %1856 = vdwg.mxu0
        %vm1857 = vcmp.lt.s32.totalorder %v975, 0
        %v1858 = vsub.s32 0, %v975
        %v1859 = vsel %vm1857, %v1858, %v975
        %v1860 = vshrl.u32 %v1859, 3
        %v1861 = vand.u32 %v1859, 7
        %v1862 = vsub.s32 0, %v1861
        %v1863 = vsel %vm1857, %v1862, %v1861
        %vm1864 = vcmp.ne.s32.totalorder %v1863, 0
        %vm1865 = vcmp.lt.s32.totalorder %v1863, 0
        %vm1866 = vmand %vm1865, %vm1864
        %v1867 = vadd.s32 %v1863, 8
        %v1868 = vsel %vm1866, %v1867, %v1863
        %vm1869 = vcmp.ge.s32.totalorder %v975, 8
        %vm1870 = vcmp.lt.s32.totalorder %v975, 56
        %vm1871 = vcmp.ge.s32.totalorder %v1868, 1
        %vm1872 = vcmp.le.s32.totalorder %v1868, 6
        %vm1873 = vmand %vm1869, %vm1871
        %vm1874 = vmand %vm1869, %vm1872
        %vm1875 = vmand %vm1870, %vm1871
        %vm1876 = vmand %vm1870, %vm1872
        %1878 = vrot.lane.b32.xlu0 %v1852, 73
        %v1879 = vpop.permute.xlu0 %1878
        %1881 = vrot.lane.b32.xlu0 %v1852, 9
        %v1882 = vpop.permute.xlu0 %1881
        %vm1884 = vcmask 72704
        %v1885 = vsel %vm1884, %v1879, %v1882
        %v1886 = vsel %vm1873, 1, 0
        %vm1887 = vcmp.eq.s32.totalorder %v1886, 1
        %v1888 = vsel %vm1887, %v1885, 0.0
        %v1889 = vpack.c.bf16 %v1888, %v1888
        %1890 = vrot.lane.b32.xlu0 %v1852, 72
        %v1891 = vpop.permute.xlu0 %1890
        %1893 = vrot.lane.b32.xlu0 %v1852, 8
        %v1894 = vpop.permute.xlu0 %1893
        %vm1896 = vcmask 64512
        %v1897 = vsel %vm1896, %v1891, %v1894
        %v1898 = vsel %vm1869, 1, 0
        %vm1899 = vcmp.eq.s32.totalorder %v1898, 1
        %v1900 = vsel %vm1899, %v1897, 0.0
        %v1901 = vpack.c.bf16 %v1900, %v1900
        %v1903 = vunpack.c.l.b16 %v1020
        %v1904 = vpack.c.b16 %v1903, %v1903
        %1905 = vrot.lane.b32.xlu0 %v1904, 120
        %v1906 = vpop.permute.xlu0 %1905
        %v1908 = vsel %vm1896, %v1906, 0
        %vm1910 = vcmask 1043456
        %v1912 = vsel %vm1910, %v1901, 0
        %1914 = vmatprep.subr.bf16.mxu0 0
        %1915 = vmatpush1.bf16.msra.mxu0 %v1912
        %1916 = vmatprep.subr.bf16.mxu0 0
        %1917 = vmatpush1.bf16.msra.mxu0 0
        %1918 = vmatprep.subr.bf16.mxu0 0
        %1919 = vmatpush1.bf16.msra.mxu0 0
        %1920 = vmatprep.subr.bf16.mxu0 0
        %1921 = vmatpush1.bf16.msra.mxu0 0
        %1922 = vmatprep.subr.bf16.mxu0 0
        %1923 = vmatpush1.bf16.msra.mxu0 0
        %1924 = vmatprep.subr.bf16.mxu0 0
        %1925 = vmatpush1.bf16.msra.mxu0 0
        %1926 = vmatprep.subr.bf16.mxu0 0
        %1927 = vmatpush1.bf16.msra.mxu0 0
        %1928 = vmatprep.subr.bf16.mxu0 0
        %1929 = vmatpush1.bf16.msra.mxu0 0
        %1930 = vmatprep.subr.bf16.mxu0 0
        %1931 = vmatpush1.bf16.msra.mxu0 0
        %1932 = vmatprep.subr.bf16.mxu0 0
        %1933 = vmatpush1.bf16.msra.mxu0 0
        %1934 = vmatprep.subr.bf16.mxu0 0
        %1935 = vmatpush1.bf16.msra.mxu0 0
        %1936 = vmatprep.subr.bf16.mxu0 0
        %1937 = vmatpush1.bf16.msra.mxu0 0
        %1938 = vmatprep.subr.bf16.mxu0 0
        %1939 = vmatpush1.bf16.msra.mxu0 0
        %1940 = vmatprep.subr.bf16.mxu0 0
        %1941 = vmatpush1.bf16.msra.mxu0 0
        %1942 = vmatprep.subr.bf16.mxu0 0
        %1943 = vmatpush1.bf16.msra.mxu0 0
        %1944 = vmatprep.subr.bf16.mxu0 0
        %1945 = vmatpush1.bf16.msra.mxu0 0
        %1946 = vmatprep.mubr.bf16.mxu0 0
        %1947 = vmatmul.mubr.bf16.gmra.mrb[0].mxu0 %v1908
        %v1948 = vpop.f32.mrb[0].mxu0
        %v1949 = vadd.f32 0.0, %v1948
        %v1950 = vpop.f32.mrb[0].mxu0
        %v1951 = vpop.f32.mrb[0].mxu0
        %v1952 = vpop.f32.mrb[0].mxu0
        %1953 = vdwg.mxu0
        %v1955 = vsel %vm1896, %v1020, 0
        %v1958 = vsel %vm1910, %v1889, 0
        %1960 = vmatprep.subr.bf16.mxu0 0
        %1961 = vmatpush1.bf16.msra.mxu0 %v1958
        %1962 = vmatprep.subr.bf16.mxu0 0
        %1963 = vmatpush1.bf16.msra.mxu0 0
        %1964 = vmatprep.subr.bf16.mxu0 0
        %1965 = vmatpush1.bf16.msra.mxu0 0
        %1966 = vmatprep.subr.bf16.mxu0 0
        %1967 = vmatpush1.bf16.msra.mxu0 0
        %1968 = vmatprep.subr.bf16.mxu0 0
        %1969 = vmatpush1.bf16.msra.mxu0 0
        %1970 = vmatprep.subr.bf16.mxu0 0
        %1971 = vmatpush1.bf16.msra.mxu0 0
        %1972 = vmatprep.subr.bf16.mxu0 0
        %1973 = vmatpush1.bf16.msra.mxu0 0
        %1974 = vmatprep.subr.bf16.mxu0 0
        %1975 = vmatpush1.bf16.msra.mxu0 0
        %1976 = vmatprep.subr.bf16.mxu0 0
        %1977 = vmatpush1.bf16.msra.mxu0 0
        %1978 = vmatprep.subr.bf16.mxu0 0
        %1979 = vmatpush1.bf16.msra.mxu0 0
        %1980 = vmatprep.subr.bf16.mxu0 0
        %1981 = vmatpush1.bf16.msra.mxu0 0
        %1982 = vmatprep.subr.bf16.mxu0 0
        %1983 = vmatpush1.bf16.msra.mxu0 0
        %1984 = vmatprep.subr.bf16.mxu0 0
        %1985 = vmatpush1.bf16.msra.mxu0 0
        %1986 = vmatprep.subr.bf16.mxu0 0
        %1987 = vmatpush1.bf16.msra.mxu0 0
        %1988 = vmatprep.subr.bf16.mxu0 0
        %1989 = vmatpush1.bf16.msra.mxu0 0
        %1990 = vmatprep.subr.bf16.mxu0 0
        %1991 = vmatpush1.bf16.msra.mxu0 0
        %1992 = vmatprep.mubr.bf16.mxu0 0
        %1993 = vmatmul.mubr.bf16.gmra.mrb[0].mxu0 %v1955
        %v1994 = vpop.f32.mrb[0].mxu0
        %v1995 = vadd.f32 %v1949, %v1994
        %v1996 = vpop.f32.mrb[0].mxu0
        %v1997 = vpop.f32.mrb[0].mxu0
        %v1998 = vpop.f32.mrb[0].mxu0
        %1999 = vdwg.mxu0
        %2000 = vrot.lane.b32.xlu0 %v1852, 71
        %v2001 = vpop.permute.xlu0 %2000
        %2003 = vrot.lane.b32.xlu0 %v1852, 7
        %v2004 = vpop.permute.xlu0 %2003
        %vm2006 = vcmask 56320
        %v2007 = vsel %vm2006, %v2001, %v2004
        %v2008 = vsel %vm1874, 1, 0
        %vm2009 = vcmp.eq.s32.totalorder %v2008, 1
        %v2010 = vsel %vm2009, %v2007, 0.0
        %v2011 = vpack.c.bf16 %v2010, %v2010
        %2012 = vrot.lane.b32.xlu0 %v1904, 112
        %v2013 = vpop.permute.xlu0 %2012
        %v2015 = vsel %vm1896, %v2013, 0
        %v2018 = vsel %vm1910, %v2011, 0
        %2020 = vmatprep.subr.bf16.mxu0 0
        %2021 = vmatpush1.bf16.msra.mxu0 %v2018
        %2022 = vmatprep.subr.bf16.mxu0 0
        %2023 = vmatpush1.bf16.msra.mxu0 0
        %2024 = vmatprep.subr.bf16.mxu0 0
        %2025 = vmatpush1.bf16.msra.mxu0 0
        %2026 = vmatprep.subr.bf16.mxu0 0
        %2027 = vmatpush1.bf16.msra.mxu0 0
        %2028 = vmatprep.subr.bf16.mxu0 0
        %2029 = vmatpush1.bf16.msra.mxu0 0
        %2030 = vmatprep.subr.bf16.mxu0 0
        %2031 = vmatpush1.bf16.msra.mxu0 0
        %2032 = vmatprep.subr.bf16.mxu0 0
        %2033 = vmatpush1.bf16.msra.mxu0 0
        %2034 = vmatprep.subr.bf16.mxu0 0
        %2035 = vmatpush1.bf16.msra.mxu0 0
        %2036 = vmatprep.subr.bf16.mxu0 0
        %2037 = vmatpush1.bf16.msra.mxu0 0
        %2038 = vmatprep.subr.bf16.mxu0 0
        %2039 = vmatpush1.bf16.msra.mxu0 0
        %2040 = vmatprep.subr.bf16.mxu0 0
        %2041 = vmatpush1.bf16.msra.mxu0 0
        %2042 = vmatprep.subr.bf16.mxu0 0
        %2043 = vmatpush1.bf16.msra.mxu0 0
        %2044 = vmatprep.subr.bf16.mxu0 0
        %2045 = vmatpush1.bf16.msra.mxu0 0
        %2046 = vmatprep.subr.bf16.mxu0 0
        %2047 = vmatpush1.bf16.msra.mxu0 0
        %2048 = vmatprep.subr.bf16.mxu0 0
        %2049 = vmatpush1.bf16.msra.mxu0 0
        %2050 = vmatprep.subr.bf16.mxu0 0
        %2051 = vmatpush1.bf16.msra.mxu0 0
        %2052 = vmatprep.mubr.bf16.mxu0 0
        %2053 = vmatmul.mubr.bf16.gmra.mrb[0].mxu0 %v2015
        %v2054 = vpop.f32.mrb[0].mxu0
        %v2055 = vadd.f32 0.0, %v2054
        %v2056 = vpop.f32.mrb[0].mxu0
        %v2057 = vpop.f32.mrb[0].mxu0
        %v2058 = vpop.f32.mrb[0].mxu0
        %2059 = vdwg.mxu0
        %v2060 = vadd.f32 %v1995, %v2055
        %2061 = vrot.lane.b32.xlu0 %v1852, 65
        %v2062 = vpop.permute.xlu0 %2061
        %2064 = vrot.lane.b32.xlu0 %v1852, 1
        %v2065 = vpop.permute.xlu0 %2064
        %v2067 = vsel %vm1245, %v2062, %v2065
        %v2068 = vsel %vm1871, 1, 0
        %vm2069 = vcmp.eq.s32.totalorder %v2068, 1
        %v2070 = vsel %vm2069, %v2067, 0.0
        %v2071 = vpack.c.bf16 %v2070, %v2070
        %2072 = vrot.lane.b32.xlu0 %v1904, 104
        %v2073 = vpop.permute.xlu0 %2072
        %v2075 = vsel %vm1896, %v2073, 0
        %v2078 = vsel %vm1910, %v2071, 0
        %2080 = vmatprep.subr.bf16.mxu0 0
        %2081 = vmatpush1.bf16.msra.mxu0 %v2078
        %2082 = vmatprep.subr.bf16.mxu0 0
        %2083 = vmatpush1.bf16.msra.mxu0 0
        %2084 = vmatprep.subr.bf16.mxu0 0
        %2085 = vmatpush1.bf16.msra.mxu0 0
        %2086 = vmatprep.subr.bf16.mxu0 0
        %2087 = vmatpush1.bf16.msra.mxu0 0
        %2088 = vmatprep.subr.bf16.mxu0 0
        %2089 = vmatpush1.bf16.msra.mxu0 0
        %2090 = vmatprep.subr.bf16.mxu0 0
        %2091 = vmatpush1.bf16.msra.mxu0 0
        %2092 = vmatprep.subr.bf16.mxu0 0
        %2093 = vmatpush1.bf16.msra.mxu0 0
        %2094 = vmatprep.subr.bf16.mxu0 0
        %2095 = vmatpush1.bf16.msra.mxu0 0
        %2096 = vmatprep.subr.bf16.mxu0 0
        %2097 = vmatpush1.bf16.msra.mxu0 0
        %2098 = vmatprep.subr.bf16.mxu0 0
        %2099 = vmatpush1.bf16.msra.mxu0 0
        %2100 = vmatprep.subr.bf16.mxu0 0
        %2101 = vmatpush1.bf16.msra.mxu0 0
        %2102 = vmatprep.subr.bf16.mxu0 0
        %2103 = vmatpush1.bf16.msra.mxu0 0
        %2104 = vmatprep.subr.bf16.mxu0 0
        %2105 = vmatpush1.bf16.msra.mxu0 0
        %2106 = vmatprep.subr.bf16.mxu0 0
        %2107 = vmatpush1.bf16.msra.mxu0 0
        %2108 = vmatprep.subr.bf16.mxu0 0
        %2109 = vmatpush1.bf16.msra.mxu0 0
        %2110 = vmatprep.subr.bf16.mxu0 0
        %2111 = vmatpush1.bf16.msra.mxu0 0
        %2112 = vmatprep.mubr.bf16.mxu0 0
        %2113 = vmatmul.mubr.bf16.gmra.mrb[0].mxu0 %v2075
        %v2114 = vpop.f32.mrb[0].mxu0
        %v2115 = vadd.f32 0.0, %v2114
        %v2116 = vpop.f32.mrb[0].mxu0
        %v2117 = vpop.f32.mrb[0].mxu0
        %v2118 = vpop.f32.mrb[0].mxu0
        %2119 = vdwg.mxu0
        %v2120 = vadd.f32 %v2060, %v2115
        %v2121 = vpack.c.bf16 %v1852, %v1852
        %2122 = vrot.lane.b32.xlu0 %v1904, 96
        %v2123 = vpop.permute.xlu0 %2122
        %v2125 = vsel %vm1896, %v2123, 0
        %v2128 = vsel %vm1910, %v2121, 0
        %2130 = vmatprep.subr.bf16.mxu0 0
        %2131 = vmatpush1.bf16.msra.mxu0 %v2128
        %2132 = vmatprep.subr.bf16.mxu0 0
        %2133 = vmatpush1.bf16.msra.mxu0 0
        %2134 = vmatprep.subr.bf16.mxu0 0
        %2135 = vmatpush1.bf16.msra.mxu0 0
        %2136 = vmatprep.subr.bf16.mxu0 0
        %2137 = vmatpush1.bf16.msra.mxu0 0
        %2138 = vmatprep.subr.bf16.mxu0 0
        %2139 = vmatpush1.bf16.msra.mxu0 0
        %2140 = vmatprep.subr.bf16.mxu0 0
        %2141 = vmatpush1.bf16.msra.mxu0 0
        %2142 = vmatprep.subr.bf16.mxu0 0
        %2143 = vmatpush1.bf16.msra.mxu0 0
        %2144 = vmatprep.subr.bf16.mxu0 0
        %2145 = vmatpush1.bf16.msra.mxu0 0
        %2146 = vmatprep.subr.bf16.mxu0 0
        %2147 = vmatpush1.bf16.msra.mxu0 0
        %2148 = vmatprep.subr.bf16.mxu0 0
        %2149 = vmatpush1.bf16.msra.mxu0 0
        %2150 = vmatprep.subr.bf16.mxu0 0
        %2151 = vmatpush1.bf16.msra.mxu0 0
        %2152 = vmatprep.subr.bf16.mxu0 0
        %2153 = vmatpush1.bf16.msra.mxu0 0
        %2154 = vmatprep.subr.bf16.mxu0 0
        %2155 = vmatpush1.bf16.msra.mxu0 0
        %2156 = vmatprep.subr.bf16.mxu0 0
        %2157 = vmatpush1.bf16.msra.mxu0 0
        %2158 = vmatprep.subr.bf16.mxu0 0
        %2159 = vmatpush1.bf16.msra.mxu0 0
        %2160 = vmatprep.subr.bf16.mxu0 0
        %2161 = vmatpush1.bf16.msra.mxu0 0
        %2162 = vmatprep.mubr.bf16.mxu0 0
        %2163 = vmatmul.mubr.bf16.gmra.mrb[0].mxu0 %v2125
        %v2164 = vpop.f32.mrb[0].mxu0
        %v2165 = vadd.f32 0.0, %v2164
        %v2166 = vpop.f32.mrb[0].mxu0
        %v2167 = vpop.f32.mrb[0].mxu0
        %v2168 = vpop.f32.mrb[0].mxu0
        %2169 = vdwg.mxu0
        %v2170 = vadd.f32 %v2120, %v2165
        %2171 = vrot.lane.b32.xlu0 %v1852, 127
        %v2172 = vpop.permute.xlu0 %2171
        %2174 = vrot.lane.b32.xlu0 %v1852, 63
        %v2175 = vpop.permute.xlu0 %2174
        %vm2177 = vcmask 515072
        %v2178 = vsel %vm2177, %v2172, %v2175
        %v2179 = vsel %vm1872, 1, 0
        %vm2180 = vcmp.eq.s32.totalorder %v2179, 1
        %v2181 = vsel %vm2180, %v2178, 0.0
        %v2182 = vpack.c.bf16 %v2181, %v2181
        %2183 = vrot.lane.b32.xlu0 %v1904, 88
        %v2184 = vpop.permute.xlu0 %2183
        %v2186 = vsel %vm1896, %v2184, 0
        %v2189 = vsel %vm1910, %v2182, 0
        %2191 = vmatprep.subr.bf16.mxu0 0
        %2192 = vmatpush1.bf16.msra.mxu0 %v2189
        %2193 = vmatprep.subr.bf16.mxu0 0
        %2194 = vmatpush1.bf16.msra.mxu0 0
        %2195 = vmatprep.subr.bf16.mxu0 0
        %2196 = vmatpush1.bf16.msra.mxu0 0
        %2197 = vmatprep.subr.bf16.mxu0 0
        %2198 = vmatpush1.bf16.msra.mxu0 0
        %2199 = vmatprep.subr.bf16.mxu0 0
        %2200 = vmatpush1.bf16.msra.mxu0 0
        %2201 = vmatprep.subr.bf16.mxu0 0
        %2202 = vmatpush1.bf16.msra.mxu0 0
        %2203 = vmatprep.subr.bf16.mxu0 0
        %2204 = vmatpush1.bf16.msra.mxu0 0
        %2205 = vmatprep.subr.bf16.mxu0 0
        %2206 = vmatpush1.bf16.msra.mxu0 0
        %2207 = vmatprep.subr.bf16.mxu0 0
        %2208 = vmatpush1.bf16.msra.mxu0 0
        %2209 = vmatprep.subr.bf16.mxu0 0
        %2210 = vmatpush1.bf16.msra.mxu0 0
        %2211 = vmatprep.subr.bf16.mxu0 0
        %2212 = vmatpush1.bf16.msra.mxu0 0
        %2213 = vmatprep.subr.bf16.mxu0 0
        %2214 = vmatpush1.bf16.msra.mxu0 0
        %2215 = vmatprep.subr.bf16.mxu0 0
        %2216 = vmatpush1.bf16.msra.mxu0 0
        %2217 = vmatprep.subr.bf16.mxu0 0
        %2218 = vmatpush1.bf16.msra.mxu0 0
        %2219 = vmatprep.subr.bf16.mxu0 0
        %2220 = vmatpush1.bf16.msra.mxu0 0
        %2221 = vmatprep.subr.bf16.mxu0 0
        %2222 = vmatpush1.bf16.msra.mxu0 0
        %2223 = vmatprep.mubr.bf16.mxu0 0
        %2224 = vmatmul.mubr.bf16.gmra.mrb[0].mxu0 %v2186
        %v2225 = vpop.f32.mrb[0].mxu0
        %v2226 = vadd.f32 0.0, %v2225
        %v2227 = vpop.f32.mrb[0].mxu0
        %v2228 = vpop.f32.mrb[0].mxu0
        %v2229 = vpop.f32.mrb[0].mxu0
        %2230 = vdwg.mxu0
        %v2231 = vadd.f32 %v2170, %v2226
        %2232 = vrot.lane.b32.xlu0 %v1852, 121
        %v2233 = vpop.permute.xlu0 %2232
        %2235 = vrot.lane.b32.xlu0 %v1852, 57
        %v2236 = vpop.permute.xlu0 %2235
        %vm2238 = vcmask 465920
        %v2239 = vsel %vm2238, %v2233, %v2236
        %v2240 = vsel %vm1875, 1, 0
        %vm2241 = vcmp.eq.s32.totalorder %v2240, 1
        %v2242 = vsel %vm2241, %v2239, 0.0
        %v2243 = vpack.c.bf16 %v2242, %v2242
        %2244 = vrot.lane.b32.xlu0 %v1904, 80
        %v2245 = vpop.permute.xlu0 %2244
        %v2247 = vsel %vm1896, %v2245, 0
        %v2250 = vsel %vm1910, %v2243, 0
        %2252 = vmatprep.subr.bf16.mxu0 0
        %2253 = vmatpush1.bf16.msra.mxu0 %v2250
        %2254 = vmatprep.subr.bf16.mxu0 0
        %2255 = vmatpush1.bf16.msra.mxu0 0
        %2256 = vmatprep.subr.bf16.mxu0 0
        %2257 = vmatpush1.bf16.msra.mxu0 0
        %2258 = vmatprep.subr.bf16.mxu0 0
        %2259 = vmatpush1.bf16.msra.mxu0 0
        %2260 = vmatprep.subr.bf16.mxu0 0
        %2261 = vmatpush1.bf16.msra.mxu0 0
        %2262 = vmatprep.subr.bf16.mxu0 0
        %2263 = vmatpush1.bf16.msra.mxu0 0
        %2264 = vmatprep.subr.bf16.mxu0 0
        %2265 = vmatpush1.bf16.msra.mxu0 0
        %2266 = vmatprep.subr.bf16.mxu0 0
        %2267 = vmatpush1.bf16.msra.mxu0 0
        %2268 = vmatprep.subr.bf16.mxu0 0
        %2269 = vmatpush1.bf16.msra.mxu0 0
        %2270 = vmatprep.subr.bf16.mxu0 0
        %2271 = vmatpush1.bf16.msra.mxu0 0
        %2272 = vmatprep.subr.bf16.mxu0 0
        %2273 = vmatpush1.bf16.msra.mxu0 0
        %2274 = vmatprep.subr.bf16.mxu0 0
        %2275 = vmatpush1.bf16.msra.mxu0 0
        %2276 = vmatprep.subr.bf16.mxu0 0
        %2277 = vmatpush1.bf16.msra.mxu0 0
        %2278 = vmatprep.subr.bf16.mxu0 0
        %2279 = vmatpush1.bf16.msra.mxu0 0
        %2280 = vmatprep.subr.bf16.mxu0 0
        %2281 = vmatpush1.bf16.msra.mxu0 0
        %2282 = vmatprep.subr.bf16.mxu0 0
        %2283 = vmatpush1.bf16.msra.mxu0 0
        %2284 = vmatprep.mubr.bf16.mxu0 0
        %2285 = vmatmul.mubr.bf16.gmra.mrb[0].mxu0 %v2247
        %v2286 = vpop.f32.mrb[0].mxu0
        %v2287 = vadd.f32 0.0, %v2286
        %v2288 = vpop.f32.mrb[0].mxu0
        %v2289 = vpop.f32.mrb[0].mxu0
        %v2290 = vpop.f32.mrb[0].mxu0
        %2291 = vdwg.mxu0
        %v2292 = vadd.f32 %v2231, %v2287
        %2293 = vrot.lane.b32.xlu0 %v1852, 120
        %v2294 = vpop.permute.xlu0 %2293
        %2296 = vrot.lane.b32.xlu0 %v1852, 56
        %v2297 = vpop.permute.xlu0 %2296
        %vm2299 = vcmask 457728
        %v2300 = vsel %vm2299, %v2294, %v2297
        %v2301 = vsel %vm1870, 1, 0
        %vm2302 = vcmp.eq.s32.totalorder %v2301, 1
        %v2303 = vsel %vm2302, %v2300, 0.0
        %v2304 = vpack.c.bf16 %v2303, %v2303
        %2305 = vrot.lane.b32.xlu0 %v1904, 72
        %v2306 = vpop.permute.xlu0 %2305
        %v2308 = vsel %vm1896, %v2306, 0
        %v2311 = vsel %vm1910, %v2304, 0
        %2313 = vmatprep.subr.bf16.mxu0 0
        %2314 = vmatpush1.bf16.msra.mxu0 %v2311
        %2315 = vmatprep.subr.bf16.mxu0 0
        %2316 = vmatpush1.bf16.msra.mxu0 0
        %2317 = vmatprep.subr.bf16.mxu0 0
        %2318 = vmatpush1.bf16.msra.mxu0 0
        %2319 = vmatprep.subr.bf16.mxu0 0
        %2320 = vmatpush1.bf16.msra.mxu0 0
        %2321 = vmatprep.subr.bf16.mxu0 0
        %2322 = vmatpush1.bf16.msra.mxu0 0
        %2323 = vmatprep.subr.bf16.mxu0 0
        %2324 = vmatpush1.bf16.msra.mxu0 0
        %2325 = vmatprep.subr.bf16.mxu0 0
        %2326 = vmatpush1.bf16.msra.mxu0 0
        %2327 = vmatprep.subr.bf16.mxu0 0
        %2328 = vmatpush1.bf16.msra.mxu0 0
        %2329 = vmatprep.subr.bf16.mxu0 0
        %2330 = vmatpush1.bf16.msra.mxu0 0
        %2331 = vmatprep.subr.bf16.mxu0 0
        %2332 = vmatpush1.bf16.msra.mxu0 0
        %2333 = vmatprep.subr.bf16.mxu0 0
        %2334 = vmatpush1.bf16.msra.mxu0 0
        %2335 = vmatprep.subr.bf16.mxu0 0
        %2336 = vmatpush1.bf16.msra.mxu0 0
        %2337 = vmatprep.subr.bf16.mxu0 0
        %2338 = vmatpush1.bf16.msra.mxu0 0
        %2339 = vmatprep.subr.bf16.mxu0 0
        %2340 = vmatpush1.bf16.msra.mxu0 0
        %2341 = vmatprep.subr.bf16.mxu0 0
        %2342 = vmatpush1.bf16.msra.mxu0 0
        %2343 = vmatprep.subr.bf16.mxu0 0
        %2344 = vmatpush1.bf16.msra.mxu0 0
        %2345 = vmatprep.mubr.bf16.mxu0 0
        %2346 = vmatmul.mubr.bf16.gmra.mrb[0].mxu0 %v2308
        %v2347 = vpop.f32.mrb[0].mxu0
        %v2348 = vadd.f32 0.0, %v2347
        %v2349 = vpop.f32.mrb[0].mxu0
        %v2350 = vpop.f32.mrb[0].mxu0
        %v2351 = vpop.f32.mrb[0].mxu0
        %2352 = vdwg.mxu0
        %v2353 = vadd.f32 %v2292, %v2348
        %2354 = vrot.lane.b32.xlu0 %v1852, 119
        %v2355 = vpop.permute.xlu0 %2354
        %2357 = vrot.lane.b32.xlu0 %v1852, 55
        %v2358 = vpop.permute.xlu0 %2357
        %vm2360 = vcmask 449536
        %v2361 = vsel %vm2360, %v2355, %v2358
        %v2362 = vsel %vm1876, 1, 0
        %vm2363 = vcmp.eq.s32.totalorder %v2362, 1
        %v2364 = vsel %vm2363, %v2361, 0.0
        %v2365 = vpack.c.bf16 %v2364, %v2364
        %2366 = vrot.lane.b32.xlu0 %v1904, 64
        %v2367 = vpop.permute.xlu0 %2366
        %v2369 = vsel %vm1896, %v2367, 0
        %v2372 = vsel %vm1910, %v2365, 0
        %2374 = vmatprep.subr.bf16.mxu0 0
        %2375 = vmatpush1.bf16.msra.mxu0 %v2372
        %2376 = vmatprep.subr.bf16.mxu0 0
        %2377 = vmatpush1.bf16.msra.mxu0 0
        %2378 = vmatprep.subr.bf16.mxu0 0
        %2379 = vmatpush1.bf16.msra.mxu0 0
        %2380 = vmatprep.subr.bf16.mxu0 0
        %2381 = vmatpush1.bf16.msra.mxu0 0
        %2382 = vmatprep.subr.bf16.mxu0 0
        %2383 = vmatpush1.bf16.msra.mxu0 0
        %2384 = vmatprep.subr.bf16.mxu0 0
        %2385 = vmatpush1.bf16.msra.mxu0 0
        %2386 = vmatprep.subr.bf16.mxu0 0
        %2387 = vmatpush1.bf16.msra.mxu0 0
        %2388 = vmatprep.subr.bf16.mxu0 0
        %2389 = vmatpush1.bf16.msra.mxu0 0
        %2390 = vmatprep.subr.bf16.mxu0 0
        %2391 = vmatpush1.bf16.msra.mxu0 0
        %2392 = vmatprep.subr.bf16.mxu0 0
        %2393 = vmatpush1.bf16.msra.mxu0 0
        %2394 = vmatprep.subr.bf16.mxu0 0
        %2395 = vmatpush1.bf16.msra.mxu0 0
        %2396 = vmatprep.subr.bf16.mxu0 0
        %2397 = vmatpush1.bf16.msra.mxu0 0
        %2398 = vmatprep.subr.bf16.mxu0 0
        %2399 = vmatpush1.bf16.msra.mxu0 0
        %2400 = vmatprep.subr.bf16.mxu0 0
        %2401 = vmatpush1.bf16.msra.mxu0 0
        %2402 = vmatprep.subr.bf16.mxu0 0
        %2403 = vmatpush1.bf16.msra.mxu0 0
        %2404 = vmatprep.subr.bf16.mxu0 0
        %2405 = vmatpush1.bf16.msra.mxu0 0
        %2406 = vmatprep.mubr.bf16.mxu0 0
        %2407 = vmatmul.mubr.bf16.gmra.mrb[0].mxu0 %v2369
        %v2408 = vpop.f32.mrb[0].mxu0
        %v2409 = vadd.f32 0.0, %v2408
        %v2410 = vpop.f32.mrb[0].mxu0
        %v2411 = vpop.f32.mrb[0].mxu0
        %v2412 = vpop.f32.mrb[0].mxu0
        %2413 = vdwg.mxu0
        %v2414 = vadd.f32 %v2353, %v2409
        %2416 = vset.pattern.permute.xlu0 0
        %2417 = vperm.xlu0 %2416, %v1021
        %v2418 = vpop.permute.xlu0 %2417
        %v2420 = vmul.f32 %v2414, %v2418
        %2422 = vset.pattern.permute.xlu0 0
        %2423 = vperm.xlu0 %2422, %v1022
        %v2424 = vpop.permute.xlu0 %2423
        %v2426 = vadd.f32 %v2420, %v2424
        %v2427 = vadd.f32 %v1039, %v1057
        %v2428 = vadd.f32 %v1040, %v1058
        %v2429 = vadd.f32 %v2427, %v1182
        %v2430 = vadd.f32 %v2428, %v1183
        %v2431 = vadd.f32 %v2429, %v1254
        %v2432 = vadd.f32 %v2430, %v1255
        %v2433 = vadd.f32 %v2431, %v973
        %v2434 = vadd.f32 %v2432, %v1024
        %v2435 = vadd.f32 %v2433, %v1383
        %v2436 = vadd.f32 %v2434, %v1384
        %v2437 = vadd.f32 %v2435, %v1455
        %v2438 = vadd.f32 %v2436, %v1456
        %v2439 = vadd.f32 %v2437, %v1527
        %v2440 = vadd.f32 %v2438, %v1528
        %v2441 = vadd.f32 %v2439, %v1599
        %v2442 = vadd.f32 %v2440, %v1600
        %v2443 = vmul.f32 %v2441, 0.11111111
        %v2444 = vmul.f32 %v2442, 0.11111111
        %v2445 = vpack.c.bf16 %v2443, %v2443
        %v2446 = vpack.c.bf16 %v2444, %v2444
        %v2447 = vunpack.c.l.bf16 %v2445
        %v2448 = vunpack.c.l.bf16 %v2446
        %v2449 = vsub.f32 %v2443, %v2447
        %v2450 = vsub.f32 %v2444, %v2448
        %v2451 = vpack.c.bf16 %v2449, %v2449
        %v2452 = vpack.c.bf16 %v2450, %v2450
        %2453 = vmatprep.subr.bf16.mxu0 0
        %2454 = vmatpush1.bf16.msra.mxu0 %v1745
        %2455 = vmatprep.subr.bf16.mxu0 0
        %2456 = vmatpush1.bf16.msra.mxu0 %v1746
        %2457 = vmatprep.subr.bf16.mxu0 0
        %2458 = vmatpush1.bf16.msra.mxu0 %v1747
        %2459 = vmatprep.subr.bf16.mxu0 0
        %2460 = vmatpush1.bf16.msra.mxu0 %v1748
        %2461 = vmatprep.subr.bf16.mxu0 0
        %2462 = vmatpush1.bf16.msra.mxu0 %v1749
        %2463 = vmatprep.subr.bf16.mxu0 0
        %2464 = vmatpush1.bf16.msra.mxu0 %v1750
        %2465 = vmatprep.subr.bf16.mxu0 0
        %2466 = vmatpush1.bf16.msra.mxu0 %v1751
        %2467 = vmatprep.subr.bf16.mxu0 0
        %2468 = vmatpush1.bf16.msra.mxu0 %v1752
        %2469 = vmatprep.subr.bf16.mxu0 0
        %2470 = vmatpush1.bf16.msra.mxu0 %v1753
        %2471 = vmatprep.subr.bf16.mxu0 0
        %2472 = vmatpush1.bf16.msra.mxu0 %v1754
        %2473 = vmatprep.subr.bf16.mxu0 0
        %2474 = vmatpush1.bf16.msra.mxu0 %v1755
        %2475 = vmatprep.subr.bf16.mxu0 0
        %2476 = vmatpush1.bf16.msra.mxu0 %v1756
        %2477 = vmatprep.subr.bf16.mxu0 0
        %2478 = vmatpush1.bf16.msra.mxu0 %v1757
        %2479 = vmatprep.subr.bf16.mxu0 0
        %2480 = vmatpush1.bf16.msra.mxu0 %v1758
        %2481 = vmatprep.subr.bf16.mxu0 0
        %2482 = vmatpush1.bf16.msra.mxu0 %v1759
        %2483 = vmatprep.subr.bf16.mxu0 0
        %2484 = vmatpush1.bf16.msra.mxu0 %v1760
        %2485 = vmatprep.mubr.bf16.mxu0 %v2452
        %2486 = vmatmul.mubr.bf16.gmra.mrb[0].mxu0 %v2451
        %v2487 = vpop.f32.mrb[0].mxu0
        %v2488 = vadd.f32 0.0, %v2487
        %v2489 = vpop.f32.mrb[0].mxu0
        %v2490 = vpop.f32.mrb[0].mxu0
        %v2491 = vpop.f32.mrb[0].mxu0
        %2492 = vdwg.mxu0
        %2493 = vmatprep.subr.bf16.mxu0 0
        %2494 = vmatpush1.bf16.msra.mxu0 %v1745
        %2495 = vmatprep.subr.bf16.mxu0 0
        %2496 = vmatpush1.bf16.msra.mxu0 %v1746
        %2497 = vmatprep.subr.bf16.mxu0 0
        %2498 = vmatpush1.bf16.msra.mxu0 %v1747
        %2499 = vmatprep.subr.bf16.mxu0 0
        %2500 = vmatpush1.bf16.msra.mxu0 %v1748
        %2501 = vmatprep.subr.bf16.mxu0 0
        %2502 = vmatpush1.bf16.msra.mxu0 %v1749
        %2503 = vmatprep.subr.bf16.mxu0 0
        %2504 = vmatpush1.bf16.msra.mxu0 %v1750
        %2505 = vmatprep.subr.bf16.mxu0 0
        %2506 = vmatpush1.bf16.msra.mxu0 %v1751
        %2507 = vmatprep.subr.bf16.mxu0 0
        %2508 = vmatpush1.bf16.msra.mxu0 %v1752
        %2509 = vmatprep.subr.bf16.mxu0 0
        %2510 = vmatpush1.bf16.msra.mxu0 %v1753
        %2511 = vmatprep.subr.bf16.mxu0 0
        %2512 = vmatpush1.bf16.msra.mxu0 %v1754
        %2513 = vmatprep.subr.bf16.mxu0 0
        %2514 = vmatpush1.bf16.msra.mxu0 %v1755
        %2515 = vmatprep.subr.bf16.mxu0 0
        %2516 = vmatpush1.bf16.msra.mxu0 %v1756
        %2517 = vmatprep.subr.bf16.mxu0 0
        %2518 = vmatpush1.bf16.msra.mxu0 %v1757
        %2519 = vmatprep.subr.bf16.mxu0 0
        %2520 = vmatpush1.bf16.msra.mxu0 %v1758
        %2521 = vmatprep.subr.bf16.mxu0 0
        %2522 = vmatpush1.bf16.msra.mxu0 %v1759
        %2523 = vmatprep.subr.bf16.mxu0 0
        %2524 = vmatpush1.bf16.msra.mxu0 %v1760
        %2525 = vmatprep.mubr.bf16.mxu0 %v2446
        %2526 = vmatmul.mubr.bf16.gmra.mrb[0].mxu0 %v2445
        %v2527 = vpop.f32.mrb[0].mxu0
        %v2528 = vadd.f32 %v2488, %v2527
        %v2529 = vpop.f32.mrb[0].mxu0
        %v2530 = vpop.f32.mrb[0].mxu0
        %v2531 = vpop.f32.mrb[0].mxu0
        %2532 = vdwg.mxu0
        %v2533 = vld [vmem:[%s17] sm:$0xf]
        %v2534 = vld [vmem:[%s19] sm:$0xff]
        %v2535 = vld [vmem:[%s21] sm:$0xff]
        %v2536 = vpack.c.bf16 %v2528, %v2528
        %v2538 = vsel %vm1066, %v2533, 0
        %v2541 = vsel %vm1070, %v2536, 0
        %2543 = vmatprep.subr.bf16.mxu0 0
        %2544 = vmatpush1.bf16.msra.mxu0 %v2541
        %2545 = vmatprep.subr.bf16.mxu0 0
        %2546 = vmatpush1.bf16.msra.mxu0 0
        %2547 = vmatprep.subr.bf16.mxu0 0
        %2548 = vmatpush1.bf16.msra.mxu0 0
        %2549 = vmatprep.subr.bf16.mxu0 0
        %2550 = vmatpush1.bf16.msra.mxu0 0
        %2551 = vmatprep.subr.bf16.mxu0 0
        %2552 = vmatpush1.bf16.msra.mxu0 0
        %2553 = vmatprep.subr.bf16.mxu0 0
        %2554 = vmatpush1.bf16.msra.mxu0 0
        %2555 = vmatprep.subr.bf16.mxu0 0
        %2556 = vmatpush1.bf16.msra.mxu0 0
        %2557 = vmatprep.subr.bf16.mxu0 0
        %2558 = vmatpush1.bf16.msra.mxu0 0
        %2559 = vmatprep.subr.bf16.mxu0 0
        %2560 = vmatpush1.bf16.msra.mxu0 0
        %2561 = vmatprep.subr.bf16.mxu0 0
        %2562 = vmatpush1.bf16.msra.mxu0 0
        %2563 = vmatprep.subr.bf16.mxu0 0
        %2564 = vmatpush1.bf16.msra.mxu0 0
        %2565 = vmatprep.subr.bf16.mxu0 0
        %2566 = vmatpush1.bf16.msra.mxu0 0
        %2567 = vmatprep.subr.bf16.mxu0 0
        %2568 = vmatpush1.bf16.msra.mxu0 0
        %2569 = vmatprep.subr.bf16.mxu0 0
        %2570 = vmatpush1.bf16.msra.mxu0 0
        %2571 = vmatprep.subr.bf16.mxu0 0
        %2572 = vmatpush1.bf16.msra.mxu0 0
        %2573 = vmatprep.subr.bf16.mxu0 0
        %2574 = vmatpush1.bf16.msra.mxu0 0
        %2575 = vmatprep.mubr.bf16.mxu0 0
        %2576 = vmatmul.mubr.bf16.gmra.mrb[0].mxu0 %v2538
        %v2577 = vpop.f32.mrb[0].mxu0
        %v2578 = vadd.f32 0.0, %v2577
        %v2579 = vpop.f32.mrb[0].mxu0
        %v2580 = vpop.f32.mrb[0].mxu0
        %v2581 = vpop.f32.mrb[0].mxu0
        %2582 = vdwg.mxu0
        %2584 = vset.pattern.permute.xlu0 0
        %2585 = vperm.xlu0 %2584, %v2534
        %v2586 = vpop.permute.xlu0 %2585
        %v2588 = vmul.f32 %v2578, %v2586
        %2590 = vset.pattern.permute.xlu0 0
        %2591 = vperm.xlu0 %2590, %v2535
        %v2592 = vpop.permute.xlu0 %2591
        %v2594 = vadd.f32 %v2588, %v2592
        %v2595 = vadd.f32 %v2426, %v2594
        %v2596 = vld [vmem:[%s931] sm:$0xff]
        %v2597 = vld [vmem:[%s23] sm:$0xf]
        %v2598 = vld [vmem:[%s23 + $0x4] sm:$0xf]
        %v2599 = vld [vmem:[%s25] sm:$0xff]
        %v2600 = vld [vmem:[%s25 + $0x8] sm:$0xff]
        %v2601 = vld [vmem:[%s27] sm:$0xff]
        %v2602 = vld [vmem:[%s27 + $0x8] sm:$0xff]
        %v2603 = vld [vmem:[%s29] sm:$0xff]
        %v2604 = vld [vmem:[%s29 + $0x8] sm:$0xff]
        %v2605 = vld [vmem:[%s31] sm:$0xff]
        %v2606 = vld [vmem:[%s31 + $0x8] sm:$0xff]
        %v2607 = vld [vmem:[%s33] sm:$0xff]
        %v2608 = vld [vmem:[%s33 + $0x8] sm:$0xff]
        %v2610 = vcombine.high %v2596, %v2596
        %2611 = vrot.lane.b32.xlu0 %v2610, 17
        %v2612 = vpop.permute.xlu0 %2611
        %2614 = vrot.lane.b32.xlu0 %v2596, 17
        %v2615 = vpop.permute.xlu0 %2614
        %v2616 = vsel %vm1030, %v2615, %v2612
        %v2619 = vsel %vm1030, %v2612, %v2615
        %v2620 = vsel %vm1037, %v2619, 0.0
        %v2621 = vsel %vm1038, %v2616, 0.0
        %v2622 = vpack.c.bf16 %v2620, %v2620
        %v2623 = vpack.c.bf16 %v2621, %v2621
        %2624 = vrot.lane.b32.xlu0 %v2610, 16
        %v2625 = vpop.permute.xlu0 %2624
        %2627 = vrot.lane.b32.xlu0 %v2596, 16
        %v2628 = vpop.permute.xlu0 %2627
        %v2629 = vsel %vm1048, %v2628, %v2625
        %v2632 = vsel %vm1048, %v2625, %v2628
        %v2633 = vsel %vm1055, %v2632, 0.0
        %v2634 = vsel %vm1056, %v2629, 0.0
        %v2635 = vpack.c.bf16 %v2633, %v2633
        %v2636 = vpack.c.bf16 %v2634, %v2634
        %v2639 = vunpack.c.l.b16 %v2597
        %v2640 = vunpack.c.l.b16 %v2598
        %v2641 = vpack.c.b16 %v2640, %v2639
        %2642 = vrot.lane.b32.xlu0 %v2641, 124
        %v2643 = vpop.permute.xlu0 %2642
        %v2645 = vsel %vm1066, %v2643, 0
        %v2648 = vsel %vm1070, %v2635, 0
        %v2651 = vsel %vm1070, %v2636, 0
        %2653 = vmatprep.subr.bf16.mxu0 %v2651
        %2654 = vmatpush1.bf16.msra.mxu0 %v2648
        %2655 = vmatprep.subr.bf16.mxu0 0
        %2656 = vmatpush1.bf16.msra.mxu0 0
        %2657 = vmatprep.subr.bf16.mxu0 0
        %2658 = vmatpush1.bf16.msra.mxu0 0
        %2659 = vmatprep.subr.bf16.mxu0 0
        %2660 = vmatpush1.bf16.msra.mxu0 0
        %2661 = vmatprep.subr.bf16.mxu0 0
        %2662 = vmatpush1.bf16.msra.mxu0 0
        %2663 = vmatprep.subr.bf16.mxu0 0
        %2664 = vmatpush1.bf16.msra.mxu0 0
        %2665 = vmatprep.subr.bf16.mxu0 0
        %2666 = vmatpush1.bf16.msra.mxu0 0
        %2667 = vmatprep.subr.bf16.mxu0 0
        %2668 = vmatpush1.bf16.msra.mxu0 0
        %2669 = vmatprep.subr.bf16.mxu0 0
        %2670 = vmatpush1.bf16.msra.mxu0 0
        %2671 = vmatprep.subr.bf16.mxu0 0
        %2672 = vmatpush1.bf16.msra.mxu0 0
        %2673 = vmatprep.subr.bf16.mxu0 0
        %2674 = vmatpush1.bf16.msra.mxu0 0
        %2675 = vmatprep.subr.bf16.mxu0 0
        %2676 = vmatpush1.bf16.msra.mxu0 0
        %2677 = vmatprep.subr.bf16.mxu0 0
        %2678 = vmatpush1.bf16.msra.mxu0 0
        %2679 = vmatprep.subr.bf16.mxu0 0
        %2680 = vmatpush1.bf16.msra.mxu0 0
        %2681 = vmatprep.subr.bf16.mxu0 0
        %2682 = vmatpush1.bf16.msra.mxu0 0
        %2683 = vmatprep.subr.bf16.mxu0 0
        %2684 = vmatpush1.bf16.msra.mxu0 0
        %2685 = vmatprep.mubr.bf16.mxu0 0
        %2686 = vmatmul.mubr.bf16.gmra.mrb[0].mxu0 %v2645
        %v2687 = vpop.f32.mrb[0].mxu0
        %v2688 = vadd.f32 0.0, %v2687
        %v2689 = vpop.f32.mrb[0].mxu0
        %v2690 = vadd.f32 0.0, %v2689
        %v2691 = vpop.f32.mrb[0].mxu0
        %v2692 = vadd.f32 0.0, %v2691
        %v2693 = vpop.f32.mrb[0].mxu0
        %v2694 = vadd.f32 0.0, %v2693
        %2695 = vdwg.mxu0
        %v2697 = vsel %vm1066, %v2641, 0
        %v2700 = vsel %vm1070, %v2622, 0
        %v2703 = vsel %vm1070, %v2623, 0
        %2705 = vmatprep.subr.bf16.mxu0 %v2703
        %2706 = vmatpush1.bf16.msra.mxu0 %v2700
        %2707 = vmatprep.subr.bf16.mxu0 0
        %2708 = vmatpush1.bf16.msra.mxu0 0
        %2709 = vmatprep.subr.bf16.mxu0 0
        %2710 = vmatpush1.bf16.msra.mxu0 0
        %2711 = vmatprep.subr.bf16.mxu0 0
        %2712 = vmatpush1.bf16.msra.mxu0 0
        %2713 = vmatprep.subr.bf16.mxu0 0
        %2714 = vmatpush1.bf16.msra.mxu0 0
        %2715 = vmatprep.subr.bf16.mxu0 0
        %2716 = vmatpush1.bf16.msra.mxu0 0
        %2717 = vmatprep.subr.bf16.mxu0 0
        %2718 = vmatpush1.bf16.msra.mxu0 0
        %2719 = vmatprep.subr.bf16.mxu0 0
        %2720 = vmatpush1.bf16.msra.mxu0 0
        %2721 = vmatprep.subr.bf16.mxu0 0
        %2722 = vmatpush1.bf16.msra.mxu0 0
        %2723 = vmatprep.subr.bf16.mxu0 0
        %2724 = vmatpush1.bf16.msra.mxu0 0
        %2725 = vmatprep.subr.bf16.mxu0 0
        %2726 = vmatpush1.bf16.msra.mxu0 0
        %2727 = vmatprep.subr.bf16.mxu0 0
        %2728 = vmatpush1.bf16.msra.mxu0 0
        %2729 = vmatprep.subr.bf16.mxu0 0
        %2730 = vmatpush1.bf16.msra.mxu0 0
        %2731 = vmatprep.subr.bf16.mxu0 0
        %2732 = vmatpush1.bf16.msra.mxu0 0
        %2733 = vmatprep.subr.bf16.mxu0 0
        %2734 = vmatpush1.bf16.msra.mxu0 0
        %2735 = vmatprep.subr.bf16.mxu0 0
        %2736 = vmatpush1.bf16.msra.mxu0 0
        %2737 = vmatprep.mubr.bf16.mxu0 0
        %2738 = vmatmul.mubr.bf16.gmra.mrb[0].mxu0 %v2697
        %v2739 = vpop.f32.mrb[0].mxu0
        %v2740 = vadd.f32 %v2688, %v2739
        %v2741 = vpop.f32.mrb[0].mxu0
        %v2742 = vadd.f32 %v2690, %v2741
        %v2743 = vpop.f32.mrb[0].mxu0
        %v2744 = vadd.f32 %v2692, %v2743
        %v2745 = vpop.f32.mrb[0].mxu0
        %v2746 = vadd.f32 %v2694, %v2745
        %2747 = vdwg.mxu0
        %2748 = vrot.lane.b32.xlu0 %v2610, 15
        %v2749 = vpop.permute.xlu0 %2748
        %2751 = vrot.lane.b32.xlu0 %v2596, 15
        %v2752 = vpop.permute.xlu0 %2751
        %v2753 = vsel %vm1173, %v2752, %v2749
        %v2756 = vsel %vm1173, %v2749, %v2752
        %v2757 = vsel %vm1180, %v2756, 0.0
        %v2758 = vsel %vm1181, %v2753, 0.0
        %v2759 = vpack.c.bf16 %v2757, %v2757
        %v2760 = vpack.c.bf16 %v2758, %v2758
        %2761 = vrot.lane.b32.xlu0 %v2641, 120
        %v2762 = vpop.permute.xlu0 %2761
        %v2764 = vsel %vm1066, %v2762, 0
        %v2767 = vsel %vm1070, %v2759, 0
        %v2770 = vsel %vm1070, %v2760, 0
        %2772 = vmatprep.subr.bf16.mxu0 %v2770
        %2773 = vmatpush1.bf16.msra.mxu0 %v2767
        %2774 = vmatprep.subr.bf16.mxu0 0
        %2775 = vmatpush1.bf16.msra.mxu0 0
        %2776 = vmatprep.subr.bf16.mxu0 0
        %2777 = vmatpush1.bf16.msra.mxu0 0
        %2778 = vmatprep.subr.bf16.mxu0 0
        %2779 = vmatpush1.bf16.msra.mxu0 0
        %2780 = vmatprep.subr.bf16.mxu0 0
        %2781 = vmatpush1.bf16.msra.mxu0 0
        %2782 = vmatprep.subr.bf16.mxu0 0
        %2783 = vmatpush1.bf16.msra.mxu0 0
        %2784 = vmatprep.subr.bf16.mxu0 0
        %2785 = vmatpush1.bf16.msra.mxu0 0
        %2786 = vmatprep.subr.bf16.mxu0 0
        %2787 = vmatpush1.bf16.msra.mxu0 0
        %2788 = vmatprep.subr.bf16.mxu0 0
        %2789 = vmatpush1.bf16.msra.mxu0 0
        %2790 = vmatprep.subr.bf16.mxu0 0
        %2791 = vmatpush1.bf16.msra.mxu0 0
        %2792 = vmatprep.subr.bf16.mxu0 0
        %2793 = vmatpush1.bf16.msra.mxu0 0
        %2794 = vmatprep.subr.bf16.mxu0 0
        %2795 = vmatpush1.bf16.msra.mxu0 0
        %2796 = vmatprep.subr.bf16.mxu0 0
        %2797 = vmatpush1.bf16.msra.mxu0 0
        %2798 = vmatprep.subr.bf16.mxu0 0
        %2799 = vmatpush1.bf16.msra.mxu0 0
        %2800 = vmatprep.subr.bf16.mxu0 0
        %2801 = vmatpush1.bf16.msra.mxu0 0
        %2802 = vmatprep.subr.bf16.mxu0 0
        %2803 = vmatpush1.bf16.msra.mxu0 0
        %2804 = vmatprep.mubr.bf16.mxu0 0
        %2805 = vmatmul.mubr.bf16.gmra.mrb[0].mxu0 %v2764
        %v2806 = vpop.f32.mrb[0].mxu0
        %v2807 = vadd.f32 0.0, %v2806
        %v2808 = vpop.f32.mrb[0].mxu0
        %v2809 = vadd.f32 0.0, %v2808
        %v2810 = vpop.f32.mrb[0].mxu0
        %v2811 = vadd.f32 0.0, %v2810
        %v2812 = vpop.f32.mrb[0].mxu0
        %v2813 = vadd.f32 0.0, %v2812
        %2814 = vdwg.mxu0
        %v2815 = vadd.f32 %v2740, %v2807
        %v2816 = vadd.f32 %v2742, %v2809
        %v2817 = vadd.f32 %v2744, %v2811
        %v2818 = vadd.f32 %v2746, %v2813
        %2819 = vrot.lane.b32.xlu0 %v2610, 1
        %v2820 = vpop.permute.xlu0 %2819
        %2822 = vrot.lane.b32.xlu0 %v2596, 1
        %v2823 = vpop.permute.xlu0 %2822
        %v2824 = vsel %vm1245, %v2823, %v2820
        %v2827 = vsel %vm1245, %v2820, %v2823
        %v2828 = vsel %vm1252, %v2827, 0.0
        %v2829 = vsel %vm1253, %v2824, 0.0
        %v2830 = vpack.c.bf16 %v2828, %v2828
        %v2831 = vpack.c.bf16 %v2829, %v2829
        %2832 = vrot.lane.b32.xlu0 %v2641, 116
        %v2833 = vpop.permute.xlu0 %2832
        %v2835 = vsel %vm1066, %v2833, 0
        %v2838 = vsel %vm1070, %v2830, 0
        %v2841 = vsel %vm1070, %v2831, 0
        %2843 = vmatprep.subr.bf16.mxu0 %v2841
        %2844 = vmatpush1.bf16.msra.mxu0 %v2838
        %2845 = vmatprep.subr.bf16.mxu0 0
        %2846 = vmatpush1.bf16.msra.mxu0 0
        %2847 = vmatprep.subr.bf16.mxu0 0
        %2848 = vmatpush1.bf16.msra.mxu0 0
        %2849 = vmatprep.subr.bf16.mxu0 0
        %2850 = vmatpush1.bf16.msra.mxu0 0
        %2851 = vmatprep.subr.bf16.mxu0 0
        %2852 = vmatpush1.bf16.msra.mxu0 0
        %2853 = vmatprep.subr.bf16.mxu0 0
        %2854 = vmatpush1.bf16.msra.mxu0 0
        %2855 = vmatprep.subr.bf16.mxu0 0
        %2856 = vmatpush1.bf16.msra.mxu0 0
        %2857 = vmatprep.subr.bf16.mxu0 0
        %2858 = vmatpush1.bf16.msra.mxu0 0
        %2859 = vmatprep.subr.bf16.mxu0 0
        %2860 = vmatpush1.bf16.msra.mxu0 0
        %2861 = vmatprep.subr.bf16.mxu0 0
        %2862 = vmatpush1.bf16.msra.mxu0 0
        %2863 = vmatprep.subr.bf16.mxu0 0
        %2864 = vmatpush1.bf16.msra.mxu0 0
        %2865 = vmatprep.subr.bf16.mxu0 0
        %2866 = vmatpush1.bf16.msra.mxu0 0
        %2867 = vmatprep.subr.bf16.mxu0 0
        %2868 = vmatpush1.bf16.msra.mxu0 0
        %2869 = vmatprep.subr.bf16.mxu0 0
        %2870 = vmatpush1.bf16.msra.mxu0 0
        %2871 = vmatprep.subr.bf16.mxu0 0
        %2872 = vmatpush1.bf16.msra.mxu0 0
        %2873 = vmatprep.subr.bf16.mxu0 0
        %2874 = vmatpush1.bf16.msra.mxu0 0
        %2875 = vmatprep.mubr.bf16.mxu0 0
        %2876 = vmatmul.mubr.bf16.gmra.mrb[0].mxu0 %v2835
        %v2877 = vpop.f32.mrb[0].mxu0
        %v2878 = vadd.f32 0.0, %v2877
        %v2879 = vpop.f32.mrb[0].mxu0
        %v2880 = vadd.f32 0.0, %v2879
        %v2881 = vpop.f32.mrb[0].mxu0
        %v2882 = vadd.f32 0.0, %v2881
        %v2883 = vpop.f32.mrb[0].mxu0
        %v2884 = vadd.f32 0.0, %v2883
        %2885 = vdwg.mxu0
        %v2886 = vadd.f32 %v2815, %v2878
        %v2887 = vadd.f32 %v2816, %v2880
        %v2888 = vadd.f32 %v2817, %v2882
        %v2889 = vadd.f32 %v2818, %v2884
        %v2891 = vpack.c.bf16 %v2596, %v2596
        %v2892 = vpack.c.bf16 %v2610, %v2610
        %2893 = vrot.lane.b32.xlu0 %v2641, 112
        %v2894 = vpop.permute.xlu0 %2893
        %v2896 = vsel %vm1066, %v2894, 0
        %v2899 = vsel %vm1070, %v2891, 0
        %v2902 = vsel %vm1070, %v2892, 0
        %2904 = vmatprep.subr.bf16.mxu0 %v2902
        %2905 = vmatpush1.bf16.msra.mxu0 %v2899
        %2906 = vmatprep.subr.bf16.mxu0 0
        %2907 = vmatpush1.bf16.msra.mxu0 0
        %2908 = vmatprep.subr.bf16.mxu0 0
        %2909 = vmatpush1.bf16.msra.mxu0 0
        %2910 = vmatprep.subr.bf16.mxu0 0
        %2911 = vmatpush1.bf16.msra.mxu0 0
        %2912 = vmatprep.subr.bf16.mxu0 0
        %2913 = vmatpush1.bf16.msra.mxu0 0
        %2914 = vmatprep.subr.bf16.mxu0 0
        %2915 = vmatpush1.bf16.msra.mxu0 0
        %2916 = vmatprep.subr.bf16.mxu0 0
        %2917 = vmatpush1.bf16.msra.mxu0 0
        %2918 = vmatprep.subr.bf16.mxu0 0
        %2919 = vmatpush1.bf16.msra.mxu0 0
        %2920 = vmatprep.subr.bf16.mxu0 0
        %2921 = vmatpush1.bf16.msra.mxu0 0
        %2922 = vmatprep.subr.bf16.mxu0 0
        %2923 = vmatpush1.bf16.msra.mxu0 0
        %2924 = vmatprep.subr.bf16.mxu0 0
        %2925 = vmatpush1.bf16.msra.mxu0 0
        %2926 = vmatprep.subr.bf16.mxu0 0
        %2927 = vmatpush1.bf16.msra.mxu0 0
        %2928 = vmatprep.subr.bf16.mxu0 0
        %2929 = vmatpush1.bf16.msra.mxu0 0
        %2930 = vmatprep.subr.bf16.mxu0 0
        %2931 = vmatpush1.bf16.msra.mxu0 0
        %2932 = vmatprep.subr.bf16.mxu0 0
        %2933 = vmatpush1.bf16.msra.mxu0 0
        %2934 = vmatprep.subr.bf16.mxu0 0
        %2935 = vmatpush1.bf16.msra.mxu0 0
        %2936 = vmatprep.mubr.bf16.mxu0 0
        %2937 = vmatmul.mubr.bf16.gmra.mrb[0].mxu0 %v2896
        %v2938 = vpop.f32.mrb[0].mxu0
        %v2939 = vadd.f32 0.0, %v2938
        %v2940 = vpop.f32.mrb[0].mxu0
        %v2941 = vadd.f32 0.0, %v2940
        %v2942 = vpop.f32.mrb[0].mxu0
        %v2943 = vadd.f32 0.0, %v2942
        %v2944 = vpop.f32.mrb[0].mxu0
        %v2945 = vadd.f32 0.0, %v2944
        %2946 = vdwg.mxu0
        %v2947 = vadd.f32 %v2886, %v2939
        %v2948 = vadd.f32 %v2887, %v2941
        %v2949 = vadd.f32 %v2888, %v2943
        %v2950 = vadd.f32 %v2889, %v2945
        %2951 = vrot.lane.b32.xlu0 %v2596, 127
        %v2952 = vpop.permute.xlu0 %2951
        %2953 = vrot.lane.b32.xlu0 %v2610, 127
        %v2954 = vpop.permute.xlu0 %2953
        %v2955 = vsel %vm1373, %v2952, %v2954
        %v2959 = vsel %vm1373, %v2954, %v2952
        %v2960 = vsel %vm1381, %v2955, 0.0
        %v2961 = vsel %vm1382, %v2959, 0.0
        %v2962 = vpack.c.bf16 %v2960, %v2960
        %v2963 = vpack.c.bf16 %v2961, %v2961
        %2964 = vrot.lane.b32.xlu0 %v2641, 108
        %v2965 = vpop.permute.xlu0 %2964
        %v2967 = vsel %vm1066, %v2965, 0
        %v2970 = vsel %vm1070, %v2962, 0
        %v2973 = vsel %vm1070, %v2963, 0
        %2975 = vmatprep.subr.bf16.mxu0 %v2973
        %2976 = vmatpush1.bf16.msra.mxu0 %v2970
        %2977 = vmatprep.subr.bf16.mxu0 0
        %2978 = vmatpush1.bf16.msra.mxu0 0
        %2979 = vmatprep.subr.bf16.mxu0 0
        %2980 = vmatpush1.bf16.msra.mxu0 0
        %2981 = vmatprep.subr.bf16.mxu0 0
        %2982 = vmatpush1.bf16.msra.mxu0 0
        %2983 = vmatprep.subr.bf16.mxu0 0
        %2984 = vmatpush1.bf16.msra.mxu0 0
        %2985 = vmatprep.subr.bf16.mxu0 0
        %2986 = vmatpush1.bf16.msra.mxu0 0
        %2987 = vmatprep.subr.bf16.mxu0 0
        %2988 = vmatpush1.bf16.msra.mxu0 0
        %2989 = vmatprep.subr.bf16.mxu0 0
        %2990 = vmatpush1.bf16.msra.mxu0 0
        %2991 = vmatprep.subr.bf16.mxu0 0
        %2992 = vmatpush1.bf16.msra.mxu0 0
        %2993 = vmatprep.subr.bf16.mxu0 0
        %2994 = vmatpush1.bf16.msra.mxu0 0
        %2995 = vmatprep.subr.bf16.mxu0 0
        %2996 = vmatpush1.bf16.msra.mxu0 0
        %2997 = vmatprep.subr.bf16.mxu0 0
        %2998 = vmatpush1.bf16.msra.mxu0 0
        %2999 = vmatprep.subr.bf16.mxu0 0
        %3000 = vmatpush1.bf16.msra.mxu0 0
        %3001 = vmatprep.subr.bf16.mxu0 0
        %3002 = vmatpush1.bf16.msra.mxu0 0
        %3003 = vmatprep.subr.bf16.mxu0 0
        %3004 = vmatpush1.bf16.msra.mxu0 0
        %3005 = vmatprep.subr.bf16.mxu0 0
        %3006 = vmatpush1.bf16.msra.mxu0 0
        %3007 = vmatprep.mubr.bf16.mxu0 0
        %3008 = vmatmul.mubr.bf16.gmra.mrb[0].mxu0 %v2967
        %v3009 = vpop.f32.mrb[0].mxu0
        %v3010 = vadd.f32 0.0, %v3009
        %v3011 = vpop.f32.mrb[0].mxu0
        %v3012 = vadd.f32 0.0, %v3011
        %v3013 = vpop.f32.mrb[0].mxu0
        %v3014 = vadd.f32 0.0, %v3013
        %v3015 = vpop.f32.mrb[0].mxu0
        %v3016 = vadd.f32 0.0, %v3015
        %3017 = vdwg.mxu0
        %v3018 = vadd.f32 %v2947, %v3010
        %v3019 = vadd.f32 %v2948, %v3012
        %v3020 = vadd.f32 %v2949, %v3014
        %v3021 = vadd.f32 %v2950, %v3016
        %3022 = vrot.lane.b32.xlu0 %v2596, 113
        %v3023 = vpop.permute.xlu0 %3022
        %3024 = vrot.lane.b32.xlu0 %v2610, 113
        %v3025 = vpop.permute.xlu0 %3024
        %v3026 = vsel %vm1445, %v3023, %v3025
        %v3030 = vsel %vm1445, %v3025, %v3023
        %v3031 = vsel %vm1453, %v3026, 0.0
        %v3032 = vsel %vm1454, %v3030, 0.0
        %v3033 = vpack.c.bf16 %v3031, %v3031
        %v3034 = vpack.c.bf16 %v3032, %v3032
        %3035 = vrot.lane.b32.xlu0 %v2641, 104
        %v3036 = vpop.permute.xlu0 %3035
        %v3038 = vsel %vm1066, %v3036, 0
        %v3041 = vsel %vm1070, %v3033, 0
        %v3044 = vsel %vm1070, %v3034, 0
        %3046 = vmatprep.subr.bf16.mxu0 %v3044
        %3047 = vmatpush1.bf16.msra.mxu0 %v3041
        %3048 = vmatprep.subr.bf16.mxu0 0
        %3049 = vmatpush1.bf16.msra.mxu0 0
        %3050 = vmatprep.subr.bf16.mxu0 0
        %3051 = vmatpush1.bf16.msra.mxu0 0
        %3052 = vmatprep.subr.bf16.mxu0 0
        %3053 = vmatpush1.bf16.msra.mxu0 0
        %3054 = vmatprep.subr.bf16.mxu0 0
        %3055 = vmatpush1.bf16.msra.mxu0 0
        %3056 = vmatprep.subr.bf16.mxu0 0
        %3057 = vmatpush1.bf16.msra.mxu0 0
        %3058 = vmatprep.subr.bf16.mxu0 0
        %3059 = vmatpush1.bf16.msra.mxu0 0
        %3060 = vmatprep.subr.bf16.mxu0 0
        %3061 = vmatpush1.bf16.msra.mxu0 0
        %3062 = vmatprep.subr.bf16.mxu0 0
        %3063 = vmatpush1.bf16.msra.mxu0 0
        %3064 = vmatprep.subr.bf16.mxu0 0
        %3065 = vmatpush1.bf16.msra.mxu0 0
        %3066 = vmatprep.subr.bf16.mxu0 0
        %3067 = vmatpush1.bf16.msra.mxu0 0
        %3068 = vmatprep.subr.bf16.mxu0 0
        %3069 = vmatpush1.bf16.msra.mxu0 0
        %3070 = vmatprep.subr.bf16.mxu0 0
        %3071 = vmatpush1.bf16.msra.mxu0 0
        %3072 = vmatprep.subr.bf16.mxu0 0
        %3073 = vmatpush1.bf16.msra.mxu0 0
        %3074 = vmatprep.subr.bf16.mxu0 0
        %3075 = vmatpush1.bf16.msra.mxu0 0
        %3076 = vmatprep.subr.bf16.mxu0 0
        %3077 = vmatpush1.bf16.msra.mxu0 0
        %3078 = vmatprep.mubr.bf16.mxu0 0
        %3079 = vmatmul.mubr.bf16.gmra.mrb[0].mxu0 %v3038
        %v3080 = vpop.f32.mrb[0].mxu0
        %v3081 = vadd.f32 0.0, %v3080
        %v3082 = vpop.f32.mrb[0].mxu0
        %v3083 = vadd.f32 0.0, %v3082
        %v3084 = vpop.f32.mrb[0].mxu0
        %v3085 = vadd.f32 0.0, %v3084
        %v3086 = vpop.f32.mrb[0].mxu0
        %v3087 = vadd.f32 0.0, %v3086
        %3088 = vdwg.mxu0
        %v3089 = vadd.f32 %v3018, %v3081
        %v3090 = vadd.f32 %v3019, %v3083
        %v3091 = vadd.f32 %v3020, %v3085
        %v3092 = vadd.f32 %v3021, %v3087
        %3093 = vrot.lane.b32.xlu0 %v2596, 112
        %v3094 = vpop.permute.xlu0 %3093
        %3095 = vrot.lane.b32.xlu0 %v2610, 112
        %v3096 = vpop.permute.xlu0 %3095
        %v3097 = vsel %vm1517, %v3094, %v3096
        %v3101 = vsel %vm1517, %v3096, %v3094
        %v3102 = vsel %vm1525, %v3097, 0.0
        %v3103 = vsel %vm1526, %v3101, 0.0
        %v3104 = vpack.c.bf16 %v3102, %v3102
        %v3105 = vpack.c.bf16 %v3103, %v3103
        %3106 = vrot.lane.b32.xlu0 %v2641, 100
        %v3107 = vpop.permute.xlu0 %3106
        %v3109 = vsel %vm1066, %v3107, 0
        %v3112 = vsel %vm1070, %v3104, 0
        %v3115 = vsel %vm1070, %v3105, 0
        %3117 = vmatprep.subr.bf16.mxu0 %v3115
        %3118 = vmatpush1.bf16.msra.mxu0 %v3112
        %3119 = vmatprep.subr.bf16.mxu0 0
        %3120 = vmatpush1.bf16.msra.mxu0 0
        %3121 = vmatprep.subr.bf16.mxu0 0
        %3122 = vmatpush1.bf16.msra.mxu0 0
        %3123 = vmatprep.subr.bf16.mxu0 0
        %3124 = vmatpush1.bf16.msra.mxu0 0
        %3125 = vmatprep.subr.bf16.mxu0 0
        %3126 = vmatpush1.bf16.msra.mxu0 0
        %3127 = vmatprep.subr.bf16.mxu0 0
        %3128 = vmatpush1.bf16.msra.mxu0 0
        %3129 = vmatprep.subr.bf16.mxu0 0
        %3130 = vmatpush1.bf16.msra.mxu0 0
        %3131 = vmatprep.subr.bf16.mxu0 0
        %3132 = vmatpush1.bf16.msra.mxu0 0
        %3133 = vmatprep.subr.bf16.mxu0 0
        %3134 = vmatpush1.bf16.msra.mxu0 0
        %3135 = vmatprep.subr.bf16.mxu0 0
        %3136 = vmatpush1.bf16.msra.mxu0 0
        %3137 = vmatprep.subr.bf16.mxu0 0
        %3138 = vmatpush1.bf16.msra.mxu0 0
        %3139 = vmatprep.subr.bf16.mxu0 0
        %3140 = vmatpush1.bf16.msra.mxu0 0
        %3141 = vmatprep.subr.bf16.mxu0 0
        %3142 = vmatpush1.bf16.msra.mxu0 0
        %3143 = vmatprep.subr.bf16.mxu0 0
        %3144 = vmatpush1.bf16.msra.mxu0 0
        %3145 = vmatprep.subr.bf16.mxu0 0
        %3146 = vmatpush1.bf16.msra.mxu0 0
        %3147 = vmatprep.subr.bf16.mxu0 0
        %3148 = vmatpush1.bf16.msra.mxu0 0
        %3149 = vmatprep.mubr.bf16.mxu0 0
        %3150 = vmatmul.mubr.bf16.gmra.mrb[0].mxu0 %v3109
        %v3151 = vpop.f32.mrb[0].mxu0
        %v3152 = vadd.f32 0.0, %v3151
        %v3153 = vpop.f32.mrb[0].mxu0
        %v3154 = vadd.f32 0.0, %v3153
        %v3155 = vpop.f32.mrb[0].mxu0
        %v3156 = vadd.f32 0.0, %v3155
        %v3157 = vpop.f32.mrb[0].mxu0
        %v3158 = vadd.f32 0.0, %v3157
        %3159 = vdwg.mxu0
        %v3160 = vadd.f32 %v3089, %v3152
        %v3161 = vadd.f32 %v3090, %v3154
        %v3162 = vadd.f32 %v3091, %v3156
        %v3163 = vadd.f32 %v3092, %v3158
        %3164 = vrot.lane.b32.xlu0 %v2596, 111
        %v3165 = vpop.permute.xlu0 %3164
        %3166 = vrot.lane.b32.xlu0 %v2610, 111
        %v3167 = vpop.permute.xlu0 %3166
        %v3168 = vsel %vm1589, %v3165, %v3167
        %v3172 = vsel %vm1589, %v3167, %v3165
        %v3173 = vsel %vm1597, %v3168, 0.0
        %v3174 = vsel %vm1598, %v3172, 0.0
        %v3175 = vpack.c.bf16 %v3173, %v3173
        %v3176 = vpack.c.bf16 %v3174, %v3174
        %3177 = vrot.lane.b32.xlu0 %v2641, 96
        %v3178 = vpop.permute.xlu0 %3177
        %v3180 = vsel %vm1066, %v3178, 0
        %v3183 = vsel %vm1070, %v3175, 0
        %v3186 = vsel %vm1070, %v3176, 0
        %3188 = vmatprep.subr.bf16.mxu0 %v3186
        %3189 = vmatpush1.bf16.msra.mxu0 %v3183
        %3190 = vmatprep.subr.bf16.mxu0 0
        %3191 = vmatpush1.bf16.msra.mxu0 0
        %3192 = vmatprep.subr.bf16.mxu0 0
        %3193 = vmatpush1.bf16.msra.mxu0 0
        %3194 = vmatprep.subr.bf16.mxu0 0
        %3195 = vmatpush1.bf16.msra.mxu0 0
        %3196 = vmatprep.subr.bf16.mxu0 0
        %3197 = vmatpush1.bf16.msra.mxu0 0
        %3198 = vmatprep.subr.bf16.mxu0 0
        %3199 = vmatpush1.bf16.msra.mxu0 0
        %3200 = vmatprep.subr.bf16.mxu0 0
        %3201 = vmatpush1.bf16.msra.mxu0 0
        %3202 = vmatprep.subr.bf16.mxu0 0
        %3203 = vmatpush1.bf16.msra.mxu0 0
        %3204 = vmatprep.subr.bf16.mxu0 0
        %3205 = vmatpush1.bf16.msra.mxu0 0
        %3206 = vmatprep.subr.bf16.mxu0 0
        %3207 = vmatpush1.bf16.msra.mxu0 0
        %3208 = vmatprep.subr.bf16.mxu0 0
        %3209 = vmatpush1.bf16.msra.mxu0 0
        %3210 = vmatprep.subr.bf16.mxu0 0
        %3211 = vmatpush1.bf16.msra.mxu0 0
        %3212 = vmatprep.subr.bf16.mxu0 0
        %3213 = vmatpush1.bf16.msra.mxu0 0
        %3214 = vmatprep.subr.bf16.mxu0 0
        %3215 = vmatpush1.bf16.msra.mxu0 0
        %3216 = vmatprep.subr.bf16.mxu0 0
        %3217 = vmatpush1.bf16.msra.mxu0 0
        %3218 = vmatprep.subr.bf16.mxu0 0
        %3219 = vmatpush1.bf16.msra.mxu0 0
        %3220 = vmatprep.mubr.bf16.mxu0 0
        %3221 = vmatmul.mubr.bf16.gmra.mrb[0].mxu0 %v3180
        %v3222 = vpop.f32.mrb[0].mxu0
        %v3223 = vadd.f32 0.0, %v3222
        %v3224 = vpop.f32.mrb[0].mxu0
        %v3225 = vadd.f32 0.0, %v3224
        %v3226 = vpop.f32.mrb[0].mxu0
        %v3227 = vadd.f32 0.0, %v3226
        %v3228 = vpop.f32.mrb[0].mxu0
        %v3229 = vadd.f32 0.0, %v3228
        %3230 = vdwg.mxu0
        %v3231 = vadd.f32 %v3160, %v3223
        %v3232 = vadd.f32 %v3161, %v3225
        %v3233 = vadd.f32 %v3162, %v3227
        %v3234 = vadd.f32 %v3163, %v3229
        %3236 = vset.pattern.permute.xlu0 0
        %3237 = vperm.xlu0 %3236, %v2599
        %v3238 = vpop.permute.xlu0 %3237
        %3241 = vset.pattern.permute.xlu0 0
        %3242 = vperm.xlu0 %3241, %v2600
        %v3243 = vpop.permute.xlu0 %3242
        %v3245 = vmul.f32 %v3231, %v3238
        %v3246 = vmul.f32 %v3232, %v3238
        %v3247 = vmul.f32 %v3233, %v3243
        %v3248 = vmul.f32 %v3234, %v3243
        %3250 = vset.pattern.permute.xlu0 0
        %3251 = vperm.xlu0 %3250, %v2601
        %v3252 = vpop.permute.xlu0 %3251
        %3255 = vset.pattern.permute.xlu0 0
        %3256 = vperm.xlu0 %3255, %v2602
        %v3257 = vpop.permute.xlu0 %3256
        %v3259 = vadd.f32 %v3245, %v3252
        %v3260 = vadd.f32 %v3246, %v3252
        %v3261 = vadd.f32 %v3247, %v3257
        %v3262 = vadd.f32 %v3248, %v3257
        %v3263 = vmax.f32 %v3259, 0.0
        %v3264 = vmax.f32 %v3260, 0.0
        %v3265 = vmax.f32 %v3261, 0.0
        %v3266 = vmax.f32 %v3262, 0.0
        %3269 = vrot.lane.b32.xlu0 %v3264, 17
        %v3270 = vpop.permute.xlu0 %3269
        %3271 = vrot.lane.b32.xlu0 %v3266, 17
        %v3272 = vpop.permute.xlu0 %3271
        %3277 = vrot.lane.b32.xlu0 %v3263, 17
        %v3278 = vpop.permute.xlu0 %3277
        %3279 = vrot.lane.b32.xlu0 %v3265, 17
        %v3280 = vpop.permute.xlu0 %3279
        %v3281 = vsel %vm1030, %v3278, %v3270
        %v3282 = vsel %vm1030, %v3280, %v3272
        %v3287 = vsel %vm1030, %v3270, %v3278
        %v3288 = vsel %vm1030, %v3272, %v3280
        %v3289 = vsel %vm1037, %v3287, 0.0
        %v3290 = vsel %vm1038, %v3281, 0.0
        %v3291 = vsel %vm1037, %v3288, 0.0
        %v3292 = vsel %vm1038, %v3282, 0.0
        %v3293 = vpack.c.bf16 %v3291, %v3289
        %v3294 = vpack.c.bf16 %v3292, %v3290
        %3295 = vrot.lane.b32.xlu0 %v3264, 16
        %v3296 = vpop.permute.xlu0 %3295
        %3297 = vrot.lane.b32.xlu0 %v3266, 16
        %v3298 = vpop.permute.xlu0 %3297
        %3301 = vrot.lane.b32.xlu0 %v3263, 16
        %v3302 = vpop.permute.xlu0 %3301
        %3303 = vrot.lane.b32.xlu0 %v3265, 16
        %v3304 = vpop.permute.xlu0 %3303
        %v3305 = vsel %vm1048, %v3302, %v3296
        %v3306 = vsel %vm1048, %v3304, %v3298
        %v3311 = vsel %vm1048, %v3296, %v3302
        %v3312 = vsel %vm1048, %v3298, %v3304
        %v3313 = vsel %vm1055, %v3311, 0.0
        %v3314 = vsel %vm1056, %v3305, 0.0
        %v3315 = vsel %vm1055, %v3312, 0.0
        %v3316 = vsel %vm1056, %v3306, 0.0
        %v3317 = vpack.c.bf16 %v3315, %v3313
        %v3318 = vpack.c.bf16 %v3316, %v3314
        %v3321 = vunpack.c.l.b16 %v2603
        %v3322 = vunpack.c.l.b16 %v2604
        %v3323 = vpack.c.b16 %v3322, %v3321
        %3324 = vrot.lane.b32.xlu0 %v3323, 112
        %v3325 = vpop.permute.xlu0 %3324
        %v3327 = vsel %vm1048, %v3325, 0
        %3329 = vmatprep.subr.bf16.mxu0 %v3318
        %3330 = vmatpush1.bf16.msra.mxu0 %v3317
        %3331 = vmatprep.subr.bf16.mxu0 0
        %3332 = vmatpush1.bf16.msra.mxu0 0
        %3333 = vmatprep.subr.bf16.mxu0 0
        %3334 = vmatpush1.bf16.msra.mxu0 0
        %3335 = vmatprep.subr.bf16.mxu0 0
        %3336 = vmatpush1.bf16.msra.mxu0 0
        %3337 = vmatprep.subr.bf16.mxu0 0
        %3338 = vmatpush1.bf16.msra.mxu0 0
        %3339 = vmatprep.subr.bf16.mxu0 0
        %3340 = vmatpush1.bf16.msra.mxu0 0
        %3341 = vmatprep.subr.bf16.mxu0 0
        %3342 = vmatpush1.bf16.msra.mxu0 0
        %3343 = vmatprep.subr.bf16.mxu0 0
        %3344 = vmatpush1.bf16.msra.mxu0 0
        %3345 = vmatprep.subr.bf16.mxu0 0
        %3346 = vmatpush1.bf16.msra.mxu0 0
        %3347 = vmatprep.subr.bf16.mxu0 0
        %3348 = vmatpush1.bf16.msra.mxu0 0
        %3349 = vmatprep.subr.bf16.mxu0 0
        %3350 = vmatpush1.bf16.msra.mxu0 0
        %3351 = vmatprep.subr.bf16.mxu0 0
        %3352 = vmatpush1.bf16.msra.mxu0 0
        %3353 = vmatprep.subr.bf16.mxu0 0
        %3354 = vmatpush1.bf16.msra.mxu0 0
        %3355 = vmatprep.subr.bf16.mxu0 0
        %3356 = vmatpush1.bf16.msra.mxu0 0
        %3357 = vmatprep.subr.bf16.mxu0 0
        %3358 = vmatpush1.bf16.msra.mxu0 0
        %3359 = vmatprep.subr.bf16.mxu0 0
        %3360 = vmatpush1.bf16.msra.mxu0 0
        %3361 = vmatprep.mubr.bf16.mxu0 0
        %3362 = vmatmul.mubr.bf16.gmra.mrb[0].mxu0 %v3327
        %v3363 = vpop.f32.mrb[0].mxu0
        %v3364 = vadd.f32 0.0, %v3363
        %v3365 = vpop.f32.mrb[0].mxu0
        %v3366 = vadd.f32 0.0, %v3365
        %v3367 = vpop.f32.mrb[0].mxu0
        %v3368 = vadd.f32 0.0, %v3367
        %v3369 = vpop.f32.mrb[0].mxu0
        %v3370 = vadd.f32 0.0, %v3369
        %3371 = vdwg.mxu0
        %v3373 = vsel %vm1048, %v3323, 0
        %3375 = vmatprep.subr.bf16.mxu0 %v3294
        %3376 = vmatpush1.bf16.msra.mxu0 %v3293
        %3377 = vmatprep.subr.bf16.mxu0 0
        %3378 = vmatpush1.bf16.msra.mxu0 0
        %3379 = vmatprep.subr.bf16.mxu0 0
        %3380 = vmatpush1.bf16.msra.mxu0 0
        %3381 = vmatprep.subr.bf16.mxu0 0
        %3382 = vmatpush1.bf16.msra.mxu0 0
        %3383 = vmatprep.subr.bf16.mxu0 0
        %3384 = vmatpush1.bf16.msra.mxu0 0
        %3385 = vmatprep.subr.bf16.mxu0 0
        %3386 = vmatpush1.bf16.msra.mxu0 0
        %3387 = vmatprep.subr.bf16.mxu0 0
        %3388 = vmatpush1.bf16.msra.mxu0 0
        %3389 = vmatprep.subr.bf16.mxu0 0
        %3390 = vmatpush1.bf16.msra.mxu0 0
        %3391 = vmatprep.subr.bf16.mxu0 0
        %3392 = vmatpush1.bf16.msra.mxu0 0
        %3393 = vmatprep.subr.bf16.mxu0 0
        %3394 = vmatpush1.bf16.msra.mxu0 0
        %3395 = vmatprep.subr.bf16.mxu0 0
        %3396 = vmatpush1.bf16.msra.mxu0 0
        %3397 = vmatprep.subr.bf16.mxu0 0
        %3398 = vmatpush1.bf16.msra.mxu0 0
        %3399 = vmatprep.subr.bf16.mxu0 0
        %3400 = vmatpush1.bf16.msra.mxu0 0
        %3401 = vmatprep.subr.bf16.mxu0 0
        %3402 = vmatpush1.bf16.msra.mxu0 0
        %3403 = vmatprep.subr.bf16.mxu0 0
        %3404 = vmatpush1.bf16.msra.mxu0 0
        %3405 = vmatprep.subr.bf16.mxu0 0
        %3406 = vmatpush1.bf16.msra.mxu0 0
        %3407 = vmatprep.mubr.bf16.mxu0 0
        %3408 = vmatmul.mubr.bf16.gmra.mrb[0].mxu0 %v3373
        %v3409 = vpop.f32.mrb[0].mxu0
        %v3410 = vadd.f32 %v3364, %v3409
        %v3411 = vpop.f32.mrb[0].mxu0
        %v3412 = vadd.f32 %v3366, %v3411
        %v3413 = vpop.f32.mrb[0].mxu0
        %v3414 = vadd.f32 %v3368, %v3413
        %v3415 = vpop.f32.mrb[0].mxu0
        %v3416 = vadd.f32 %v3370, %v3415
        %3417 = vdwg.mxu0
        %3418 = vrot.lane.b32.xlu0 %v3264, 15
        %v3419 = vpop.permute.xlu0 %3418
        %3420 = vrot.lane.b32.xlu0 %v3266, 15
        %v3421 = vpop.permute.xlu0 %3420
        %3424 = vrot.lane.b32.xlu0 %v3263, 15
        %v3425 = vpop.permute.xlu0 %3424
        %3426 = vrot.lane.b32.xlu0 %v3265, 15
        %v3427 = vpop.permute.xlu0 %3426
        %v3428 = vsel %vm1173, %v3425, %v3419
        %v3429 = vsel %vm1173, %v3427, %v3421
        %v3434 = vsel %vm1173, %v3419, %v3425
        %v3435 = vsel %vm1173, %v3421, %v3427
        %v3436 = vsel %vm1180, %v3434, 0.0
        %v3437 = vsel %vm1181, %v3428, 0.0
        %v3438 = vsel %vm1180, %v3435, 0.0
        %v3439 = vsel %vm1181, %v3429, 0.0
        %v3440 = vpack.c.bf16 %v3438, %v3436
        %v3441 = vpack.c.bf16 %v3439, %v3437
        %3442 = vrot.lane.b32.xlu0 %v3323, 96
        %v3443 = vpop.permute.xlu0 %3442
        %v3445 = vsel %vm1048, %v3443, 0
        %3447 = vmatprep.subr.bf16.mxu0 %v3441
        %3448 = vmatpush1.bf16.msra.mxu0 %v3440
        %3449 = vmatprep.subr.bf16.mxu0 0
        %3450 = vmatpush1.bf16.msra.mxu0 0
        %3451 = vmatprep.subr.bf16.mxu0 0
        %3452 = vmatpush1.bf16.msra.mxu0 0
        %3453 = vmatprep.subr.bf16.mxu0 0
        %3454 = vmatpush1.bf16.msra.mxu0 0
        %3455 = vmatprep.subr.bf16.mxu0 0
        %3456 = vmatpush1.bf16.msra.mxu0 0
        %3457 = vmatprep.subr.bf16.mxu0 0
        %3458 = vmatpush1.bf16.msra.mxu0 0
        %3459 = vmatprep.subr.bf16.mxu0 0
        %3460 = vmatpush1.bf16.msra.mxu0 0
        %3461 = vmatprep.subr.bf16.mxu0 0
        %3462 = vmatpush1.bf16.msra.mxu0 0
        %3463 = vmatprep.subr.bf16.mxu0 0
        %3464 = vmatpush1.bf16.msra.mxu0 0
        %3465 = vmatprep.subr.bf16.mxu0 0
        %3466 = vmatpush1.bf16.msra.mxu0 0
        %3467 = vmatprep.subr.bf16.mxu0 0
        %3468 = vmatpush1.bf16.msra.mxu0 0
        %3469 = vmatprep.subr.bf16.mxu0 0
        %3470 = vmatpush1.bf16.msra.mxu0 0
        %3471 = vmatprep.subr.bf16.mxu0 0
        %3472 = vmatpush1.bf16.msra.mxu0 0
        %3473 = vmatprep.subr.bf16.mxu0 0
        %3474 = vmatpush1.bf16.msra.mxu0 0
        %3475 = vmatprep.subr.bf16.mxu0 0
        %3476 = vmatpush1.bf16.msra.mxu0 0
        %3477 = vmatprep.subr.bf16.mxu0 0
        %3478 = vmatpush1.bf16.msra.mxu0 0
        %3479 = vmatprep.mubr.bf16.mxu0 0
        %3480 = vmatmul.mubr.bf16.gmra.mrb[0].mxu0 %v3445
        %v3481 = vpop.f32.mrb[0].mxu0
        %v3482 = vadd.f32 0.0, %v3481
        %v3483 = vpop.f32.mrb[0].mxu0
        %v3484 = vadd.f32 0.0, %v3483
        %v3485 = vpop.f32.mrb[0].mxu0
        %v3486 = vadd.f32 0.0, %v3485
        %v3487 = vpop.f32.mrb[0].mxu0
        %v3488 = vadd.f32 0.0, %v3487
        %3489 = vdwg.mxu0
        %v3490 = vadd.f32 %v3410, %v3482
        %v3491 = vadd.f32 %v3412, %v3484
        %v3492 = vadd.f32 %v3414, %v3486
        %v3493 = vadd.f32 %v3416, %v3488
        %3494 = vrot.lane.b32.xlu0 %v3264, 1
        %v3495 = vpop.permute.xlu0 %3494
        %3496 = vrot.lane.b32.xlu0 %v3266, 1
        %v3497 = vpop.permute.xlu0 %3496
        %3500 = vrot.lane.b32.xlu0 %v3263, 1
        %v3501 = vpop.permute.xlu0 %3500
        %3502 = vrot.lane.b32.xlu0 %v3265, 1
        %v3503 = vpop.permute.xlu0 %3502
        %v3504 = vsel %vm1245, %v3501, %v3495
        %v3505 = vsel %vm1245, %v3503, %v3497
        %v3510 = vsel %vm1245, %v3495, %v3501
        %v3511 = vsel %vm1245, %v3497, %v3503
        %v3512 = vsel %vm1252, %v3510, 0.0
        %v3513 = vsel %vm1253, %v3504, 0.0
        %v3514 = vsel %vm1252, %v3511, 0.0
        %v3515 = vsel %vm1253, %v3505, 0.0
        %v3516 = vpack.c.bf16 %v3514, %v3512
        %v3517 = vpack.c.bf16 %v3515, %v3513
        %3518 = vrot.lane.b32.xlu0 %v3323, 80
        %v3519 = vpop.permute.xlu0 %3518
        %v3521 = vsel %vm1048, %v3519, 0
        %3523 = vmatprep.subr.bf16.mxu0 %v3517
        %3524 = vmatpush1.bf16.msra.mxu0 %v3516
        %3525 = vmatprep.subr.bf16.mxu0 0
        %3526 = vmatpush1.bf16.msra.mxu0 0
        %3527 = vmatprep.subr.bf16.mxu0 0
        %3528 = vmatpush1.bf16.msra.mxu0 0
        %3529 = vmatprep.subr.bf16.mxu0 0
        %3530 = vmatpush1.bf16.msra.mxu0 0
        %3531 = vmatprep.subr.bf16.mxu0 0
        %3532 = vmatpush1.bf16.msra.mxu0 0
        %3533 = vmatprep.subr.bf16.mxu0 0
        %3534 = vmatpush1.bf16.msra.mxu0 0
        %3535 = vmatprep.subr.bf16.mxu0 0
        %3536 = vmatpush1.bf16.msra.mxu0 0
        %3537 = vmatprep.subr.bf16.mxu0 0
        %3538 = vmatpush1.bf16.msra.mxu0 0
        %3539 = vmatprep.subr.bf16.mxu0 0
        %3540 = vmatpush1.bf16.msra.mxu0 0
        %3541 = vmatprep.subr.bf16.mxu0 0
        %3542 = vmatpush1.bf16.msra.mxu0 0
        %3543 = vmatprep.subr.bf16.mxu0 0
        %3544 = vmatpush1.bf16.msra.mxu0 0
        %3545 = vmatprep.subr.bf16.mxu0 0
        %3546 = vmatpush1.bf16.msra.mxu0 0
        %3547 = vmatprep.subr.bf16.mxu0 0
        %3548 = vmatpush1.bf16.msra.mxu0 0
        %3549 = vmatprep.subr.bf16.mxu0 0
        %3550 = vmatpush1.bf16.msra.mxu0 0
        %3551 = vmatprep.subr.bf16.mxu0 0
        %3552 = vmatpush1.bf16.msra.mxu0 0
        %3553 = vmatprep.subr.bf16.mxu0 0
        %3554 = vmatpush1.bf16.msra.mxu0 0
        %3555 = vmatprep.mubr.bf16.mxu0 0
        %3556 = vmatmul.mubr.bf16.gmra.mrb[0].mxu0 %v3521
        %v3557 = vpop.f32.mrb[0].mxu0
        %v3558 = vadd.f32 0.0, %v3557
        %v3559 = vpop.f32.mrb[0].mxu0
        %v3560 = vadd.f32 0.0, %v3559
        %v3561 = vpop.f32.mrb[0].mxu0
        %v3562 = vadd.f32 0.0, %v3561
        %v3563 = vpop.f32.mrb[0].mxu0
        %v3564 = vadd.f32 0.0, %v3563
        %3565 = vdwg.mxu0
        %v3566 = vadd.f32 %v3490, %v3558
        %v3567 = vadd.f32 %v3491, %v3560
        %v3568 = vadd.f32 %v3492, %v3562
        %v3569 = vadd.f32 %v3493, %v3564
        %v3570 = vpack.c.bf16 %v3265, %v3263
        %v3571 = vpack.c.bf16 %v3266, %v3264
        %3572 = vrot.lane.b32.xlu0 %v3323, 64
        %v3573 = vpop.permute.xlu0 %3572
        %v3575 = vsel %vm1048, %v3573, 0
        %3577 = vmatprep.subr.bf16.mxu0 %v3571
        %3578 = vmatpush1.bf16.msra.mxu0 %v3570
        %3579 = vmatprep.subr.bf16.mxu0 0
        %3580 = vmatpush1.bf16.msra.mxu0 0
        %3581 = vmatprep.subr.bf16.mxu0 0
        %3582 = vmatpush1.bf16.msra.mxu0 0
        %3583 = vmatprep.subr.bf16.mxu0 0
        %3584 = vmatpush1.bf16.msra.mxu0 0
        %3585 = vmatprep.subr.bf16.mxu0 0
        %3586 = vmatpush1.bf16.msra.mxu0 0
        %3587 = vmatprep.subr.bf16.mxu0 0
        %3588 = vmatpush1.bf16.msra.mxu0 0
        %3589 = vmatprep.subr.bf16.mxu0 0
        %3590 = vmatpush1.bf16.msra.mxu0 0
        %3591 = vmatprep.subr.bf16.mxu0 0
        %3592 = vmatpush1.bf16.msra.mxu0 0
        %3593 = vmatprep.subr.bf16.mxu0 0
        %3594 = vmatpush1.bf16.msra.mxu0 0
        %3595 = vmatprep.subr.bf16.mxu0 0
        %3596 = vmatpush1.bf16.msra.mxu0 0
        %3597 = vmatprep.subr.bf16.mxu0 0
        %3598 = vmatpush1.bf16.msra.mxu0 0
        %3599 = vmatprep.subr.bf16.mxu0 0
        %3600 = vmatpush1.bf16.msra.mxu0 0
        %3601 = vmatprep.subr.bf16.mxu0 0
        %3602 = vmatpush1.bf16.msra.mxu0 0
        %3603 = vmatprep.subr.bf16.mxu0 0
        %3604 = vmatpush1.bf16.msra.mxu0 0
        %3605 = vmatprep.subr.bf16.mxu0 0
        %3606 = vmatpush1.bf16.msra.mxu0 0
        %3607 = vmatprep.subr.bf16.mxu0 0
        %3608 = vmatpush1.bf16.msra.mxu0 0
        %3609 = vmatprep.mubr.bf16.mxu0 0
        %3610 = vmatmul.mubr.bf16.gmra.mrb[0].mxu0 %v3575
        %v3611 = vpop.f32.mrb[0].mxu0
        %v3612 = vadd.f32 0.0, %v3611
        %v3613 = vpop.f32.mrb[0].mxu0
        %v3614 = vadd.f32 0.0, %v3613
        %v3615 = vpop.f32.mrb[0].mxu0
        %v3616 = vadd.f32 0.0, %v3615
        %v3617 = vpop.f32.mrb[0].mxu0
        %v3618 = vadd.f32 0.0, %v3617
        %3619 = vdwg.mxu0
        %v3620 = vadd.f32 %v3566, %v3612
        %v3621 = vadd.f32 %v3567, %v3614
        %v3622 = vadd.f32 %v3568, %v3616
        %v3623 = vadd.f32 %v3569, %v3618
        %3624 = vrot.lane.b32.xlu0 %v3263, 127
        %v3625 = vpop.permute.xlu0 %3624
        %3626 = vrot.lane.b32.xlu0 %v3264, 127
        %v3627 = vpop.permute.xlu0 %3626
        %3628 = vrot.lane.b32.xlu0 %v3265, 127
        %v3629 = vpop.permute.xlu0 %3628
        %3630 = vrot.lane.b32.xlu0 %v3266, 127
        %v3631 = vpop.permute.xlu0 %3630
        %v3632 = vsel %vm1373, %v3625, %v3627
        %v3633 = vsel %vm1373, %v3629, %v3631
        %v3640 = vsel %vm1373, %v3627, %v3625
        %v3641 = vsel %vm1373, %v3631, %v3629
        %v3642 = vsel %vm1381, %v3632, 0.0
        %v3643 = vsel %vm1382, %v3640, 0.0
        %v3644 = vsel %vm1381, %v3633, 0.0
        %v3645 = vsel %vm1382, %v3641, 0.0
        %v3646 = vpack.c.bf16 %v3644, %v3642
        %v3647 = vpack.c.bf16 %v3645, %v3643
        %3648 = vrot.lane.b32.xlu0 %v3323, 48
        %v3649 = vpop.permute.xlu0 %3648
        %v3651 = vsel %vm1048, %v3649, 0
        %3653 = vmatprep.subr.bf16.mxu0 %v3647
        %3654 = vmatpush1.bf16.msra.mxu0 %v3646
        %3655 = vmatprep.subr.bf16.mxu0 0
        %3656 = vmatpush1.bf16.msra.mxu0 0
        %3657 = vmatprep.subr.bf16.mxu0 0
        %3658 = vmatpush1.bf16.msra.mxu0 0
        %3659 = vmatprep.subr.bf16.mxu0 0
        %3660 = vmatpush1.bf16.msra.mxu0 0
        %3661 = vmatprep.subr.bf16.mxu0 0
        %3662 = vmatpush1.bf16.msra.mxu0 0
        %3663 = vmatprep.subr.bf16.mxu0 0
        %3664 = vmatpush1.bf16.msra.mxu0 0
        %3665 = vmatprep.subr.bf16.mxu0 0
        %3666 = vmatpush1.bf16.msra.mxu0 0
        %3667 = vmatprep.subr.bf16.mxu0 0
        %3668 = vmatpush1.bf16.msra.mxu0 0
        %3669 = vmatprep.subr.bf16.mxu0 0
        %3670 = vmatpush1.bf16.msra.mxu0 0
        %3671 = vmatprep.subr.bf16.mxu0 0
        %3672 = vmatpush1.bf16.msra.mxu0 0
        %3673 = vmatprep.subr.bf16.mxu0 0
        %3674 = vmatpush1.bf16.msra.mxu0 0
        %3675 = vmatprep.subr.bf16.mxu0 0
        %3676 = vmatpush1.bf16.msra.mxu0 0
        %3677 = vmatprep.subr.bf16.mxu0 0
        %3678 = vmatpush1.bf16.msra.mxu0 0
        %3679 = vmatprep.subr.bf16.mxu0 0
        %3680 = vmatpush1.bf16.msra.mxu0 0
        %3681 = vmatprep.subr.bf16.mxu0 0
        %3682 = vmatpush1.bf16.msra.mxu0 0
        %3683 = vmatprep.subr.bf16.mxu0 0
        %3684 = vmatpush1.bf16.msra.mxu0 0
        %3685 = vmatprep.mubr.bf16.mxu0 0
        %3686 = vmatmul.mubr.bf16.gmra.mrb[0].mxu0 %v3651
        %v3687 = vpop.f32.mrb[0].mxu0
        %v3688 = vadd.f32 0.0, %v3687
        %v3689 = vpop.f32.mrb[0].mxu0
        %v3690 = vadd.f32 0.0, %v3689
        %v3691 = vpop.f32.mrb[0].mxu0
        %v3692 = vadd.f32 0.0, %v3691
        %v3693 = vpop.f32.mrb[0].mxu0
        %v3694 = vadd.f32 0.0, %v3693
        %3695 = vdwg.mxu0
        %v3696 = vadd.f32 %v3620, %v3688
        %v3697 = vadd.f32 %v3621, %v3690
        %v3698 = vadd.f32 %v3622, %v3692
        %v3699 = vadd.f32 %v3623, %v3694
        %3700 = vrot.lane.b32.xlu0 %v3263, 113
        %v3701 = vpop.permute.xlu0 %3700
        %3702 = vrot.lane.b32.xlu0 %v3264, 113
        %v3703 = vpop.permute.xlu0 %3702
        %3704 = vrot.lane.b32.xlu0 %v3265, 113
        %v3705 = vpop.permute.xlu0 %3704
        %3706 = vrot.lane.b32.xlu0 %v3266, 113
        %v3707 = vpop.permute.xlu0 %3706
        %v3708 = vsel %vm1445, %v3701, %v3703
        %v3709 = vsel %vm1445, %v3705, %v3707
        %v3716 = vsel %vm1445, %v3703, %v3701
        %v3717 = vsel %vm1445, %v3707, %v3705
        %v3718 = vsel %vm1453, %v3708, 0.0
        %v3719 = vsel %vm1454, %v3716, 0.0
        %v3720 = vsel %vm1453, %v3709, 0.0
        %v3721 = vsel %vm1454, %v3717, 0.0
        %v3722 = vpack.c.bf16 %v3720, %v3718
        %v3723 = vpack.c.bf16 %v3721, %v3719
        %3724 = vrot.lane.b32.xlu0 %v3323, 32
        %v3725 = vpop.permute.xlu0 %3724
        %v3727 = vsel %vm1048, %v3725, 0
        %3729 = vmatprep.subr.bf16.mxu0 %v3723
        %3730 = vmatpush1.bf16.msra.mxu0 %v3722
        %3731 = vmatprep.subr.bf16.mxu0 0
        %3732 = vmatpush1.bf16.msra.mxu0 0
        %3733 = vmatprep.subr.bf16.mxu0 0
        %3734 = vmatpush1.bf16.msra.mxu0 0
        %3735 = vmatprep.subr.bf16.mxu0 0
        %3736 = vmatpush1.bf16.msra.mxu0 0
        %3737 = vmatprep.subr.bf16.mxu0 0
        %3738 = vmatpush1.bf16.msra.mxu0 0
        %3739 = vmatprep.subr.bf16.mxu0 0
        %3740 = vmatpush1.bf16.msra.mxu0 0
        %3741 = vmatprep.subr.bf16.mxu0 0
        %3742 = vmatpush1.bf16.msra.mxu0 0
        %3743 = vmatprep.subr.bf16.mxu0 0
        %3744 = vmatpush1.bf16.msra.mxu0 0
        %3745 = vmatprep.subr.bf16.mxu0 0
        %3746 = vmatpush1.bf16.msra.mxu0 0
        %3747 = vmatprep.subr.bf16.mxu0 0
        %3748 = vmatpush1.bf16.msra.mxu0 0
        %3749 = vmatprep.subr.bf16.mxu0 0
        %3750 = vmatpush1.bf16.msra.mxu0 0
        %3751 = vmatprep.subr.bf16.mxu0 0
        %3752 = vmatpush1.bf16.msra.mxu0 0
        %3753 = vmatprep.subr.bf16.mxu0 0
        %3754 = vmatpush1.bf16.msra.mxu0 0
        %3755 = vmatprep.subr.bf16.mxu0 0
        %3756 = vmatpush1.bf16.msra.mxu0 0
        %3757 = vmatprep.subr.bf16.mxu0 0
        %3758 = vmatpush1.bf16.msra.mxu0 0
        %3759 = vmatprep.subr.bf16.mxu0 0
        %3760 = vmatpush1.bf16.msra.mxu0 0
        %3761 = vmatprep.mubr.bf16.mxu0 0
        %3762 = vmatmul.mubr.bf16.gmra.mrb[0].mxu0 %v3727
        %v3763 = vpop.f32.mrb[0].mxu0
        %v3764 = vadd.f32 0.0, %v3763
        %v3765 = vpop.f32.mrb[0].mxu0
        %v3766 = vadd.f32 0.0, %v3765
        %v3767 = vpop.f32.mrb[0].mxu0
        %v3768 = vadd.f32 0.0, %v3767
        %v3769 = vpop.f32.mrb[0].mxu0
        %v3770 = vadd.f32 0.0, %v3769
        %3771 = vdwg.mxu0
        %v3772 = vadd.f32 %v3696, %v3764
        %v3773 = vadd.f32 %v3697, %v3766
        %v3774 = vadd.f32 %v3698, %v3768
        %v3775 = vadd.f32 %v3699, %v3770
        %3776 = vrot.lane.b32.xlu0 %v3263, 112
        %v3777 = vpop.permute.xlu0 %3776
        %3778 = vrot.lane.b32.xlu0 %v3264, 112
        %v3779 = vpop.permute.xlu0 %3778
        %3780 = vrot.lane.b32.xlu0 %v3265, 112
        %v3781 = vpop.permute.xlu0 %3780
        %3782 = vrot.lane.b32.xlu0 %v3266, 112
        %v3783 = vpop.permute.xlu0 %3782
        %v3784 = vsel %vm1517, %v3777, %v3779
        %v3785 = vsel %vm1517, %v3781, %v3783
        %v3792 = vsel %vm1517, %v3779, %v3777
        %v3793 = vsel %vm1517, %v3783, %v3781
        %v3794 = vsel %vm1525, %v3784, 0.0
        %v3795 = vsel %vm1526, %v3792, 0.0
        %v3796 = vsel %vm1525, %v3785, 0.0
        %v3797 = vsel %vm1526, %v3793, 0.0
        %v3798 = vpack.c.bf16 %v3796, %v3794
        %v3799 = vpack.c.bf16 %v3797, %v3795
        %3800 = vrot.lane.b32.xlu0 %v3323, 16
        %v3801 = vpop.permute.xlu0 %3800
        %v3803 = vsel %vm1048, %v3801, 0
        %3805 = vmatprep.subr.bf16.mxu0 %v3799
        %3806 = vmatpush1.bf16.msra.mxu0 %v3798
        %3807 = vmatprep.subr.bf16.mxu0 0
        %3808 = vmatpush1.bf16.msra.mxu0 0
        %3809 = vmatprep.subr.bf16.mxu0 0
        %3810 = vmatpush1.bf16.msra.mxu0 0
        %3811 = vmatprep.subr.bf16.mxu0 0
        %3812 = vmatpush1.bf16.msra.mxu0 0
        %3813 = vmatprep.subr.bf16.mxu0 0
        %3814 = vmatpush1.bf16.msra.mxu0 0
        %3815 = vmatprep.subr.bf16.mxu0 0
        %3816 = vmatpush1.bf16.msra.mxu0 0
        %3817 = vmatprep.subr.bf16.mxu0 0
        %3818 = vmatpush1.bf16.msra.mxu0 0
        %3819 = vmatprep.subr.bf16.mxu0 0
        %3820 = vmatpush1.bf16.msra.mxu0 0
        %3821 = vmatprep.subr.bf16.mxu0 0
        %3822 = vmatpush1.bf16.msra.mxu0 0
        %3823 = vmatprep.subr.bf16.mxu0 0
        %3824 = vmatpush1.bf16.msra.mxu0 0
        %3825 = vmatprep.subr.bf16.mxu0 0
        %3826 = vmatpush1.bf16.msra.mxu0 0
        %3827 = vmatprep.subr.bf16.mxu0 0
        %3828 = vmatpush1.bf16.msra.mxu0 0
        %3829 = vmatprep.subr.bf16.mxu0 0
        %3830 = vmatpush1.bf16.msra.mxu0 0
        %3831 = vmatprep.subr.bf16.mxu0 0
        %3832 = vmatpush1.bf16.msra.mxu0 0
        %3833 = vmatprep.subr.bf16.mxu0 0
        %3834 = vmatpush1.bf16.msra.mxu0 0
        %3835 = vmatprep.subr.bf16.mxu0 0
        %3836 = vmatpush1.bf16.msra.mxu0 0
        %3837 = vmatprep.mubr.bf16.mxu0 0
        %3838 = vmatmul.mubr.bf16.gmra.mrb[0].mxu0 %v3803
        %v3839 = vpop.f32.mrb[0].mxu0
        %v3840 = vadd.f32 0.0, %v3839
        %v3841 = vpop.f32.mrb[0].mxu0
        %v3842 = vadd.f32 0.0, %v3841
        %v3843 = vpop.f32.mrb[0].mxu0
        %v3844 = vadd.f32 0.0, %v3843
        %v3845 = vpop.f32.mrb[0].mxu0
        %v3846 = vadd.f32 0.0, %v3845
        %3847 = vdwg.mxu0
        %v3848 = vadd.f32 %v3772, %v3840
        %v3849 = vadd.f32 %v3773, %v3842
        %v3850 = vadd.f32 %v3774, %v3844
        %v3851 = vadd.f32 %v3775, %v3846
        %3852 = vrot.lane.b32.xlu0 %v3263, 111
        %v3853 = vpop.permute.xlu0 %3852
        %3854 = vrot.lane.b32.xlu0 %v3264, 111
        %v3855 = vpop.permute.xlu0 %3854
        %3856 = vrot.lane.b32.xlu0 %v3265, 111
        %v3857 = vpop.permute.xlu0 %3856
        %3858 = vrot.lane.b32.xlu0 %v3266, 111
        %v3859 = vpop.permute.xlu0 %3858
        %v3860 = vsel %vm1589, %v3853, %v3855
        %v3861 = vsel %vm1589, %v3857, %v3859
        %v3868 = vsel %vm1589, %v3855, %v3853
        %v3869 = vsel %vm1589, %v3859, %v3857
        %v3870 = vsel %vm1597, %v3860, 0.0
        %v3871 = vsel %vm1598, %v3868, 0.0
        %v3872 = vsel %vm1597, %v3861, 0.0
        %v3873 = vsel %vm1598, %v3869, 0.0
        %v3874 = vpack.c.bf16 %v3872, %v3870
        %v3875 = vpack.c.bf16 %v3873, %v3871
        %v3876 = vunpack.c.h.b16 %v2603
        %v3877 = vunpack.c.h.b16 %v2604
        %v3878 = vpack.c.b16 %v3877, %v3876
        %v3880 = vsel %vm1048, %v3878, 0
        %3882 = vmatprep.subr.bf16.mxu0 %v3875
        %3883 = vmatpush1.bf16.msra.mxu0 %v3874
        %3884 = vmatprep.subr.bf16.mxu0 0
        %3885 = vmatpush1.bf16.msra.mxu0 0
        %3886 = vmatprep.subr.bf16.mxu0 0
        %3887 = vmatpush1.bf16.msra.mxu0 0
        %3888 = vmatprep.subr.bf16.mxu0 0
        %3889 = vmatpush1.bf16.msra.mxu0 0
        %3890 = vmatprep.subr.bf16.mxu0 0
        %3891 = vmatpush1.bf16.msra.mxu0 0
        %3892 = vmatprep.subr.bf16.mxu0 0
        %3893 = vmatpush1.bf16.msra.mxu0 0
        %3894 = vmatprep.subr.bf16.mxu0 0
        %3895 = vmatpush1.bf16.msra.mxu0 0
        %3896 = vmatprep.subr.bf16.mxu0 0
        %3897 = vmatpush1.bf16.msra.mxu0 0
        %3898 = vmatprep.subr.bf16.mxu0 0
        %3899 = vmatpush1.bf16.msra.mxu0 0
        %3900 = vmatprep.subr.bf16.mxu0 0
        %3901 = vmatpush1.bf16.msra.mxu0 0
        %3902 = vmatprep.subr.bf16.mxu0 0
        %3903 = vmatpush1.bf16.msra.mxu0 0
        %3904 = vmatprep.subr.bf16.mxu0 0
        %3905 = vmatpush1.bf16.msra.mxu0 0
        %3906 = vmatprep.subr.bf16.mxu0 0
        %3907 = vmatpush1.bf16.msra.mxu0 0
        %3908 = vmatprep.subr.bf16.mxu0 0
        %3909 = vmatpush1.bf16.msra.mxu0 0
        %3910 = vmatprep.subr.bf16.mxu0 0
        %3911 = vmatpush1.bf16.msra.mxu0 0
        %3912 = vmatprep.subr.bf16.mxu0 0
        %3913 = vmatpush1.bf16.msra.mxu0 0
        %3914 = vmatprep.mubr.bf16.mxu0 0
        %3915 = vmatmul.mubr.bf16.gmra.mrb[0].mxu0 %v3880
        %v3916 = vpop.f32.mrb[0].mxu0
        %v3917 = vadd.f32 0.0, %v3916
        %v3918 = vpop.f32.mrb[0].mxu0
        %v3919 = vadd.f32 0.0, %v3918
        %v3920 = vpop.f32.mrb[0].mxu0
        %v3921 = vadd.f32 0.0, %v3920
        %v3922 = vpop.f32.mrb[0].mxu0
        %v3923 = vadd.f32 0.0, %v3922
        %3924 = vdwg.mxu0
        %v3925 = vadd.f32 %v3848, %v3917
        %v3926 = vadd.f32 %v3849, %v3919
        %v3927 = vadd.f32 %v3850, %v3921
        %v3928 = vadd.f32 %v3851, %v3923
        %3930 = vset.pattern.permute.xlu0 0
        %3931 = vperm.xlu0 %3930, %v2605
        %v3932 = vpop.permute.xlu0 %3931
        %3935 = vset.pattern.permute.xlu0 0
        %3936 = vperm.xlu0 %3935, %v2606
        %v3937 = vpop.permute.xlu0 %3936
        %v3939 = vmul.f32 %v3925, %v3932
        %v3940 = vmul.f32 %v3926, %v3932
        %v3941 = vmul.f32 %v3927, %v3937
        %v3942 = vmul.f32 %v3928, %v3937
        %3944 = vset.pattern.permute.xlu0 0
        %3945 = vperm.xlu0 %3944, %v2607
        %v3946 = vpop.permute.xlu0 %3945
        %3949 = vset.pattern.permute.xlu0 0
        %3950 = vperm.xlu0 %3949, %v2608
        %v3951 = vpop.permute.xlu0 %3950
        %v3953 = vadd.f32 %v3939, %v3946
        %v3954 = vadd.f32 %v3940, %v3946
        %v3955 = vadd.f32 %v3941, %v3951
        %v3956 = vadd.f32 %v3942, %v3951
        %v3957 = vld [vmem:[%s35] sm:$0xf]
        %v3958 = vld [vmem:[%s35 + $0x4] sm:$0xf]
        %v3959 = vld [vmem:[%s37] sm:$0xff]
        %v3960 = vld [vmem:[%s37 + $0x8] sm:$0xff]
        %v3961 = vld [vmem:[%s39] sm:$0xff]
        %v3962 = vld [vmem:[%s39 + $0x8] sm:$0xff]
        %v3965 = vunpack.c.l.b16 %v3957
        %v3966 = vunpack.c.l.b16 %v3958
        %v3967 = vpack.c.b16 %v3966, %v3965
        %v3969 = vsel %vm1066, %v3967, 0
        %3971 = vmatprep.subr.bf16.mxu0 %v2902
        %3972 = vmatpush1.bf16.msra.mxu0 %v2899
        %3973 = vmatprep.subr.bf16.mxu0 0
        %3974 = vmatpush1.bf16.msra.mxu0 0
        %3975 = vmatprep.subr.bf16.mxu0 0
        %3976 = vmatpush1.bf16.msra.mxu0 0
        %3977 = vmatprep.subr.bf16.mxu0 0
        %3978 = vmatpush1.bf16.msra.mxu0 0
        %3979 = vmatprep.subr.bf16.mxu0 0
        %3980 = vmatpush1.bf16.msra.mxu0 0
        %3981 = vmatprep.subr.bf16.mxu0 0
        %3982 = vmatpush1.bf16.msra.mxu0 0
        %3983 = vmatprep.subr.bf16.mxu0 0
        %3984 = vmatpush1.bf16.msra.mxu0 0
        %3985 = vmatprep.subr.bf16.mxu0 0
        %3986 = vmatpush1.bf16.msra.mxu0 0
        %3987 = vmatprep.subr.bf16.mxu0 0
        %3988 = vmatpush1.bf16.msra.mxu0 0
        %3989 = vmatprep.subr.bf16.mxu0 0
        %3990 = vmatpush1.bf16.msra.mxu0 0
        %3991 = vmatprep.subr.bf16.mxu0 0
        %3992 = vmatpush1.bf16.msra.mxu0 0
        %3993 = vmatprep.subr.bf16.mxu0 0
        %3994 = vmatpush1.bf16.msra.mxu0 0
        %3995 = vmatprep.subr.bf16.mxu0 0
        %3996 = vmatpush1.bf16.msra.mxu0 0
        %3997 = vmatprep.subr.bf16.mxu0 0
        %3998 = vmatpush1.bf16.msra.mxu0 0
        %3999 = vmatprep.subr.bf16.mxu0 0
        %4000 = vmatpush1.bf16.msra.mxu0 0
        %4001 = vmatprep.subr.bf16.mxu0 0
        %4002 = vmatpush1.bf16.msra.mxu0 0
        %4003 = vmatprep.mubr.bf16.mxu0 0
        %4004 = vmatmul.mubr.bf16.gmra.mrb[0].mxu0 %v3969
        %v4005 = vpop.f32.mrb[0].mxu0
        %v4006 = vadd.f32 0.0, %v4005
        %v4007 = vpop.f32.mrb[0].mxu0
        %v4008 = vadd.f32 0.0, %v4007
        %v4009 = vpop.f32.mrb[0].mxu0
        %v4010 = vadd.f32 0.0, %v4009
        %v4011 = vpop.f32.mrb[0].mxu0
        %v4012 = vadd.f32 0.0, %v4011
        %4013 = vdwg.mxu0
        %4015 = vset.pattern.permute.xlu0 0
        %4016 = vperm.xlu0 %4015, %v3959
        %v4017 = vpop.permute.xlu0 %4016
        %4020 = vset.pattern.permute.xlu0 0
        %4021 = vperm.xlu0 %4020, %v3960
        %v4022 = vpop.permute.xlu0 %4021
        %v4024 = vmul.f32 %v4006, %v4017
        %v4025 = vmul.f32 %v4008, %v4017
        %v4026 = vmul.f32 %v4010, %v4022
        %v4027 = vmul.f32 %v4012, %v4022
        %4029 = vset.pattern.permute.xlu0 0
        %4030 = vperm.xlu0 %4029, %v3961
        %v4031 = vpop.permute.xlu0 %4030
        %4034 = vset.pattern.permute.xlu0 0
        %4035 = vperm.xlu0 %4034, %v3962
        %v4036 = vpop.permute.xlu0 %4035
        %v4038 = vadd.f32 %v4024, %v4031
        %v4039 = vadd.f32 %v4025, %v4031
        %v4040 = vadd.f32 %v4026, %v4036
        %v4041 = vadd.f32 %v4027, %v4036
        %v4042 = vadd.f32 %v3953, %v4038
        %v4043 = vadd.f32 %v3954, %v4039
        %v4044 = vadd.f32 %v3955, %v4040
        %v4045 = vadd.f32 %v3956, %v4041
        %v4046 = vld [vmem:[%s41] sm:$0xf]
        %v4047 = vld [vmem:[%s41 + $0x4] sm:$0xf]
        %v4048 = vld [vmem:[%s43] sm:$0xff]
        %v4049 = vld [vmem:[%s43 + $0x8] sm:$0xff]
        %v4050 = vld [vmem:[%s45] sm:$0xff]
        %v4051 = vld [vmem:[%s45 + $0x8] sm:$0xff]
        %v4052 = vld [vmem:[%s47] sm:$0xf]
        %v4053 = vld [vmem:[%s49] sm:$0xff]
        %v4054 = vld [vmem:[%s51] sm:$0xff]
        %v4055 = vpack.c.bf16 %v2595, %v2595
        %v4058 = vunpack.c.l.b16 %v4046
        %v4059 = vunpack.c.l.b16 %v4047
        %v4060 = vpack.c.b16 %v4059, %v4058
        %v4062 = vsel %vm1896, %v4060, 0
        %v4065 = vsel %vm1910, %v4055, 0
        %4067 = vmatprep.subr.bf16.mxu0 0
        %4068 = vmatpush1.bf16.msra.mxu0 %v4065
        %4069 = vmatprep.subr.bf16.mxu0 0
        %4070 = vmatpush1.bf16.msra.mxu0 0
        %4071 = vmatprep.subr.bf16.mxu0 0
        %4072 = vmatpush1.bf16.msra.mxu0 0
        %4073 = vmatprep.subr.bf16.mxu0 0
        %4074 = vmatpush1.bf16.msra.mxu0 0
        %4075 = vmatprep.subr.bf16.mxu0 0
        %4076 = vmatpush1.bf16.msra.mxu0 0
        %4077 = vmatprep.subr.bf16.mxu0 0
        %4078 = vmatpush1.bf16.msra.mxu0 0
        %4079 = vmatprep.subr.bf16.mxu0 0
        %4080 = vmatpush1.bf16.msra.mxu0 0
        %4081 = vmatprep.subr.bf16.mxu0 0
        %4082 = vmatpush1.bf16.msra.mxu0 0
        %4083 = vmatprep.subr.bf16.mxu0 0
        %4084 = vmatpush1.bf16.msra.mxu0 0
        %4085 = vmatprep.subr.bf16.mxu0 0
        %4086 = vmatpush1.bf16.msra.mxu0 0
        %4087 = vmatprep.subr.bf16.mxu0 0
        %4088 = vmatpush1.bf16.msra.mxu0 0
        %4089 = vmatprep.subr.bf16.mxu0 0
        %4090 = vmatpush1.bf16.msra.mxu0 0
        %4091 = vmatprep.subr.bf16.mxu0 0
        %4092 = vmatpush1.bf16.msra.mxu0 0
        %4093 = vmatprep.subr.bf16.mxu0 0
        %4094 = vmatpush1.bf16.msra.mxu0 0
        %4095 = vmatprep.subr.bf16.mxu0 0
        %4096 = vmatpush1.bf16.msra.mxu0 0
        %4097 = vmatprep.subr.bf16.mxu0 0
        %4098 = vmatpush1.bf16.msra.mxu0 0
        %4099 = vmatprep.mubr.bf16.mxu0 0
        %4100 = vmatmul.mubr.bf16.gmra.mrb[0].mxu0 %v4062
        %v4101 = vpop.f32.mrb[0].mxu0
        %v4102 = vadd.f32 0.0, %v4101
        %v4103 = vpop.f32.mrb[0].mxu0
        %v4104 = vpop.f32.mrb[0].mxu0
        %v4105 = vadd.f32 0.0, %v4104
        %v4106 = vpop.f32.mrb[0].mxu0
        %4107 = vdwg.mxu0
        %4109 = vset.pattern.permute.xlu0 0
        %4110 = vperm.xlu0 %4109, %v4048
        %v4111 = vpop.permute.xlu0 %4110
        %4114 = vset.pattern.permute.xlu0 0
        %4115 = vperm.xlu0 %4114, %v4049
        %v4116 = vpop.permute.xlu0 %4115
        %v4118 = vmul.f32 %v4102, %v4111
        %v4119 = vmul.f32 %v4105, %v4116
        %4121 = vset.pattern.permute.xlu0 0
        %4122 = vperm.xlu0 %4121, %v4050
        %v4123 = vpop.permute.xlu0 %4122
        %4126 = vset.pattern.permute.xlu0 0
        %4127 = vperm.xlu0 %4126, %v4051
        %v4128 = vpop.permute.xlu0 %4127
        %v4130 = vadd.f32 %v4118, %v4123
        %v4131 = vadd.f32 %v4119, %v4128
        %v4132 = vpack.c.bf16 %v4044, %v4042
        %v4133 = vpack.c.bf16 %v4045, %v4043
        %v4135 = vsel %vm1048, %v4052, 0
        %4137 = vmatprep.subr.bf16.mxu0 %v4133
        %4138 = vmatpush1.bf16.msra.mxu0 %v4132
        %4139 = vmatprep.subr.bf16.mxu0 0
        %4140 = vmatpush1.bf16.msra.mxu0 0
        %4141 = vmatprep.subr.bf16.mxu0 0
        %4142 = vmatpush1.bf16.msra.mxu0 0
        %4143 = vmatprep.subr.bf16.mxu0 0
        %4144 = vmatpush1.bf16.msra.mxu0 0
        %4145 = vmatprep.subr.bf16.mxu0 0
        %4146 = vmatpush1.bf16.msra.mxu0 0
        %4147 = vmatprep.subr.bf16.mxu0 0
        %4148 = vmatpush1.bf16.msra.mxu0 0
        %4149 = vmatprep.subr.bf16.mxu0 0
        %4150 = vmatpush1.bf16.msra.mxu0 0
        %4151 = vmatprep.subr.bf16.mxu0 0
        %4152 = vmatpush1.bf16.msra.mxu0 0
        %4153 = vmatprep.subr.bf16.mxu0 0
        %4154 = vmatpush1.bf16.msra.mxu0 0
        %4155 = vmatprep.subr.bf16.mxu0 0
        %4156 = vmatpush1.bf16.msra.mxu0 0
        %4157 = vmatprep.subr.bf16.mxu0 0
        %4158 = vmatpush1.bf16.msra.mxu0 0
        %4159 = vmatprep.subr.bf16.mxu0 0
        %4160 = vmatpush1.bf16.msra.mxu0 0
        %4161 = vmatprep.subr.bf16.mxu0 0
        %4162 = vmatpush1.bf16.msra.mxu0 0
        %4163 = vmatprep.subr.bf16.mxu0 0
        %4164 = vmatpush1.bf16.msra.mxu0 0
        %4165 = vmatprep.subr.bf16.mxu0 0
        %4166 = vmatpush1.bf16.msra.mxu0 0
        %4167 = vmatprep.subr.bf16.mxu0 0
        %4168 = vmatpush1.bf16.msra.mxu0 0
        %4169 = vmatprep.mubr.bf16.mxu0 0
        %4170 = vmatmul.mubr.bf16.gmra.mrb[0].mxu0 %v4135
        %v4171 = vpop.f32.mrb[0].mxu0
        %v4172 = vadd.f32 0.0, %v4171
        %v4173 = vpop.f32.mrb[0].mxu0
        %v4174 = vadd.f32 0.0, %v4173
        %v4175 = vpop.f32.mrb[0].mxu0
        %v4176 = vpop.f32.mrb[0].mxu0
        %4177 = vdwg.mxu0
        %4179 = vset.pattern.permute.xlu0 0
        %4180 = vperm.xlu0 %4179, %v4053
        %v4181 = vpop.permute.xlu0 %4180
        %v4183 = vmul.f32 %v4172, %v4181
        %v4184 = vmul.f32 %v4174, %v4181
        %4186 = vset.pattern.permute.xlu0 0
        %4187 = vperm.xlu0 %4186, %v4054
        %v4188 = vpop.permute.xlu0 %4187
        %v4190 = vadd.f32 %v4183, %v4188
        %v4191 = vadd.f32 %v4184, %v4188
        %v4192 = vpack.c.bf16 %v4131, %v4130
        %v4193 = vunpack.c.l.bf16 %v4192
        %v4194 = vunpack.c.h.bf16 %v4192
        %v4195 = vsub.f32 %v4130, %v4193
        %v4196 = vsub.f32 %v4131, %v4194
        %v4197 = vpack.c.bf16 %v4196, %v4195
        %v4206 = vunpack.c.l.b16 %v965
        %v4207 = vunpack.c.h.b16 %v965
        %v4208 = vunpack.c.l.b16 %v966
        %v4209 = vunpack.c.h.b16 %v966
        %v4210 = vunpack.c.l.b16 %v967
        %v4211 = vunpack.c.h.b16 %v967
        %v4212 = vunpack.c.l.b16 %v968
        %v4213 = vunpack.c.h.b16 %v968
        %v4214 = vunpack.c.l.b16 %v969
        %v4215 = vunpack.c.h.b16 %v969
        %v4216 = vunpack.c.l.b16 %v970
        %v4217 = vunpack.c.h.b16 %v970
        %v4218 = vunpack.c.l.b16 %v971
        %v4219 = vunpack.c.h.b16 %v971
        %v4220 = vunpack.c.l.b16 %v972
        %v4221 = vunpack.c.h.b16 %v972
        %v4222 = vpack.c.b16 %v4208, %v4206
        %v4223 = vpack.c.b16 %v4209, %v4207
        %v4224 = vpack.c.b16 %v4212, %v4210
        %v4225 = vpack.c.b16 %v4213, %v4211
        %v4226 = vpack.c.b16 %v4216, %v4214
        %v4227 = vpack.c.b16 %v4217, %v4215
        %v4228 = vpack.c.b16 %v4220, %v4218
        %v4229 = vpack.c.b16 %v4221, %v4219
        %vm4238 = vcmask 523264
        %v4240 = vsel %vm4238, %v4197, 0
        %4242 = vmatprep.subr.bf16.mxu0 %v4223
        %4243 = vmatpush1.bf16.msra.mxu0 %v4222
        %4244 = vmatprep.subr.bf16.mxu0 %v4225
        %4245 = vmatpush1.bf16.msra.mxu0 %v4224
        %4246 = vmatprep.subr.bf16.mxu0 %v4227
        %4247 = vmatpush1.bf16.msra.mxu0 %v4226
        %4248 = vmatprep.subr.bf16.mxu0 %v4229
        %4249 = vmatpush1.bf16.msra.mxu0 %v4228
        %4250 = vmatprep.subr.bf16.mxu0 0
        %4251 = vmatpush1.bf16.msra.mxu0 0
        %4252 = vmatprep.subr.bf16.mxu0 0
        %4253 = vmatpush1.bf16.msra.mxu0 0
        %4254 = vmatprep.subr.bf16.mxu0 0
        %4255 = vmatpush1.bf16.msra.mxu0 0
        %4256 = vmatprep.subr.bf16.mxu0 0
        %4257 = vmatpush1.bf16.msra.mxu0 0
        %4258 = vmatprep.subr.bf16.mxu0 0
        %4259 = vmatpush1.bf16.msra.mxu0 0
        %4260 = vmatprep.subr.bf16.mxu0 0
        %4261 = vmatpush1.bf16.msra.mxu0 0
        %4262 = vmatprep.subr.bf16.mxu0 0
        %4263 = vmatpush1.bf16.msra.mxu0 0
        %4264 = vmatprep.subr.bf16.mxu0 0
        %4265 = vmatpush1.bf16.msra.mxu0 0
        %4266 = vmatprep.subr.bf16.mxu0 0
        %4267 = vmatpush1.bf16.msra.mxu0 0
        %4268 = vmatprep.subr.bf16.mxu0 0
        %4269 = vmatpush1.bf16.msra.mxu0 0
        %4270 = vmatprep.subr.bf16.mxu0 0
        %4271 = vmatpush1.bf16.msra.mxu0 0
        %4272 = vmatprep.subr.bf16.mxu0 0
        %4273 = vmatpush1.bf16.msra.mxu0 0
        %4274 = vmatprep.mubr.bf16.mxu0 0
        %4275 = vmatmul.mubr.bf16.gmra.mrb[0].mxu0 %v4240
        %v4276 = vpop.f32.mrb[0].mxu0
        %v4277 = vadd.f32 0.0, %v4276
        %v4278 = vpop.f32.mrb[0].mxu0
        %v4279 = vadd.f32 0.0, %v4278
        %v4280 = vpop.f32.mrb[0].mxu0
        %v4281 = vadd.f32 0.0, %v4280
        %v4282 = vpop.f32.mrb[0].mxu0
        %v4283 = vadd.f32 0.0, %v4282
        %4284 = vdwg.mxu0
        %v4286 = vsel %vm4238, %v4192, 0
        %4288 = vmatprep.subr.bf16.mxu0 %v4223
        %4289 = vmatpush1.bf16.msra.mxu0 %v4222
        %4290 = vmatprep.subr.bf16.mxu0 %v4225
        %4291 = vmatpush1.bf16.msra.mxu0 %v4224
        %4292 = vmatprep.subr.bf16.mxu0 %v4227
        %4293 = vmatpush1.bf16.msra.mxu0 %v4226
        %4294 = vmatprep.subr.bf16.mxu0 %v4229
        %4295 = vmatpush1.bf16.msra.mxu0 %v4228
        %4296 = vmatprep.subr.bf16.mxu0 0
        %4297 = vmatpush1.bf16.msra.mxu0 0
        %4298 = vmatprep.subr.bf16.mxu0 0
        %4299 = vmatpush1.bf16.msra.mxu0 0
        %4300 = vmatprep.subr.bf16.mxu0 0
        %4301 = vmatpush1.bf16.msra.mxu0 0
        %4302 = vmatprep.subr.bf16.mxu0 0
        %4303 = vmatpush1.bf16.msra.mxu0 0
        %4304 = vmatprep.subr.bf16.mxu0 0
        %4305 = vmatpush1.bf16.msra.mxu0 0
        %4306 = vmatprep.subr.bf16.mxu0 0
        %4307 = vmatpush1.bf16.msra.mxu0 0
        %4308 = vmatprep.subr.bf16.mxu0 0
        %4309 = vmatpush1.bf16.msra.mxu0 0
        %4310 = vmatprep.subr.bf16.mxu0 0
        %4311 = vmatpush1.bf16.msra.mxu0 0
        %4312 = vmatprep.subr.bf16.mxu0 0
        %4313 = vmatpush1.bf16.msra.mxu0 0
        %4314 = vmatprep.subr.bf16.mxu0 0
        %4315 = vmatpush1.bf16.msra.mxu0 0
        %4316 = vmatprep.subr.bf16.mxu0 0
        %4317 = vmatpush1.bf16.msra.mxu0 0
        %4318 = vmatprep.subr.bf16.mxu0 0
        %4319 = vmatpush1.bf16.msra.mxu0 0
        %4320 = vmatprep.mubr.bf16.mxu0 0
        %4321 = vmatmul.mubr.bf16.gmra.mrb[0].mxu0 %v4286
        %v4322 = vpop.f32.mrb[0].mxu0
        %v4323 = vadd.f32 %v4277, %v4322
        %v4324 = vpop.f32.mrb[0].mxu0
        %v4325 = vadd.f32 %v4279, %v4324
        %v4326 = vpop.f32.mrb[0].mxu0
        %v4327 = vadd.f32 %v4281, %v4326
        %v4328 = vpop.f32.mrb[0].mxu0
        %v4329 = vadd.f32 %v4283, %v4328
        %4330 = vdwg.mxu0
        %4332 = vrot.lane.b32.xlu0 %v4191, 17
        %v4333 = vpop.permute.xlu0 %4332
        %4336 = vrot.lane.b32.xlu0 %v4190, 17
        %v4337 = vpop.permute.xlu0 %4336
        %v4338 = vsel %vm1030, %v4337, %v4333
        %v4341 = vsel %vm1030, %v4333, %v4337
        %v4342 = vsel %vm1037, %v4341, 0.0
        %v4343 = vsel %vm1038, %v4338, 0.0
        %4344 = vrot.lane.b32.xlu0 %v4191, 16
        %v4345 = vpop.permute.xlu0 %4344
        %4347 = vrot.lane.b32.xlu0 %v4190, 16
        %v4348 = vpop.permute.xlu0 %4347
        %v4349 = vsel %vm1048, %v4348, %v4345
        %v4352 = vsel %vm1048, %v4345, %v4348
        %v4353 = vsel %vm1055, %v4352, 0.0
        %v4354 = vsel %vm1056, %v4349, 0.0
        %v4355 = vadd.f32 %v4342, %v4353
        %v4356 = vadd.f32 %v4343, %v4354
        %4357 = vrot.lane.b32.xlu0 %v4191, 15
        %v4358 = vpop.permute.xlu0 %4357
        %4360 = vrot.lane.b32.xlu0 %v4190, 15
        %v4361 = vpop.permute.xlu0 %4360
        %v4362 = vsel %vm1173, %v4361, %v4358
        %v4365 = vsel %vm1173, %v4358, %v4361
        %v4366 = vsel %vm1180, %v4365, 0.0
        %v4367 = vsel %vm1181, %v4362, 0.0
        %v4368 = vadd.f32 %v4355, %v4366
        %v4369 = vadd.f32 %v4356, %v4367
        %4370 = vrot.lane.b32.xlu0 %v4191, 1
        %v4371 = vpop.permute.xlu0 %4370
        %4373 = vrot.lane.b32.xlu0 %v4190, 1
        %v4374 = vpop.permute.xlu0 %4373
        %v4375 = vsel %vm1245, %v4374, %v4371
        %v4378 = vsel %vm1245, %v4371, %v4374
        %v4379 = vsel %vm1252, %v4378, 0.0
        %v4380 = vsel %vm1253, %v4375, 0.0
        %v4381 = vadd.f32 %v4368, %v4379
        %v4382 = vadd.f32 %v4369, %v4380
        %v4383 = vadd.f32 %v4381, %v4190
        %v4384 = vadd.f32 %v4382, %v4191
        %4385 = vrot.lane.b32.xlu0 %v4190, 127
        %v4386 = vpop.permute.xlu0 %4385
        %4387 = vrot.lane.b32.xlu0 %v4191, 127
        %v4388 = vpop.permute.xlu0 %4387
        %v4389 = vsel %vm1373, %v4386, %v4388
        %v4393 = vsel %vm1373, %v4388, %v4386
        %v4394 = vsel %vm1381, %v4389, 0.0
        %v4395 = vsel %vm1382, %v4393, 0.0
        %v4396 = vadd.f32 %v4383, %v4394
        %v4397 = vadd.f32 %v4384, %v4395
        %4398 = vrot.lane.b32.xlu0 %v4190, 113
        %v4399 = vpop.permute.xlu0 %4398
        %4400 = vrot.lane.b32.xlu0 %v4191, 113
        %v4401 = vpop.permute.xlu0 %4400
        %v4402 = vsel %vm1445, %v4399, %v4401
        %v4406 = vsel %vm1445, %v4401, %v4399
        %v4407 = vsel %vm1453, %v4402, 0.0
        %v4408 = vsel %vm1454, %v4406, 0.0
        %v4409 = vadd.f32 %v4396, %v4407
        %v4410 = vadd.f32 %v4397, %v4408
        %4411 = vrot.lane.b32.xlu0 %v4190, 112
        %v4412 = vpop.permute.xlu0 %4411
        %4413 = vrot.lane.b32.xlu0 %v4191, 112
        %v4414 = vpop.permute.xlu0 %4413
        %v4415 = vsel %vm1517, %v4412, %v4414
        %v4419 = vsel %vm1517, %v4414, %v4412
        %v4420 = vsel %vm1525, %v4415, 0.0
        %v4421 = vsel %vm1526, %v4419, 0.0
        %v4422 = vadd.f32 %v4409, %v4420
        %v4423 = vadd.f32 %v4410, %v4421
        %4424 = vrot.lane.b32.xlu0 %v4190, 111
        %v4425 = vpop.permute.xlu0 %4424
        %4426 = vrot.lane.b32.xlu0 %v4191, 111
        %v4427 = vpop.permute.xlu0 %4426
        %v4428 = vsel %vm1589, %v4425, %v4427
        %v4432 = vsel %vm1589, %v4427, %v4425
        %v4433 = vsel %vm1597, %v4428, 0.0
        %v4434 = vsel %vm1598, %v4432, 0.0
        %v4435 = vadd.f32 %v4422, %v4433
        %v4436 = vadd.f32 %v4423, %v4434
        %v4437 = vmul.f32 %v4435, 0.11111111
        %v4438 = vmul.f32 %v4436, 0.11111111
        %v4439 = vpack.c.bf16 %v4437, %v4437
        %v4440 = vpack.c.bf16 %v4438, %v4438
        %v4441 = vunpack.c.l.bf16 %v4439
        %v4442 = vunpack.c.l.bf16 %v4440
        %v4443 = vsub.f32 %v4437, %v4441
        %v4444 = vsub.f32 %v4438, %v4442
        %v4445 = vpack.c.bf16 %v4443, %v4443
        %v4446 = vpack.c.bf16 %v4444, %v4444
        %4447 = vmatprep.subr.bf16.mxu0 0
        %4448 = vmatpush1.bf16.msra.mxu0 %v1745
        %4449 = vmatprep.subr.bf16.mxu0 0
        %4450 = vmatpush1.bf16.msra.mxu0 %v1746
        %4451 = vmatprep.subr.bf16.mxu0 0
        %4452 = vmatpush1.bf16.msra.mxu0 %v1747
        %4453 = vmatprep.subr.bf16.mxu0 0
        %4454 = vmatpush1.bf16.msra.mxu0 %v1748
        %4455 = vmatprep.subr.bf16.mxu0 0
        %4456 = vmatpush1.bf16.msra.mxu0 %v1749
        %4457 = vmatprep.subr.bf16.mxu0 0
        %4458 = vmatpush1.bf16.msra.mxu0 %v1750
        %4459 = vmatprep.subr.bf16.mxu0 0
        %4460 = vmatpush1.bf16.msra.mxu0 %v1751
        %4461 = vmatprep.subr.bf16.mxu0 0
        %4462 = vmatpush1.bf16.msra.mxu0 %v1752
        %4463 = vmatprep.subr.bf16.mxu0 0
        %4464 = vmatpush1.bf16.msra.mxu0 %v1753
        %4465 = vmatprep.subr.bf16.mxu0 0
        %4466 = vmatpush1.bf16.msra.mxu0 %v1754
        %4467 = vmatprep.subr.bf16.mxu0 0
        %4468 = vmatpush1.bf16.msra.mxu0 %v1755
        %4469 = vmatprep.subr.bf16.mxu0 0
        %4470 = vmatpush1.bf16.msra.mxu0 %v1756
        %4471 = vmatprep.subr.bf16.mxu0 0
        %4472 = vmatpush1.bf16.msra.mxu0 %v1757
        %4473 = vmatprep.subr.bf16.mxu0 0
        %4474 = vmatpush1.bf16.msra.mxu0 %v1758
        %4475 = vmatprep.subr.bf16.mxu0 0
        %4476 = vmatpush1.bf16.msra.mxu0 %v1759
        %4477 = vmatprep.subr.bf16.mxu0 0
        %4478 = vmatpush1.bf16.msra.mxu0 %v1760
        %4479 = vmatprep.mubr.bf16.mxu0 %v4446
        %4480 = vmatmul.mubr.bf16.gmra.mrb[0].mxu0 %v4445
        %v4481 = vpop.f32.mrb[0].mxu0
        %v4482 = vadd.f32 0.0, %v4481
        %v4483 = vpop.f32.mrb[0].mxu0
        %v4484 = vpop.f32.mrb[0].mxu0
        %v4485 = vpop.f32.mrb[0].mxu0
        %4486 = vdwg.mxu0
        %4487 = vmatprep.subr.bf16.mxu0 0
        %4488 = vmatpush1.bf16.msra.mxu0 %v1745
        %4489 = vmatprep.subr.bf16.mxu0 0
        %4490 = vmatpush1.bf16.msra.mxu0 %v1746
        %4491 = vmatprep.subr.bf16.mxu0 0
        %4492 = vmatpush1.bf16.msra.mxu0 %v1747
        %4493 = vmatprep.subr.bf16.mxu0 0
        %4494 = vmatpush1.bf16.msra.mxu0 %v1748
        %4495 = vmatprep.subr.bf16.mxu0 0
        %4496 = vmatpush1.bf16.msra.mxu0 %v1749
        %4497 = vmatprep.subr.bf16.mxu0 0
        %4498 = vmatpush1.bf16.msra.mxu0 %v1750
        %4499 = vmatprep.subr.bf16.mxu0 0
        %4500 = vmatpush1.bf16.msra.mxu0 %v1751
        %4501 = vmatprep.subr.bf16.mxu0 0
        %4502 = vmatpush1.bf16.msra.mxu0 %v1752
        %4503 = vmatprep.subr.bf16.mxu0 0
        %4504 = vmatpush1.bf16.msra.mxu0 %v1753
        %4505 = vmatprep.subr.bf16.mxu0 0
        %4506 = vmatpush1.bf16.msra.mxu0 %v1754
        %4507 = vmatprep.subr.bf16.mxu0 0
        %4508 = vmatpush1.bf16.msra.mxu0 %v1755
        %4509 = vmatprep.subr.bf16.mxu0 0
        %4510 = vmatpush1.bf16.msra.mxu0 %v1756
        %4511 = vmatprep.subr.bf16.mxu0 0
        %4512 = vmatpush1.bf16.msra.mxu0 %v1757
        %4513 = vmatprep.subr.bf16.mxu0 0
        %4514 = vmatpush1.bf16.msra.mxu0 %v1758
        %4515 = vmatprep.subr.bf16.mxu0 0
        %4516 = vmatpush1.bf16.msra.mxu0 %v1759
        %4517 = vmatprep.subr.bf16.mxu0 0
        %4518 = vmatpush1.bf16.msra.mxu0 %v1760
        %4519 = vmatprep.mubr.bf16.mxu0 %v4440
        %4520 = vmatmul.mubr.bf16.gmra.mrb[0].mxu0 %v4439
        %v4521 = vpop.f32.mrb[0].mxu0
        %v4522 = vadd.f32 %v4482, %v4521
        %v4523 = vpop.f32.mrb[0].mxu0
        %v4524 = vpop.f32.mrb[0].mxu0
        %v4525 = vpop.f32.mrb[0].mxu0
        %4526 = vdwg.mxu0
        %v4527 = vadd.f32 %v2595, %v4522
        %v4528 = vmax.f32 %v4527, 0.0
        %v4529 = vadd.f32 %v4042, %v4323
        %v4530 = vadd.f32 %v4043, %v4325
        %v4531 = vadd.f32 %v4044, %v4327
        %v4532 = vadd.f32 %v4045, %v4329
        %v4533 = vmax.f32 %v4529, 0.0
        %v4534 = vmax.f32 %v4530, 0.0
        %v4535 = vmax.f32 %v4531, 0.0
        %v4536 = vmax.f32 %v4532, 0.0
        %4537 = vst.msk [vmem:[%s914] sm:$0xff] %vm4238, %v4528
        %4538 = vst [vmem:[%s921] sm:$0xff] %v4533
        %4539 = vst [vmem:[%s921 + $0x8] sm:$0xff] %v4534
        %4540 = vst [vmem:[%s921 + $0x10] sm:$0xff] %v4535
        %4541 = vst [vmem:[%s921 + $0x18] sm:$0xff] %v4536
        %s4542 = sand.u32 %s683, 1
        %s4543 = scalar_lea.sflag [#allocation3], %s4542
        %s4544 = sand.u32 %s683, 1
        %s4545 = smul.addr %s4544, 8
        %s4546 = scalar_lea.vmem [#allocation2], %s4545
        %s4547 = sand.u32 %s709, 1
        %s4548 = scalar_lea.sflag [#allocation5], %s4547
        %s4549 = sand.u32 %s709, 1
        %s4550 = smul.addr %s4549, 32
        %s4551 = scalar_lea.vmem [#allocation4], %s4550
        // Predicated region
        $region133: #{tpu_custom_call.1} parent=131 // pred_check
          %p4552 = pneg %p693
        $region134: #{tpu_custom_call.1} parent=131 // pred_check_branch
          %4554 = sbr.rel (%p4552) target = $region136
        $region135: #{tpu_custom_call.1} parent=131 // pred_region
          %s4556 = ssub.s32 128, 128
          %4557 = vsyncadd %s4543, %s4556
          %s4558 = smul.addr %s77, 128
          %s4559 = scalar_lea.hbm %s57, %s4558
          %s4561 = sshll.u32 %s4546, 4
          %s4562 = int_to_ptr.vmem [resolvable:$true] %s4561
          %4564 = dma.vmem_to_hbm [thread:$0]  %s4562, 128, %s4559, %s4543
        $region136: #{tpu_custom_call.1} parent=131 // pred_fallthru
          _
        // Predicated region
        $region137: #{tpu_custom_call.1} parent=131 // pred_check
          %p4565 = pneg %p719
        $region138: #{tpu_custom_call.1} parent=131 // pred_check_branch
          %4567 = sbr.rel (%p4565) target = $region140
        $region139: #{tpu_custom_call.1} parent=131 // pred_region
          %s4569 = ssub.s32 512, 512
          %4570 = vsyncadd %s4548, %s4569
          %s4571 = smul.addr %s77, 4
          %s4572 = smul.addr %s4571, 128
          %s4573 = scalar_lea.hbm %s59, %s4572
          %s4574 = sshll.u32 %s4551, 4
          %s4575 = int_to_ptr.vmem [resolvable:$true] %s4574
          %4580 = dma.vmem_to_hbm [thread:$0]  %s4575, 512, %s4573, %s4548, 256, 256, 16
        $region140: #{tpu_custom_call.1} parent=131 // pred_fallthru
          _
      $region132: #{tpu_custom_call.1} parent=5 // pred_fallthru
        _
      %p4581 = scmp.le.s32.totalorder 2, %s72
      // Predicated region
      $region141: #{tpu_custom_call.1} parent=5 // pred_check
        %p4582 = pneg %p4581
      $region142: #{tpu_custom_call.1} parent=5 // pred_check_branch
        %4584 = sbr.rel (%p4582) target = $region144
      $region143: #{tpu_custom_call.1} parent=5 // pred_region
        %s4585 = ssub.s32 %s72, 2
        // Predicated region
        $region145: #{tpu_custom_call.1} parent=143 // pred_check
          %p4586 = pneg %p699
        $region146: #{tpu_custom_call.1} parent=143 // pred_check_branch
          %4588 = sbr.rel (%p4586) target = $region148
        $region147: #{tpu_custom_call.1} parent=143 // pred_region
          %s4589 = sand.u32 %s684, 1
          %s4590 = scalar_lea.sflag [#allocation3], %s4589
          %s4591 = sand.u32 %s684, 1
          %s4592 = smul.addr %s4591, 8
          %s4593 = scalar_lea.vmem [#allocation2], %s4592
          %4594 = dma.done %s4590, 128
        $region148: #{tpu_custom_call.1} parent=143 // pred_fallthru
          _
        // Predicated region
        $region149: #{tpu_custom_call.1} parent=143 // pred_check
          %p4595 = pneg %p725
        $region150: #{tpu_custom_call.1} parent=143 // pred_check_branch
          %4597 = sbr.rel (%p4595) target = $region152
        $region151: #{tpu_custom_call.1} parent=143 // pred_region
          %s4598 = sand.u32 %s710, 1
          %s4599 = scalar_lea.sflag [#allocation5], %s4598
          %s4600 = sand.u32 %s710, 1
          %s4601 = smul.addr %s4600, 32
          %s4602 = scalar_lea.vmem [#allocation4], %s4601
          %4603 = dma.done %s4599, 512
        $region152: #{tpu_custom_call.1} parent=143 // pred_fallthru
          _
      $region144: #{tpu_custom_call.1} parent=5 // pred_fallthru
        _
    $region6: #{tpu_custom_call.1} parent=1 // loop_footer
      %s76 = sadd.s32 1, %s72
    $region7: #{tpu_custom_call.1} parent=1 // loop_footer_branch
      %71 = sbr.rel target = $region3
    $region8: #{tpu_custom_call.1} parent=1 // loop_exit
      _
    %4604 = vsyncpa [#allocation3], 1
    %s4605 = scalar_lea.sflag [#allocation3], 1
    %4606 = vsyncpa %s4605, 1
    %4607 = vsyncpa [#allocation5], 1
    %s4608 = scalar_lea.sflag [#allocation5], 1
    %4609 = vsyncpa %s4608, 1

</llo_original>
